<compile_context>
chip_gen: v7x
topology: tpu7x:2x2x1
jax: 0.10.0
libtpu: 0.0.40
codegen_flags: <defaults>
</compile_context>

<pallas_src>
import functools

import jax
import jax.numpy as jnp
from jax.experimental import pallas as pl
from jax.experimental.pallas import tpu as pltpu

# Layer widths of FNN_4d (torch spec)
_DIMS = [128, 256, 512, 1024, 512, 256, 256, 64, 32, 1]
_LANE = 128


def _round_up(n, m):
    return (n + m - 1) // m * m


def _fnn_kernel(x_ref, *refs):
    """refs = (w1, b1, ..., w10, b10, o_ref).

    x_ref:  (TM, IN_PAD)   bf16 activation tile
    w_i:    (din_pad, dout_pad) bf16, resident in VMEM (constant index_map)
    b_i:    (1, dout_pad)  f32
    o_ref:  (TM, OUT_PAD)  f32 (lane-dense; real output is column 0)
    """
    o_ref = refs[-1]
    params = refs[:-1]
    n_layers = len(params) // 2

    h = x_ref[...]  # bf16
    for i in range(n_layers):
        w = params[2 * i][...]        # bf16 (din_pad, dout_pad)
        b = params[2 * i + 1][...]    # f32  (1, dout_pad)
        acc = jnp.dot(h, w, preferred_element_type=jnp.float32) + b
        if i < n_layers - 1:
            h = jnp.maximum(acc, 0.0).astype(jnp.bfloat16)   # ReLU, back to bf16
        else:
            h = jax.nn.sigmoid(acc)                          # final sigmoid in f32
    o_ref[...] = h.astype(o_ref.dtype)


def init_params(key, n_inputs):
    """Torch-style nn.Linear init: w ~ U(-1/sqrt(fan_in), +), shape (out, in); b (out,)."""
    params = []
    d_in = n_inputs
    for d_out in _DIMS:
        key, kw, kb = jax.random.split(key, 3)
        bound = 1.0 / float(jnp.sqrt(jnp.float32(d_in)))
        w = jax.random.uniform(kw, (d_out, d_in), jnp.float32, -bound, bound)
        b = jax.random.uniform(kb, (d_out,), jnp.float32, -bound, bound)
        params.append((w, b))
        d_in = d_out
    return params


def pack_params(torch_params, n_inputs):
    """Transpose to (in, out), zero-pad every in/out dim to a multiple of 128,
    cast weights to bf16 and biases to (1, out_pad) f32. Zero padding preserves the
    exact forward semantics (ReLU(0 + 0) = 0 feeds zero rows downstream)."""
    packed = []
    d_in_pad = _round_up(n_inputs, _LANE)
    for (w, b) in torch_params:
        d_out, d_in = w.shape
        d_out_pad = _round_up(d_out, _LANE)
        wt = jnp.zeros((d_in_pad, d_out_pad), jnp.float32)
        wt = wt.at[:d_in, :d_out].set(w.T)
        bp = jnp.zeros((1, d_out_pad), jnp.float32)
        bp = bp.at[0, :d_out].set(b)
        packed += [wt.astype(jnp.bfloat16), bp]
        d_in_pad = d_out_pad
    return packed


def fnn_4d_forward(x, packed_params, *, tm=256):
    """x: (batch, n_inputs) f32.  Returns (batch, 1) f32."""
    batch, n_in = x.shape
    in_pad = packed_params[0].shape[0]
    out_pad = packed_params[-1].shape[1]

    # Batch tile: 256 for real batches (matches v6e/v7x 256-wide MXU), clamped for
    # tiny batches; always a multiple of 16 (bf16 sublane packing).
    tm = min(tm, _round_up(max(batch, 1), 16))
    b_pad = _round_up(batch, tm)

    # Pad input: batch -> b_pad, features -> in_pad (zeros), cast to bf16.
    x_p = jnp.zeros((b_pad, in_pad), jnp.bfloat16)
    x_p = x_p.at[:batch, :n_in].set(x.astype(jnp.bfloat16))

    grid = (b_pad // tm,)

    in_specs = [pl.BlockSpec((tm, in_pad), lambda i: (i, 0))]
    for p in packed_params:
        # Full-array block, constant index -> fetched once, resident across the grid.
        in_specs.append(pl.BlockSpec(p.shape, lambda i: (0, 0)))
    out_spec = pl.BlockSpec((tm, out_pad), lambda i: (i, 0))

    # Advisory cost estimate.
    flops = 0
    param_bytes = 0
    for k in range(0, len(packed_params), 2):
        w = packed_params[k]
        flops += 2 * b_pad * w.shape[0] * w.shape[1]
        param_bytes += w.size * w.dtype.itemsize
        param_bytes += packed_params[k + 1].size * packed_params[k + 1].dtype.itemsize
    bytes_accessed = param_bytes + x_p.size * 2 + b_pad * out_pad * 4
    cost = pl.CostEstimate(flops=flops,
                           transcendentals=b_pad * out_pad,
                           bytes_accessed=bytes_accessed)

    out = pl.pallas_call(
        _fnn_kernel,
        out_shape=jax.ShapeDtypeStruct((b_pad, out_pad), jnp.float32),
        grid=grid,
        in_specs=in_specs,
        out_specs=out_spec,
        compiler_params=pltpu.CompilerParams(
            dimension_semantics=("parallel",),
            vmem_limit_bytes=48 * 1024 * 1024,
        ),
        cost_estimate=cost,
    )(x_p, *packed_params)

    return out[:batch, :1]


def fnn_4d_reference(x, torch_params):
    """Pure-JAX f32 reference matching the torch forward pass."""
    h = x
    n = len(torch_params)
    for i, (w, b) in enumerate(torch_params):
        h = h @ w.T + b
        h = jnp.maximum(h, 0.0) if i < n - 1 else jax.nn.sigmoid(h)
    return h


if __name__ == "__main__":
    key = jax.random.PRNGKey(0)
    k_x, k_p = jax.random.split(key)

    batch, n_inputs = 8, 4  # FNN_4d with 4 input features
    x = jax.random.normal(k_x, (batch, n_inputs), jnp.float32)

    torch_params = init_params(k_p, n_inputs)
    packed = pack_params(torch_params, n_inputs)

    out = fnn_4d_forward(x, packed)
    out = jax.block_until_ready(out)

    ref = fnn_4d_reference(x, torch_params)

    assert out.shape == (batch, 1), out.shape
    assert bool(jnp.all(jnp.isfinite(out)))
    # bf16 operands / f32 accumulation vs full-f32 reference: loose tolerance.
    max_err = float(jnp.max(jnp.abs(out - ref)))
    assert max_err < 5e-2, f"max abs err vs f32 reference: {max_err}"
    print("KERNEL_OK")
</pallas_src>

<mosaic_0001>
module attributes {stable_mosaic.version = 11 : i64} {
  func.func @_fnn_kernel(%arg0: i32, %arg1: memref<16x128xbf16, #tpu.memory_space<vmem>>, %arg2: memref<128x128xbf16, #tpu.memory_space<vmem>>, %arg3: memref<1x128xf32, #tpu.memory_space<vmem>>, %arg4: memref<128x256xbf16, #tpu.memory_space<vmem>>, %arg5: memref<1x256xf32, #tpu.memory_space<vmem>>, %arg6: memref<256x512xbf16, #tpu.memory_space<vmem>>, %arg7: memref<1x512xf32, #tpu.memory_space<vmem>>, %arg8: memref<512x1024xbf16, #tpu.memory_space<vmem>>, %arg9: memref<1x1024xf32, #tpu.memory_space<vmem>>, %arg10: memref<1024x512xbf16, #tpu.memory_space<vmem>>, %arg11: memref<1x512xf32, #tpu.memory_space<vmem>>, %arg12: memref<512x256xbf16, #tpu.memory_space<vmem>>, %arg13: memref<1x256xf32, #tpu.memory_space<vmem>>, %arg14: memref<256x256xbf16, #tpu.memory_space<vmem>>, %arg15: memref<1x256xf32, #tpu.memory_space<vmem>>, %arg16: memref<256x128xbf16, #tpu.memory_space<vmem>>, %arg17: memref<1x128xf32, #tpu.memory_space<vmem>>, %arg18: memref<128x128xbf16, #tpu.memory_space<vmem>>, %arg19: memref<1x128xf32, #tpu.memory_space<vmem>>, %arg20: memref<128x128xbf16, #tpu.memory_space<vmem>>, %arg21: memref<1x128xf32, #tpu.memory_space<vmem>>, %arg22: memref<16x128xf32, #tpu.memory_space<vmem>>) attributes {dimension_semantics = [#tpu.dimension_semantics<parallel>], iteration_bounds = array<i64: 1>, scalar_prefetch = 0 : i64, scratch_operands = 0 : i64, tpu.core_type = #tpu.core_type<tc>, window_params = [{transform_indices = @transform_0, window_bounds = array<i64: 16, 128>}, {pipeline_mode = #tpu.pipeline_mode<synchronous>, transform_indices = @transform_1, window_bounds = array<i64: 128, 128>}, {pipeline_mode = #tpu.pipeline_mode<synchronous>, transform_indices = @transform_2, window_bounds = array<i64: 1, 128>}, {pipeline_mode = #tpu.pipeline_mode<synchronous>, transform_indices = @transform_3, window_bounds = array<i64: 128, 256>}, {pipeline_mode = #tpu.pipeline_mode<synchronous>, transform_indices = @transform_4, window_bounds = array<i64: 1, 256>}, {pipeline_mode = #tpu.pipeline_mode<synchronous>, transform_indices = @transform_5, window_bounds = array<i64: 256, 512>}, {pipeline_mode = #tpu.pipeline_mode<synchronous>, transform_indices = @transform_6, window_bounds = array<i64: 1, 512>}, {pipeline_mode = #tpu.pipeline_mode<synchronous>, transform_indices = @transform_7, window_bounds = array<i64: 512, 1024>}, {pipeline_mode = #tpu.pipeline_mode<synchronous>, transform_indices = @transform_8, window_bounds = array<i64: 1, 1024>}, {pipeline_mode = #tpu.pipeline_mode<synchronous>, transform_indices = @transform_9, window_bounds = array<i64: 1024, 512>}, {pipeline_mode = #tpu.pipeline_mode<synchronous>, transform_indices = @transform_10, window_bounds = array<i64: 1, 512>}, {pipeline_mode = #tpu.pipeline_mode<synchronous>, transform_indices = @transform_11, window_bounds = array<i64: 512, 256>}, {pipeline_mode = #tpu.pipeline_mode<synchronous>, transform_indices = @transform_12, window_bounds = array<i64: 1, 256>}, {pipeline_mode = #tpu.pipeline_mode<synchronous>, transform_indices = @transform_13, window_bounds = array<i64: 256, 256>}, {pipeline_mode = #tpu.pipeline_mode<synchronous>, transform_indices = @transform_14, window_bounds = array<i64: 1, 256>}, {pipeline_mode = #tpu.pipeline_mode<synchronous>, transform_indices = @transform_15, window_bounds = array<i64: 256, 128>}, {pipeline_mode = #tpu.pipeline_mode<synchronous>, transform_indices = @transform_16, window_bounds = array<i64: 1, 128>}, {pipeline_mode = #tpu.pipeline_mode<synchronous>, transform_indices = @transform_17, window_bounds = array<i64: 128, 128>}, {pipeline_mode = #tpu.pipeline_mode<synchronous>, transform_indices = @transform_18, window_bounds = array<i64: 1, 128>}, {pipeline_mode = #tpu.pipeline_mode<synchronous>, transform_indices = @transform_19, window_bounds = array<i64: 128, 128>}, {pipeline_mode = #tpu.pipeline_mode<synchronous>, transform_indices = @transform_20, window_bounds = array<i64: 1, 128>}, {transform_indices = @transform_21, window_bounds = array<i64: 16, 128>}]} {
    %c0 = arith.constant 0 : index
    %c0_0 = arith.constant 0 : index
    %0 = vector.load %arg1[%c0, %c0_0] : memref<16x128xbf16, #tpu.memory_space<vmem>>, vector<16x128xbf16>
    %c0_1 = arith.constant 0 : index
    %c0_2 = arith.constant 0 : index
    %1 = vector.load %arg2[%c0_1, %c0_2] : memref<128x128xbf16, #tpu.memory_space<vmem>>, vector<128x128xbf16>
    %c0_3 = arith.constant 0 : index
    %c0_4 = arith.constant 0 : index
    %2 = vector.load %arg3[%c0_3, %c0_4] : memref<1x128xf32, #tpu.memory_space<vmem>>, vector<1x128xf32>
    %cst = arith.constant dense<0.000000e+00> : vector<16x128xf32>
    %3 = tpu.matmul %0, %1, %cst {dimension_numbers = #tpu.dot_dimension_numbers<[1], [0], [0], [1], [0, 0, 1, 1], [], []>} : vector<16x128xbf16>, vector<128x128xbf16>, vector<16x128xf32> -> vector<16x128xf32>
    %4 = vector.broadcast %2 : vector<1x128xf32> to vector<16x128xf32>
    %5 = arith.addf %3, %4 : vector<16x128xf32>
    %cst_5 = arith.constant 0.000000e+00 : f32
    %6 = vector.broadcast %cst_5 : f32 to vector<16x128xf32>
    %7 = arith.maximumf %5, %6 : vector<16x128xf32>
    %8 = arith.truncf %7 : vector<16x128xf32> to vector<16x128xbf16>
    %c0_6 = arith.constant 0 : index
    %c0_7 = arith.constant 0 : index
    %9 = vector.load %arg4[%c0_6, %c0_7] : memref<128x256xbf16, #tpu.memory_space<vmem>>, vector<128x256xbf16>
    %c0_8 = arith.constant 0 : index
    %c0_9 = arith.constant 0 : index
    %10 = vector.load %arg5[%c0_8, %c0_9] : memref<1x256xf32, #tpu.memory_space<vmem>>, vector<1x256xf32>
    %cst_10 = arith.constant dense<0.000000e+00> : vector<16x256xf32>
    %11 = tpu.matmul %8, %9, %cst_10 {dimension_numbers = #tpu.dot_dimension_numbers<[1], [0], [0], [1], [0, 0, 1, 1], [], []>} : vector<16x128xbf16>, vector<128x256xbf16>, vector<16x256xf32> -> vector<16x256xf32>
    %12 = vector.broadcast %10 : vector<1x256xf32> to vector<16x256xf32>
    %13 = arith.addf %11, %12 : vector<16x256xf32>
    %cst_11 = arith.constant 0.000000e+00 : f32
    %14 = vector.broadcast %cst_11 : f32 to vector<16x256xf32>
    %15 = arith.maximumf %13, %14 : vector<16x256xf32>
    %16 = arith.truncf %15 : vector<16x256xf32> to vector<16x256xbf16>
    %c0_12 = arith.constant 0 : index
    %c0_13 = arith.constant 0 : index
    %17 = vector.load %arg6[%c0_12, %c0_13] : memref<256x512xbf16, #tpu.memory_space<vmem>>, vector<256x512xbf16>
    %c0_14 = arith.constant 0 : index
    %c0_15 = arith.constant 0 : index
    %18 = vector.load %arg7[%c0_14, %c0_15] : memref<1x512xf32, #tpu.memory_space<vmem>>, vector<1x512xf32>
    %cst_16 = arith.constant dense<0.000000e+00> : vector<16x512xf32>
    %19 = tpu.matmul %16, %17, %cst_16 {dimension_numbers = #tpu.dot_dimension_numbers<[1], [0], [0], [1], [0, 0, 1, 1], [], []>} : vector<16x256xbf16>, vector<256x512xbf16>, vector<16x512xf32> -> vector<16x512xf32>
    %20 = vector.broadcast %18 : vector<1x512xf32> to vector<16x512xf32>
    %21 = arith.addf %19, %20 : vector<16x512xf32>
    %cst_17 = arith.constant 0.000000e+00 : f32
    %22 = vector.broadcast %cst_17 : f32 to vector<16x512xf32>
    %23 = arith.maximumf %21, %22 : vector<16x512xf32>
    %24 = arith.truncf %23 : vector<16x512xf32> to vector<16x512xbf16>
    %c0_18 = arith.constant 0 : index
    %c0_19 = arith.constant 0 : index
    %25 = vector.load %arg8[%c0_18, %c0_19] : memref<512x1024xbf16, #tpu.memory_space<vmem>>, vector<512x1024xbf16>
    %c0_20 = arith.constant 0 : index
    %c0_21 = arith.constant 0 : index
    %26 = vector.load %arg9[%c0_20, %c0_21] : memref<1x1024xf32, #tpu.memory_space<vmem>>, vector<1x1024xf32>
    %cst_22 = arith.constant dense<0.000000e+00> : vector<16x1024xf32>
    %27 = tpu.matmul %24, %25, %cst_22 {dimension_numbers = #tpu.dot_dimension_numbers<[1], [0], [0], [1], [0, 0, 1, 1], [], []>} : vector<16x512xbf16>, vector<512x1024xbf16>, vector<16x1024xf32> -> vector<16x1024xf32>
    %28 = vector.broadcast %26 : vector<1x1024xf32> to vector<16x1024xf32>
    %29 = arith.addf %27, %28 : vector<16x1024xf32>
    %cst_23 = arith.constant 0.000000e+00 : f32
    %30 = vector.broadcast %cst_23 : f32 to vector<16x1024xf32>
    %31 = arith.maximumf %29, %30 : vector<16x1024xf32>
    %32 = arith.truncf %31 : vector<16x1024xf32> to vector<16x1024xbf16>
    %c0_24 = arith.constant 0 : index
    %c0_25 = arith.constant 0 : index
    %33 = vector.load %arg10[%c0_24, %c0_25] : memref<1024x512xbf16, #tpu.memory_space<vmem>>, vector<1024x512xbf16>
    %c0_26 = arith.constant 0 : index
    %c0_27 = arith.constant 0 : index
    %34 = vector.load %arg11[%c0_26, %c0_27] : memref<1x512xf32, #tpu.memory_space<vmem>>, vector<1x512xf32>
    %cst_28 = arith.constant dense<0.000000e+00> : vector<16x512xf32>
    %35 = tpu.matmul %32, %33, %cst_28 {dimension_numbers = #tpu.dot_dimension_numbers<[1], [0], [0], [1], [0, 0, 1, 1], [], []>} : vector<16x1024xbf16>, vector<1024x512xbf16>, vector<16x512xf32> -> vector<16x512xf32>
    %36 = vector.broadcast %34 : vector<1x512xf32> to vector<16x512xf32>
    %37 = arith.addf %35, %36 : vector<16x512xf32>
    %cst_29 = arith.constant 0.000000e+00 : f32
    %38 = vector.broadcast %cst_29 : f32 to vector<16x512xf32>
    %39 = arith.maximumf %37, %38 : vector<16x512xf32>
    %40 = arith.truncf %39 : vector<16x512xf32> to vector<16x512xbf16>
    %c0_30 = arith.constant 0 : index
    %c0_31 = arith.constant 0 : index
    %41 = vector.load %arg12[%c0_30, %c0_31] : memref<512x256xbf16, #tpu.memory_space<vmem>>, vector<512x256xbf16>
    %c0_32 = arith.constant 0 : index
    %c0_33 = arith.constant 0 : index
    %42 = vector.load %arg13[%c0_32, %c0_33] : memref<1x256xf32, #tpu.memory_space<vmem>>, vector<1x256xf32>
    %cst_34 = arith.constant dense<0.000000e+00> : vector<16x256xf32>
    %43 = tpu.matmul %40, %41, %cst_34 {dimension_numbers = #tpu.dot_dimension_numbers<[1], [0], [0], [1], [0, 0, 1, 1], [], []>} : vector<16x512xbf16>, vector<512x256xbf16>, vector<16x256xf32> -> vector<16x256xf32>
    %44 = vector.broadcast %42 : vector<1x256xf32> to vector<16x256xf32>
    %45 = arith.addf %43, %44 : vector<16x256xf32>
    %cst_35 = arith.constant 0.000000e+00 : f32
    %46 = vector.broadcast %cst_35 : f32 to vector<16x256xf32>
    %47 = arith.maximumf %45, %46 : vector<16x256xf32>
    %48 = arith.truncf %47 : vector<16x256xf32> to vector<16x256xbf16>
    %c0_36 = arith.constant 0 : index
    %c0_37 = arith.constant 0 : index
    %49 = vector.load %arg14[%c0_36, %c0_37] : memref<256x256xbf16, #tpu.memory_space<vmem>>, vector<256x256xbf16>
    %c0_38 = arith.constant 0 : index
    %c0_39 = arith.constant 0 : index
    %50 = vector.load %arg15[%c0_38, %c0_39] : memref<1x256xf32, #tpu.memory_space<vmem>>, vector<1x256xf32>
    %cst_40 = arith.constant dense<0.000000e+00> : vector<16x256xf32>
    %51 = tpu.matmul %48, %49, %cst_40 {dimension_numbers = #tpu.dot_dimension_numbers<[1], [0], [0], [1], [0, 0, 1, 1], [], []>} : vector<16x256xbf16>, vector<256x256xbf16>, vector<16x256xf32> -> vector<16x256xf32>
    %52 = vector.broadcast %50 : vector<1x256xf32> to vector<16x256xf32>
    %53 = arith.addf %51, %52 : vector<16x256xf32>
    %cst_41 = arith.constant 0.000000e+00 : f32
    %54 = vector.broadcast %cst_41 : f32 to vector<16x256xf32>
    %55 = arith.maximumf %53, %54 : vector<16x256xf32>
    %56 = arith.truncf %55 : vector<16x256xf32> to vector<16x256xbf16>
    %c0_42 = arith.constant 0 : index
    %c0_43 = arith.constant 0 : index
    %57 = vector.load %arg16[%c0_42, %c0_43] : memref<256x128xbf16, #tpu.memory_space<vmem>>, vector<256x128xbf16>
    %c0_44 = arith.constant 0 : index
    %c0_45 = arith.constant 0 : index
    %58 = vector.load %arg17[%c0_44, %c0_45] : memref<1x128xf32, #tpu.memory_space<vmem>>, vector<1x128xf32>
    %cst_46 = arith.constant dense<0.000000e+00> : vector<16x128xf32>
    %59 = tpu.matmul %56, %57, %cst_46 {dimension_numbers = #tpu.dot_dimension_numbers<[1], [0], [0], [1], [0, 0, 1, 1], [], []>} : vector<16x256xbf16>, vector<256x128xbf16>, vector<16x128xf32> -> vector<16x128xf32>
    %60 = vector.broadcast %58 : vector<1x128xf32> to vector<16x128xf32>
    %61 = arith.addf %59, %60 : vector<16x128xf32>
    %cst_47 = arith.constant 0.000000e+00 : f32
    %62 = vector.broadcast %cst_47 : f32 to vector<16x128xf32>
    %63 = arith.maximumf %61, %62 : vector<16x128xf32>
    %64 = arith.truncf %63 : vector<16x128xf32> to vector<16x128xbf16>
    %c0_48 = arith.constant 0 : index
    %c0_49 = arith.constant 0 : index
    %65 = vector.load %arg18[%c0_48, %c0_49] : memref<128x128xbf16, #tpu.memory_space<vmem>>, vector<128x128xbf16>
    %c0_50 = arith.constant 0 : index
    %c0_51 = arith.constant 0 : index
    %66 = vector.load %arg19[%c0_50, %c0_51] : memref<1x128xf32, #tpu.memory_space<vmem>>, vector<1x128xf32>
    %cst_52 = arith.constant dense<0.000000e+00> : vector<16x128xf32>
    %67 = tpu.matmul %64, %65, %cst_52 {dimension_numbers = #tpu.dot_dimension_numbers<[1], [0], [0], [1], [0, 0, 1, 1], [], []>} : vector<16x128xbf16>, vector<128x128xbf16>, vector<16x128xf32> -> vector<16x128xf32>
    %68 = vector.broadcast %66 : vector<1x128xf32> to vector<16x128xf32>
    %69 = arith.addf %67, %68 : vector<16x128xf32>
    %cst_53 = arith.constant 0.000000e+00 : f32
    %70 = vector.broadcast %cst_53 : f32 to vector<16x128xf32>
    %71 = arith.maximumf %69, %70 : vector<16x128xf32>
    %72 = arith.truncf %71 : vector<16x128xf32> to vector<16x128xbf16>
    %c0_54 = arith.constant 0 : index
    %c0_55 = arith.constant 0 : index
    %73 = vector.load %arg20[%c0_54, %c0_55] : memref<128x128xbf16, #tpu.memory_space<vmem>>, vector<128x128xbf16>
    %c0_56 = arith.constant 0 : index
    %c0_57 = arith.constant 0 : index
    %74 = vector.load %arg21[%c0_56, %c0_57] : memref<1x128xf32, #tpu.memory_space<vmem>>, vector<1x128xf32>
    %cst_58 = arith.constant dense<0.000000e+00> : vector<16x128xf32>
    %75 = tpu.matmul %72, %73, %cst_58 {dimension_numbers = #tpu.dot_dimension_numbers<[1], [0], [0], [1], [0, 0, 1, 1], [], []>} : vector<16x128xbf16>, vector<128x128xbf16>, vector<16x128xf32> -> vector<16x128xf32>
    %76 = vector.broadcast %74 : vector<1x128xf32> to vector<16x128xf32>
    %77 = arith.addf %75, %76 : vector<16x128xf32>
    %78 = arith.negf %77 : vector<16x128xf32>
    %79 = math.exp %78 : vector<16x128xf32>
    %cst_59 = arith.constant 1.000000e+00 : f32
    %80 = vector.broadcast %cst_59 : f32 to vector<16x128xf32>
    %81 = arith.addf %80, %79 : vector<16x128xf32>
    %82 = arith.divf %80, %81 : vector<16x128xf32>
    %c0_60 = arith.constant 0 : index
    %c0_61 = arith.constant 0 : index
    %83 = vector.load %arg22[%c0_60, %c0_61] : memref<16x128xf32, #tpu.memory_space<vmem>>, vector<16x128xf32>
    tpu.vector_store %arg22[%c0_60, %c0_61], %82 {strides = array<i32>} : memref<16x128xf32, #tpu.memory_space<vmem>>, vector<16x128xf32>,
    return
  }
  func.func @transform_0(%arg0: i32) -> (i32, i32) {
    %c0_i32 = arith.constant 0 : i32
    %c0_i32_0 = arith.constant 0 : i32
    return %arg0, %c0_i32 : i32, i32
  }
  func.func @transform_1(%arg0: i32) -> (i32, i32) {
    %c0_i32 = arith.constant 0 : i32
    %c0_i32_0 = arith.constant 0 : i32
    %c0_i32_1 = arith.constant 0 : i32
    return %c0_i32, %c0_i32_0 : i32, i32
  }
  func.func @transform_2(%arg0: i32) -> (i32, i32) {
    %c0_i32 = arith.constant 0 : i32
    %c0_i32_0 = arith.constant 0 : i32
    %c0_i32_1 = arith.constant 0 : i32
    return %c0_i32, %c0_i32_0 : i32, i32
  }
  func.func @transform_3(%arg0: i32) -> (i32, i32) {
    %c0_i32 = arith.constant 0 : i32
    %c0_i32_0 = arith.constant 0 : i32
    %c0_i32_1 = arith.constant 0 : i32
    return %c0_i32, %c0_i32_0 : i32, i32
  }
  func.func @transform_4(%arg0: i32) -> (i32, i32) {
    %c0_i32 = arith.constant 0 : i32
    %c0_i32_0 = arith.constant 0 : i32
    %c0_i32_1 = arith.constant 0 : i32
    return %c0_i32, %c0_i32_0 : i32, i32
  }
  func.func @transform_5(%arg0: i32) -> (i32, i32) {
    %c0_i32 = arith.constant 0 : i32
    %c0_i32_0 = arith.constant 0 : i32
    %c0_i32_1 = arith.constant 0 : i32
    return %c0_i32, %c0_i32_0 : i32, i32
  }
  func.func @transform_6(%arg0: i32) -> (i32, i32) {
    %c0_i32 = arith.constant 0 : i32
    %c0_i32_0 = arith.constant 0 : i32
    %c0_i32_1 = arith.constant 0 : i32
    return %c0_i32, %c0_i32_0 : i32, i32
  }
  func.func @transform_7(%arg0: i32) -> (i32, i32) {
    %c0_i32 = arith.constant 0 : i32
    %c0_i32_0 = arith.constant 0 : i32
    %c0_i32_1 = arith.constant 0 : i32
    return %c0_i32, %c0_i32_0 : i32, i32
  }
  func.func @transform_8(%arg0: i32) -> (i32, i32) {
    %c0_i32 = arith.constant 0 : i32
    %c0_i32_0 = arith.constant 0 : i32
    %c0_i32_1 = arith.constant 0 : i32
    return %c0_i32, %c0_i32_0 : i32, i32
  }
  func.func @transform_9(%arg0: i32) -> (i32, i32) {
    %c0_i32 = arith.constant 0 : i32
    %c0_i32_0 = arith.constant 0 : i32
    %c0_i32_1 = arith.constant 0 : i32
    return %c0_i32, %c0_i32_0 : i32, i32
  }
  func.func @transform_10(%arg0: i32) -> (i32, i32) {
    %c0_i32 = arith.constant 0 : i32
    %c0_i32_0 = arith.constant 0 : i32
    %c0_i32_1 = arith.constant 0 : i32
    return %c0_i32, %c0_i32_0 : i32, i32
  }
  func.func @transform_11(%arg0: i32) -> (i32, i32) {
    %c0_i32 = arith.constant 0 : i32
    %c0_i32_0 = arith.constant 0 : i32
    %c0_i32_1 = arith.constant 0 : i32
    return %c0_i32, %c0_i32_0 : i32, i32
  }
  func.func @transform_12(%arg0: i32) -> (i32, i32) {
    %c0_i32 = arith.constant 0 : i32
    %c0_i32_0 = arith.constant 0 : i32
    %c0_i32_1 = arith.constant 0 : i32
    return %c0_i32, %c0_i32_0 : i32, i32
  }
  func.func @transform_13(%arg0: i32) -> (i32, i32) {
    %c0_i32 = arith.constant 0 : i32
    %c0_i32_0 = arith.constant 0 : i32
    %c0_i32_1 = arith.constant 0 : i32
    return %c0_i32, %c0_i32_0 : i32, i32
  }
  func.func @transform_14(%arg0: i32) -> (i32, i32) {
    %c0_i32 = arith.constant 0 : i32
    %c0_i32_0 = arith.constant 0 : i32
    %c0_i32_1 = arith.constant 0 : i32
    return %c0_i32, %c0_i32_0 : i32, i32
  }
  func.func @transform_15(%arg0: i32) -> (i32, i32) {
    %c0_i32 = arith.constant 0 : i32
    %c0_i32_0 = arith.constant 0 : i32
    %c0_i32_1 = arith.constant 0 : i32
    return %c0_i32, %c0_i32_0 : i32, i32
  }
  func.func @transform_16(%arg0: i32) -> (i32, i32) {
    %c0_i32 = arith.constant 0 : i32
    %c0_i32_0 = arith.constant 0 : i32
    %c0_i32_1 = arith.constant 0 : i32
    return %c0_i32, %c0_i32_0 : i32, i32
  }
  func.func @transform_17(%arg0: i32) -> (i32, i32) {
    %c0_i32 = arith.constant 0 : i32
    %c0_i32_0 = arith.constant 0 : i32
    %c0_i32_1 = arith.constant 0 : i32
    return %c0_i32, %c0_i32_0 : i32, i32
  }
  func.func @transform_18(%arg0: i32) -> (i32, i32) {
    %c0_i32 = arith.constant 0 : i32
    %c0_i32_0 = arith.constant 0 : i32
    %c0_i32_1 = arith.constant 0 : i32
    return %c0_i32, %c0_i32_0 : i32, i32
  }
  func.func @transform_19(%arg0: i32) -> (i32, i32) {
    %c0_i32 = arith.constant 0 : i32
    %c0_i32_0 = arith.constant 0 : i32
    %c0_i32_1 = arith.constant 0 : i32
    return %c0_i32, %c0_i32_0 : i32, i32
  }
  func.func @transform_20(%arg0: i32) -> (i32, i32) {
    %c0_i32 = arith.constant 0 : i32
    %c0_i32_0 = arith.constant 0 : i32
    %c0_i32_1 = arith.constant 0 : i32
    return %c0_i32, %c0_i32_0 : i32, i32
  }
  func.func @transform_21(%arg0: i32) -> (i32, i32) {
    %c0_i32 = arith.constant 0 : i32
    %c0_i32_0 = arith.constant 0 : i32
    return %arg0, %c0_i32 : i32, i32
  }
}

</mosaic_0001>

<llo_original>
// kernel: tpu_custom_call.1
$region0: #{tpu_custom_call.1}
  #allocation0 [shape = 'u32[]', space=smem, size = 0x4, offset = 0x4, fixed_abs, tag = 'smem constant byte address 0x4 - core index']
  #allocation1 [shape = 'u32[144,128]{1,0:T(1,128)}', space=vmem, size = 0x12000, scoped, tag = 'internal scratch']
  %s0 = inlined_call_operand.hbm [shape: bf16[16,128], index: 0, kind: input, shape index: {}]
  %s1 = inlined_call_operand.hbm [shape: bf16[128,128], index: 1, kind: input, shape index: {}]
  %s2 = inlined_call_operand.hbm [shape: f32[1,128], index: 2, kind: input, shape index: {}]
  %s3 = inlined_call_operand.hbm [shape: bf16[128,256], index: 3, kind: input, shape index: {}]
  %s4 = inlined_call_operand.hbm [shape: f32[1,256], index: 4, kind: input, shape index: {}]
  %s5 = inlined_call_operand.hbm [shape: bf16[256,512], index: 5, kind: input, shape index: {}]
  %s6 = inlined_call_operand.hbm [shape: f32[1,512], index: 6, kind: input, shape index: {}]
  %s7 = inlined_call_operand.hbm [shape: bf16[512,1024], index: 7, kind: input, shape index: {}]
  %s8 = inlined_call_operand.hbm [shape: f32[1,1024], index: 8, kind: input, shape index: {}]
  %s9 = inlined_call_operand.hbm [shape: bf16[1024,512], index: 9, kind: input, shape index: {}]
  %s10 = inlined_call_operand.hbm [shape: f32[1,512], index: 10, kind: input, shape index: {}]
  %s11 = inlined_call_operand.hbm [shape: bf16[512,256], index: 11, kind: input, shape index: {}]
  %s12 = inlined_call_operand.hbm [shape: f32[1,256], index: 12, kind: input, shape index: {}]
  %s13 = inlined_call_operand.hbm [shape: bf16[256,256], index: 13, kind: input, shape index: {}]
  %s14 = inlined_call_operand.hbm [shape: f32[1,256], index: 14, kind: input, shape index: {}]
  %s15 = inlined_call_operand.hbm [shape: bf16[256,128], index: 15, kind: input, shape index: {}]
  %s16 = inlined_call_operand.hbm [shape: f32[1,128], index: 16, kind: input, shape index: {}]
  %s17 = inlined_call_operand.vmem [shape: bf16[128,128], index: 17, kind: input, shape index: {}]
  %s18 = inlined_call_operand.vmem [shape: f32[1,128], index: 18, kind: input, shape index: {}]
  %s19 = inlined_call_operand.hbm [shape: bf16[128,128], index: 19, kind: input, shape index: {}]
  %s20 = inlined_call_operand.vmem [shape: f32[1,128], index: 20, kind: input, shape index: {}]
  %s21 = inlined_call_operand.hbm [shape: f32[16,128], index: 21, kind: output, shape index: {}]
  %s22 = sld [smem:[#allocation0]]
  $region166: #{tpu_custom_call.1} parent=0
    _
  %s24 = ssub.s32 1, %s22
  %s25 = scalar_select 0, %s24, %s22
  $region1: #{tpu_custom_call.1} parent=0
    #allocation2 [shape = 'u8[4096]{0}', space=vmem, size = 0x1000, scoped, tag = 'input window, operand 0, single buffered']
    #allocation3 [shape = 's32[1]{0}', space=sflag, size = 0x4, scoped, tag = 'scoped memory for tpu_custom_call.1']
    #allocation4 [shape = 's32[1]{0}', space=sflag, size = 0x4, scoped, tag = 'scoped memory for tpu_custom_call.1']
    #allocation5 [shape = 'u8[32768]{0}', space=vmem, size = 0x8000, scoped, tag = 'input window, operand 1, single buffered']
    #allocation6 [shape = 's32[1]{0}', space=sflag, size = 0x4, scoped, tag = 'scoped memory for tpu_custom_call.1']
    #allocation7 [shape = 'u8[512]{0}', space=vmem, size = 0x400, scoped, tag = 'input window, operand 2, single buffered']
    #allocation8 [shape = 'u8[65536]{0}', space=vmem, size = 0x10000, scoped, tag = 'input window, operand 3, single buffered']
    #allocation9 [shape = 's32[1]{0}', space=sflag, size = 0x4, scoped, tag = 'scoped memory for tpu_custom_call.1']
    #allocation10 [shape = 'u8[1024]{0}', space=vmem, size = 0x400, scoped, tag = 'input window, operand 4, single buffered']
    #allocation11 [shape = 'u8[262144]{0}', space=vmem, size = 0x40000, scoped, tag = 'input window, operand 5, single buffered']
    #allocation12 [shape = 's32[1]{0}', space=sflag, size = 0x4, scoped, tag = 'scoped memory for tpu_custom_call.1']
    #allocation13 [shape = 'u8[2048]{0}', space=vmem, size = 0x800, scoped, tag = 'input window, operand 6, single buffered']
    #allocation14 [shape = 'u8[1048576]{0}', space=vmem, size = 0x100000, scoped, tag = 'input window, operand 7, single buffered']
    #allocation15 [shape = 's32[1]{0}', space=sflag, size = 0x4, scoped, tag = 'scoped memory for tpu_custom_call.1']
    #allocation16 [shape = 'u8[4096]{0}', space=vmem, size = 0x1000, scoped, tag = 'input window, operand 8, single buffered']
    #allocation17 [shape = 'u8[1048576]{0}', space=vmem, size = 0x100000, scoped, tag = 'input window, operand 9, single buffered']
    #allocation18 [shape = 's32[1]{0}', space=sflag, size = 0x4, scoped, tag = 'scoped memory for tpu_custom_call.1']
    #allocation19 [shape = 'u8[2048]{0}', space=vmem, size = 0x800, scoped, tag = 'input window, operand 10, single buffered']
    #allocation20 [shape = 'u8[262144]{0}', space=vmem, size = 0x40000, scoped, tag = 'input window, operand 11, single buffered']
    #allocation21 [shape = 's32[1]{0}', space=sflag, size = 0x4, scoped, tag = 'scoped memory for tpu_custom_call.1']
    #allocation22 [shape = 'u8[1024]{0}', space=vmem, size = 0x400, scoped, tag = 'input window, operand 12, single buffered']
    #allocation23 [shape = 'u8[131072]{0}', space=vmem, size = 0x20000, scoped, tag = 'input window, operand 13, single buffered']
    #allocation24 [shape = 's32[1]{0}', space=sflag, size = 0x4, scoped, tag = 'scoped memory for tpu_custom_call.1']
    #allocation25 [shape = 'u8[1024]{0}', space=vmem, size = 0x400, scoped, tag = 'input window, operand 14, single buffered']
    #allocation26 [shape = 'u8[65536]{0}', space=vmem, size = 0x10000, scoped, tag = 'input window, operand 15, single buffered']
    #allocation27 [shape = 's32[1]{0}', space=sflag, size = 0x4, scoped, tag = 'scoped memory for tpu_custom_call.1']
    #allocation28 [shape = 'u8[512]{0}', space=vmem, size = 0x400, scoped, tag = 'input window, operand 16, single buffered']
    #allocation29 [shape = 'u8[32768]{0}', space=vmem, size = 0x8000, scoped, tag = 'input window, operand 19, single buffered']
    #allocation30 [shape = 's32[1]{0}', space=sflag, size = 0x4, scoped, tag = 'scoped memory for tpu_custom_call.1']
    #allocation31 [shape = 'u8[8192]{0}', space=vmem, size = 0x2000, scoped, tag = 'output window, operand 0, single buffered']
    %26 = vsyncpa [#allocation3], 0
    %27 = vsyncpa [#allocation6], 0
    %28 = vsyncpa [#allocation9], 0
    %29 = vsyncpa [#allocation12], 0
    %30 = vsyncpa [#allocation15], 0
    %31 = vsyncpa [#allocation18], 0
    %32 = vsyncpa [#allocation21], 0
    %33 = vsyncpa [#allocation24], 0
    %34 = vsyncpa [#allocation27], 0
    %35 = vsyncpa [#allocation30], 0
    %36 = vsyncpa [#allocation4], 0
    // Predicated region
    $region2: #{tpu_custom_call.1} parent=1 // pred_check
      _
    $region3: #{tpu_custom_call.1} parent=1 // pred_check_branch
      %38 = sbr.rel (0) target = $region5
    $region4: #{tpu_custom_call.1} parent=1 // pred_region
      %s40 = ssub.s32 128, 128
      %41 = vsyncadd [#allocation3], %s40
      %s42 = sshll.u32 [#allocation2], 4
      %s43 = int_to_ptr.vmem [resolvable:$true] %s42
      %48 = dma.hbm_to_vmem [thread:$0]  %s0, 128, %s43, [#allocation3], 64, 64, 4
    $region5: #{tpu_custom_call.1} parent=1 // pred_fallthru
      _
    // Predicated region
    $region6: #{tpu_custom_call.1} parent=1 // pred_check
      _
    $region7: #{tpu_custom_call.1} parent=1 // pred_check_branch
      %50 = sbr.rel (0) target = $region9
    $region8: #{tpu_custom_call.1} parent=1 // pred_region
      %s52 = ssub.s32 1024, 1024
      %53 = vsyncadd [#allocation6], %s52
      %s54 = sshll.u32 [#allocation5], 4
      %s55 = int_to_ptr.vmem [resolvable:$true] %s54
      %60 = dma.hbm_to_vmem [thread:$0]  %s1, 1024, %s55, [#allocation6], 64, 64, 4
    $region9: #{tpu_custom_call.1} parent=1 // pred_fallthru
      _
    // Predicated region
    $region10: #{tpu_custom_call.1} parent=1 // pred_check
      _
    $region11: #{tpu_custom_call.1} parent=1 // pred_check_branch
      %62 = sbr.rel (0) target = $region13
    $region12: #{tpu_custom_call.1} parent=1 // pred_region
      %s64 = ssub.s32 16, 16
      %65 = vsyncadd [#allocation6], %s64
      %s67 = sshll.u32 [#allocation7], 4
      %s68 = int_to_ptr.vmem [resolvable:$true] %s67
      %70 = dma.hbm_to_vmem [thread:$0]  %s2, 16, %s68, [#allocation6]
    $region13: #{tpu_custom_call.1} parent=1 // pred_fallthru
      _
    // Predicated region
    $region14: #{tpu_custom_call.1} parent=1 // pred_check
      _
    $region15: #{tpu_custom_call.1} parent=1 // pred_check_branch
      %72 = sbr.rel (0) target = $region17
    $region16: #{tpu_custom_call.1} parent=1 // pred_region
      %s74 = ssub.s32 2048, 2048
      %75 = vsyncadd [#allocation9], %s74
      %s76 = sshll.u32 [#allocation8], 4
      %s77 = int_to_ptr.vmem [resolvable:$true] %s76
      %82 = dma.hbm_to_vmem [thread:$0]  %s3, 2048, %s77, [#allocation9], 128, 128, 8
    $region17: #{tpu_custom_call.1} parent=1 // pred_fallthru
      _
    // Predicated region
    $region18: #{tpu_custom_call.1} parent=1 // pred_check
      _
    $region19: #{tpu_custom_call.1} parent=1 // pred_check_branch
      %84 = sbr.rel (0) target = $region21
    $region20: #{tpu_custom_call.1} parent=1 // pred_region
      %s86 = ssub.s32 32, 32
      %87 = vsyncadd [#allocation9], %s86
      %s89 = sshll.u32 [#allocation10], 4
      %s90 = int_to_ptr.vmem [resolvable:$true] %s89
      %92 = dma.hbm_to_vmem [thread:$0]  %s4, 32, %s90, [#allocation9]
    $region21: #{tpu_custom_call.1} parent=1 // pred_fallthru
      _
    // Predicated region
    $region22: #{tpu_custom_call.1} parent=1 // pred_check
      _
    $region23: #{tpu_custom_call.1} parent=1 // pred_check_branch
      %94 = sbr.rel (0) target = $region25
    $region24: #{tpu_custom_call.1} parent=1 // pred_region
      %s96 = ssub.s32 8192, 8192
      %97 = vsyncadd [#allocation12], %s96
      %s98 = sshll.u32 [#allocation11], 4
      %s99 = int_to_ptr.vmem [resolvable:$true] %s98
      %104 = dma.hbm_to_vmem [thread:$0]  %s5, 8192, %s99, [#allocation12], 256, 256, 16
    $region25: #{tpu_custom_call.1} parent=1 // pred_fallthru
      _
    // Predicated region
    $region26: #{tpu_custom_call.1} parent=1 // pred_check
      _
    $region27: #{tpu_custom_call.1} parent=1 // pred_check_branch
      %106 = sbr.rel (0) target = $region29
    $region28: #{tpu_custom_call.1} parent=1 // pred_region
      %s108 = ssub.s32 64, 64
      %109 = vsyncadd [#allocation12], %s108
      %s111 = sshll.u32 [#allocation13], 4
      %s112 = int_to_ptr.vmem [resolvable:$true] %s111
      %114 = dma.hbm_to_vmem [thread:$0]  %s6, 64, %s112, [#allocation12]
    $region29: #{tpu_custom_call.1} parent=1 // pred_fallthru
      _
    // Predicated region
    $region30: #{tpu_custom_call.1} parent=1 // pred_check
      _
    $region31: #{tpu_custom_call.1} parent=1 // pred_check_branch
      %116 = sbr.rel (0) target = $region33
    $region32: #{tpu_custom_call.1} parent=1 // pred_region
      %s118 = ssub.s32 32768, 32768
      %119 = vsyncadd [#allocation15], %s118
      %s120 = sshll.u32 [#allocation14], 4
      %s121 = int_to_ptr.vmem [resolvable:$true] %s120
      %126 = dma.hbm_to_vmem [thread:$0]  %s7, 32768, %s121, [#allocation15], 512, 512, 32
    $region33: #{tpu_custom_call.1} parent=1 // pred_fallthru
      _
    // Predicated region
    $region34: #{tpu_custom_call.1} parent=1 // pred_check
      _
    $region35: #{tpu_custom_call.1} parent=1 // pred_check_branch
      %128 = sbr.rel (0) target = $region37
    $region36: #{tpu_custom_call.1} parent=1 // pred_region
      %s130 = ssub.s32 128, 128
      %131 = vsyncadd [#allocation15], %s130
      %s133 = sshll.u32 [#allocation16], 4
      %s134 = int_to_ptr.vmem [resolvable:$true] %s133
      %136 = dma.hbm_to_vmem [thread:$0]  %s8, 128, %s134, [#allocation15]
    $region37: #{tpu_custom_call.1} parent=1 // pred_fallthru
      _
    // Predicated region
    $region38: #{tpu_custom_call.1} parent=1 // pred_check
      _
    $region39: #{tpu_custom_call.1} parent=1 // pred_check_branch
      %138 = sbr.rel (0) target = $region41
    $region40: #{tpu_custom_call.1} parent=1 // pred_region
      %s140 = ssub.s32 32768, 32768
      %141 = vsyncadd [#allocation18], %s140
      %s142 = sshll.u32 [#allocation17], 4
      %s143 = int_to_ptr.vmem [resolvable:$true] %s142
      %148 = dma.hbm_to_vmem [thread:$0]  %s9, 32768, %s143, [#allocation18], 256, 256, 16
    $region41: #{tpu_custom_call.1} parent=1 // pred_fallthru
      _
    // Predicated region
    $region42: #{tpu_custom_call.1} parent=1 // pred_check
      _
    $region43: #{tpu_custom_call.1} parent=1 // pred_check_branch
      %150 = sbr.rel (0) target = $region45
    $region44: #{tpu_custom_call.1} parent=1 // pred_region
      %s152 = ssub.s32 64, 64
      %153 = vsyncadd [#allocation18], %s152
      %s155 = sshll.u32 [#allocation19], 4
      %s156 = int_to_ptr.vmem [resolvable:$true] %s155
      %158 = dma.hbm_to_vmem [thread:$0]  %s10, 64, %s156, [#allocation18]
    $region45: #{tpu_custom_call.1} parent=1 // pred_fallthru
      _
    // Predicated region
    $region46: #{tpu_custom_call.1} parent=1 // pred_check
      _
    $region47: #{tpu_custom_call.1} parent=1 // pred_check_branch
      %160 = sbr.rel (0) target = $region49
    $region48: #{tpu_custom_call.1} parent=1 // pred_region
      %s162 = ssub.s32 8192, 8192
      %163 = vsyncadd [#allocation21], %s162
      %s164 = sshll.u32 [#allocation20], 4
      %s165 = int_to_ptr.vmem [resolvable:$true] %s164
      %170 = dma.hbm_to_vmem [thread:$0]  %s11, 8192, %s165, [#allocation21], 128, 128, 8
    $region49: #{tpu_custom_call.1} parent=1 // pred_fallthru
      _
    // Predicated region
    $region50: #{tpu_custom_call.1} parent=1 // pred_check
      _
    $region51: #{tpu_custom_call.1} parent=1 // pred_check_branch
      %172 = sbr.rel (0) target = $region53
    $region52: #{tpu_custom_call.1} parent=1 // pred_region
      %s174 = ssub.s32 32, 32
      %175 = vsyncadd [#allocation21], %s174
      %s177 = sshll.u32 [#allocation22], 4
      %s178 = int_to_ptr.vmem [resolvable:$true] %s177
      %180 = dma.hbm_to_vmem [thread:$0]  %s12, 32, %s178, [#allocation21]
    $region53: #{tpu_custom_call.1} parent=1 // pred_fallthru
      _
    // Predicated region
    $region54: #{tpu_custom_call.1} parent=1 // pred_check
      _
    $region55: #{tpu_custom_call.1} parent=1 // pred_check_branch
      %182 = sbr.rel (0) target = $region57
    $region56: #{tpu_custom_call.1} parent=1 // pred_region
      %s184 = ssub.s32 4096, 4096
      %185 = vsyncadd [#allocation24], %s184
      %s186 = sshll.u32 [#allocation23], 4
      %s187 = int_to_ptr.vmem [resolvable:$true] %s186
      %192 = dma.hbm_to_vmem [thread:$0]  %s13, 4096, %s187, [#allocation24], 128, 128, 8
    $region57: #{tpu_custom_call.1} parent=1 // pred_fallthru
      _
    // Predicated region
    $region58: #{tpu_custom_call.1} parent=1 // pred_check
      _
    $region59: #{tpu_custom_call.1} parent=1 // pred_check_branch
      %194 = sbr.rel (0) target = $region61
    $region60: #{tpu_custom_call.1} parent=1 // pred_region
      %s196 = ssub.s32 32, 32
      %197 = vsyncadd [#allocation24], %s196
      %s199 = sshll.u32 [#allocation25], 4
      %s200 = int_to_ptr.vmem [resolvable:$true] %s199
      %202 = dma.hbm_to_vmem [thread:$0]  %s14, 32, %s200, [#allocation24]
    $region61: #{tpu_custom_call.1} parent=1 // pred_fallthru
      _
    // Predicated region
    $region62: #{tpu_custom_call.1} parent=1 // pred_check
      _
    $region63: #{tpu_custom_call.1} parent=1 // pred_check_branch
      %204 = sbr.rel (0) target = $region65
    $region64: #{tpu_custom_call.1} parent=1 // pred_region
      %s206 = ssub.s32 2048, 2048
      %207 = vsyncadd [#allocation27], %s206
      %s208 = sshll.u32 [#allocation26], 4
      %s209 = int_to_ptr.vmem [resolvable:$true] %s208
      %214 = dma.hbm_to_vmem [thread:$0]  %s15, 2048, %s209, [#allocation27], 64, 64, 4
    $region65: #{tpu_custom_call.1} parent=1 // pred_fallthru
      _
    // Predicated region
    $region66: #{tpu_custom_call.1} parent=1 // pred_check
      _
    $region67: #{tpu_custom_call.1} parent=1 // pred_check_branch
      %216 = sbr.rel (0) target = $region69
    $region68: #{tpu_custom_call.1} parent=1 // pred_region
      %s218 = ssub.s32 16, 16
      %219 = vsyncadd [#allocation27], %s218
      %s221 = sshll.u32 [#allocation28], 4
      %s222 = int_to_ptr.vmem [resolvable:$true] %s221
      %224 = dma.hbm_to_vmem [thread:$0]  %s16, 16, %s222, [#allocation27]
    $region69: #{tpu_custom_call.1} parent=1 // pred_fallthru
      _
    // Predicated region
    $region70: #{tpu_custom_call.1} parent=1 // pred_check
      _
    $region71: #{tpu_custom_call.1} parent=1 // pred_check_branch
      %226 = sbr.rel (0) target = $region73
    $region72: #{tpu_custom_call.1} parent=1 // pred_region
      _
    $region73: #{tpu_custom_call.1} parent=1 // pred_fallthru
      _
    // Predicated region
    $region74: #{tpu_custom_call.1} parent=1 // pred_check
      _
    $region75: #{tpu_custom_call.1} parent=1 // pred_check_branch
      %228 = sbr.rel (0) target = $region77
    $region76: #{tpu_custom_call.1} parent=1 // pred_region
      _
    $region77: #{tpu_custom_call.1} parent=1 // pred_fallthru
      _
    // Predicated region
    $region78: #{tpu_custom_call.1} parent=1 // pred_check
      _
    $region79: #{tpu_custom_call.1} parent=1 // pred_check_branch
      %230 = sbr.rel (0) target = $region81
    $region80: #{tpu_custom_call.1} parent=1 // pred_region
      %s232 = ssub.s32 1024, 1024
      %233 = vsyncadd [#allocation30], %s232
      %s234 = sshll.u32 [#allocation29], 4
      %s235 = int_to_ptr.vmem [resolvable:$true] %s234
      %240 = dma.hbm_to_vmem [thread:$0]  %s19, 1024, %s235, [#allocation30], 64, 64, 4
    $region81: #{tpu_custom_call.1} parent=1 // pred_fallthru
      _
    // Predicated region
    $region82: #{tpu_custom_call.1} parent=1 // pred_check
      _
    $region83: #{tpu_custom_call.1} parent=1 // pred_check_branch
      %242 = sbr.rel (0) target = $region85
    $region84: #{tpu_custom_call.1} parent=1 // pred_region
      _
    $region85: #{tpu_custom_call.1} parent=1 // pred_fallthru
      _
    // Predicated region
    $region86: #{tpu_custom_call.1} parent=1 // pred_check
      _
    $region87: #{tpu_custom_call.1} parent=1 // pred_check_branch
      %244 = sbr.rel (0) target = $region89
    $region88: #{tpu_custom_call.1} parent=1 // pred_region
      %245 = dma.done [#allocation3], 128
    $region89: #{tpu_custom_call.1} parent=1 // pred_fallthru
      _
    // Predicated region
    $region90: #{tpu_custom_call.1} parent=1 // pred_check
      _
    $region91: #{tpu_custom_call.1} parent=1 // pred_check_branch
      %247 = sbr.rel (0) target = $region93
    $region92: #{tpu_custom_call.1} parent=1 // pred_region
      %248 = dma.done [#allocation6], 1024
    $region93: #{tpu_custom_call.1} parent=1 // pred_fallthru
      _
    // Predicated region
    $region94: #{tpu_custom_call.1} parent=1 // pred_check
      _
    $region95: #{tpu_custom_call.1} parent=1 // pred_check_branch
      %250 = sbr.rel (0) target = $region97
    $region96: #{tpu_custom_call.1} parent=1 // pred_region
      %251 = dma.done [#allocation6], 16
    $region97: #{tpu_custom_call.1} parent=1 // pred_fallthru
      _
    // Predicated region
    $region98: #{tpu_custom_call.1} parent=1 // pred_check
      _
    $region99: #{tpu_custom_call.1} parent=1 // pred_check_branch
      %253 = sbr.rel (0) target = $region101
    $region100: #{tpu_custom_call.1} parent=1 // pred_region
      %254 = dma.done [#allocation9], 2048
    $region101: #{tpu_custom_call.1} parent=1 // pred_fallthru
      _
    // Predicated region
    $region102: #{tpu_custom_call.1} parent=1 // pred_check
      _
    $region103: #{tpu_custom_call.1} parent=1 // pred_check_branch
      %256 = sbr.rel (0) target = $region105
    $region104: #{tpu_custom_call.1} parent=1 // pred_region
      %257 = dma.done [#allocation9], 32
    $region105: #{tpu_custom_call.1} parent=1 // pred_fallthru
      _
    // Predicated region
    $region106: #{tpu_custom_call.1} parent=1 // pred_check
      _
    $region107: #{tpu_custom_call.1} parent=1 // pred_check_branch
      %259 = sbr.rel (0) target = $region109
    $region108: #{tpu_custom_call.1} parent=1 // pred_region
      %260 = dma.done [#allocation12], 8192
    $region109: #{tpu_custom_call.1} parent=1 // pred_fallthru
      _
    // Predicated region
    $region110: #{tpu_custom_call.1} parent=1 // pred_check
      _
    $region111: #{tpu_custom_call.1} parent=1 // pred_check_branch
      %262 = sbr.rel (0) target = $region113
    $region112: #{tpu_custom_call.1} parent=1 // pred_region
      %263 = dma.done [#allocation12], 64
    $region113: #{tpu_custom_call.1} parent=1 // pred_fallthru
      _
    // Predicated region
    $region114: #{tpu_custom_call.1} parent=1 // pred_check
      _
    $region115: #{tpu_custom_call.1} parent=1 // pred_check_branch
      %265 = sbr.rel (0) target = $region117
    $region116: #{tpu_custom_call.1} parent=1 // pred_region
      %266 = dma.done [#allocation15], 32768
    $region117: #{tpu_custom_call.1} parent=1 // pred_fallthru
      _
    // Predicated region
    $region118: #{tpu_custom_call.1} parent=1 // pred_check
      _
    $region119: #{tpu_custom_call.1} parent=1 // pred_check_branch
      %268 = sbr.rel (0) target = $region121
    $region120: #{tpu_custom_call.1} parent=1 // pred_region
      %269 = dma.done [#allocation15], 128
    $region121: #{tpu_custom_call.1} parent=1 // pred_fallthru
      _
    // Predicated region
    $region122: #{tpu_custom_call.1} parent=1 // pred_check
      _
    $region123: #{tpu_custom_call.1} parent=1 // pred_check_branch
      %271 = sbr.rel (0) target = $region125
    $region124: #{tpu_custom_call.1} parent=1 // pred_region
      %272 = dma.done [#allocation18], 32768
    $region125: #{tpu_custom_call.1} parent=1 // pred_fallthru
      _
    // Predicated region
    $region126: #{tpu_custom_call.1} parent=1 // pred_check
      _
    $region127: #{tpu_custom_call.1} parent=1 // pred_check_branch
      %274 = sbr.rel (0) target = $region129
    $region128: #{tpu_custom_call.1} parent=1 // pred_region
      %275 = dma.done [#allocation18], 64
    $region129: #{tpu_custom_call.1} parent=1 // pred_fallthru
      _
    // Predicated region
    $region130: #{tpu_custom_call.1} parent=1 // pred_check
      _
    $region131: #{tpu_custom_call.1} parent=1 // pred_check_branch
      %277 = sbr.rel (0) target = $region133
    $region132: #{tpu_custom_call.1} parent=1 // pred_region
      %278 = dma.done [#allocation21], 8192
    $region133: #{tpu_custom_call.1} parent=1 // pred_fallthru
      _
    // Predicated region
    $region134: #{tpu_custom_call.1} parent=1 // pred_check
      _
    $region135: #{tpu_custom_call.1} parent=1 // pred_check_branch
      %280 = sbr.rel (0) target = $region137
    $region136: #{tpu_custom_call.1} parent=1 // pred_region
      %281 = dma.done [#allocation21], 32
    $region137: #{tpu_custom_call.1} parent=1 // pred_fallthru
      _
    // Predicated region
    $region138: #{tpu_custom_call.1} parent=1 // pred_check
      _
    $region139: #{tpu_custom_call.1} parent=1 // pred_check_branch
      %283 = sbr.rel (0) target = $region141
    $region140: #{tpu_custom_call.1} parent=1 // pred_region
      %284 = dma.done [#allocation24], 4096
    $region141: #{tpu_custom_call.1} parent=1 // pred_fallthru
      _
    // Predicated region
    $region142: #{tpu_custom_call.1} parent=1 // pred_check
      _
    $region143: #{tpu_custom_call.1} parent=1 // pred_check_branch
      %286 = sbr.rel (0) target = $region145
    $region144: #{tpu_custom_call.1} parent=1 // pred_region
      %287 = dma.done [#allocation24], 32
    $region145: #{tpu_custom_call.1} parent=1 // pred_fallthru
      _
    // Predicated region
    $region146: #{tpu_custom_call.1} parent=1 // pred_check
      _
    $region147: #{tpu_custom_call.1} parent=1 // pred_check_branch
      %289 = sbr.rel (0) target = $region149
    $region148: #{tpu_custom_call.1} parent=1 // pred_region
      %290 = dma.done [#allocation27], 2048
    $region149: #{tpu_custom_call.1} parent=1 // pred_fallthru
      _
    // Predicated region
    $region150: #{tpu_custom_call.1} parent=1 // pred_check
      _
    $region151: #{tpu_custom_call.1} parent=1 // pred_check_branch
      %292 = sbr.rel (0) target = $region153
    $region152: #{tpu_custom_call.1} parent=1 // pred_region
      %293 = dma.done [#allocation27], 16
    $region153: #{tpu_custom_call.1} parent=1 // pred_fallthru
      _
    // Predicated region
    $region154: #{tpu_custom_call.1} parent=1 // pred_check
      _
    $region155: #{tpu_custom_call.1} parent=1 // pred_check_branch
      %295 = sbr.rel (0) target = $region157
    $region156: #{tpu_custom_call.1} parent=1 // pred_region
      %296 = dma.done [#allocation30], 1024
    $region157: #{tpu_custom_call.1} parent=1 // pred_fallthru
      _
    %v298 = vld [vmem:[#allocation2] sm:$0xf]
    %v299 = vld [vmem:[#allocation2 + $0x4] sm:$0xf]
    %v300 = vld [vmem:[#allocation5] sm:$0xf]
    %v301 = vld [vmem:[#allocation5 + $0x4] sm:$0xf]
    %v302 = vld [vmem:[#allocation5 + $0x8] sm:$0xf]
    %v303 = vld [vmem:[#allocation5 + $0xc] sm:$0xf]
    %v304 = vld [vmem:[#allocation5 + $0x10] sm:$0xf]
    %v305 = vld [vmem:[#allocation5 + $0x14] sm:$0xf]
    %v306 = vld [vmem:[#allocation5 + $0x18] sm:$0xf]
    %v307 = vld [vmem:[#allocation5 + $0x1c] sm:$0xf]
    %v308 = vld [vmem:[#allocation5 + $0x20] sm:$0xf]
    %v309 = vld [vmem:[#allocation5 + $0x24] sm:$0xf]
    %v310 = vld [vmem:[#allocation5 + $0x28] sm:$0xf]
    %v311 = vld [vmem:[#allocation5 + $0x2c] sm:$0xf]
    %v312 = vld [vmem:[#allocation5 + $0x30] sm:$0xf]
    %v313 = vld [vmem:[#allocation5 + $0x34] sm:$0xf]
    %v314 = vld [vmem:[#allocation5 + $0x38] sm:$0xf]
    %v315 = vld [vmem:[#allocation5 + $0x3c] sm:$0xf]
    %v316 = vld [vmem:[#allocation7] sm:$0x1]
    %v318 = vlaneseq
    %v319 = vshrl.u32 %v318, 7
    %v320 = vsub.s32 0, %v319
    %v321 = vrot.slane %v316, %v320
    %v325 = vunpack.c.l.b16 %v298
    %v326 = vunpack.c.l.b16 %v299
    %v327 = vpack.c.b16 %v326, %v325
    %v345 = vunpack.c.l.b16 %v300
    %v346 = vunpack.c.l.b16 %v301
    %v347 = vunpack.c.l.b16 %v302
    %v348 = vunpack.c.l.b16 %v303
    %v349 = vunpack.c.l.b16 %v304
    %v350 = vunpack.c.l.b16 %v305
    %v351 = vunpack.c.l.b16 %v306
    %v352 = vunpack.c.l.b16 %v307
    %v353 = vunpack.c.l.b16 %v308
    %v354 = vunpack.c.l.b16 %v309
    %v355 = vunpack.c.l.b16 %v310
    %v356 = vunpack.c.l.b16 %v311
    %v357 = vunpack.c.l.b16 %v312
    %v358 = vunpack.c.l.b16 %v313
    %v359 = vunpack.c.l.b16 %v314
    %v360 = vunpack.c.l.b16 %v315
    %v361 = vpack.c.b16 %v346, %v345
    %v362 = vpack.c.b16 %v348, %v347
    %v363 = vpack.c.b16 %v350, %v349
    %v364 = vpack.c.b16 %v352, %v351
    %v365 = vpack.c.b16 %v354, %v353
    %v366 = vpack.c.b16 %v356, %v355
    %v367 = vpack.c.b16 %v358, %v357
    %v368 = vpack.c.b16 %v360, %v359
    %377 = vmatprep.subr.bf16.mxu0 0
    %378 = vmatpush1.bf16.msra.mxu0 %v361
    %379 = vmatprep.subr.bf16.mxu0 0
    %380 = vmatpush1.bf16.msra.mxu0 %v362
    %381 = vmatprep.subr.bf16.mxu0 0
    %382 = vmatpush1.bf16.msra.mxu0 %v363
    %383 = vmatprep.subr.bf16.mxu0 0
    %384 = vmatpush1.bf16.msra.mxu0 %v364
    %385 = vmatprep.subr.bf16.mxu0 0
    %386 = vmatpush1.bf16.msra.mxu0 %v365
    %387 = vmatprep.subr.bf16.mxu0 0
    %388 = vmatpush1.bf16.msra.mxu0 %v366
    %389 = vmatprep.subr.bf16.mxu0 0
    %390 = vmatpush1.bf16.msra.mxu0 %v367
    %391 = vmatprep.subr.bf16.mxu0 0
    %392 = vmatpush1.bf16.msra.mxu0 %v368
    %393 = vmatprep.subr.bf16.mxu0 0
    %394 = vmatpush1.bf16.msra.mxu0 0
    %395 = vmatprep.subr.bf16.mxu0 0
    %396 = vmatpush1.bf16.msra.mxu0 0
    %397 = vmatprep.subr.bf16.mxu0 0
    %398 = vmatpush1.bf16.msra.mxu0 0
    %399 = vmatprep.subr.bf16.mxu0 0
    %400 = vmatpush1.bf16.msra.mxu0 0
    %401 = vmatprep.subr.bf16.mxu0 0
    %402 = vmatpush1.bf16.msra.mxu0 0
    %403 = vmatprep.subr.bf16.mxu0 0
    %404 = vmatpush1.bf16.msra.mxu0 0
    %405 = vmatprep.subr.bf16.mxu0 0
    %406 = vmatpush1.bf16.msra.mxu0 0
    %407 = vmatprep.subr.bf16.mxu0 0
    %408 = vmatpush1.bf16.msra.mxu0 0
    %409 = vmatprep.mubr.bf16.mxu0 0
    %410 = vmatmul.mubr.bf16.gmra.mrb[0].mxu0 %v327
    %v411 = vpop.f32.mrb[0].mxu0
    %v412 = vadd.f32 %v321, %v411
    %v413 = vpop.f32.mrb[0].mxu0
    %v414 = vpop.f32.mrb[0].mxu0
    %v415 = vadd.f32 %v321, %v414
    %v416 = vpop.f32.mrb[0].mxu0
    %417 = vdwg.mxu0
    %v418 = vmax.f32 %v412, 0.0
    %v419 = vmax.f32 %v415, 0.0
    %v420 = vpack.c.bf16 %v419, %v418
    %v421 = vld [vmem:[#allocation8] sm:$0xff]
    %v422 = vld [vmem:[#allocation8 + $0x8] sm:$0xff]
    %v423 = vld [vmem:[#allocation8 + $0x10] sm:$0xff]
    %v424 = vld [vmem:[#allocation8 + $0x18] sm:$0xff]
    %v425 = vld [vmem:[#allocation8 + $0x20] sm:$0xff]
    %v426 = vld [vmem:[#allocation8 + $0x28] sm:$0xff]
    %v427 = vld [vmem:[#allocation8 + $0x30] sm:$0xff]
    %v428 = vld [vmem:[#allocation8 + $0x38] sm:$0xff]
    %v429 = vld [vmem:[#allocation8 + $0x40] sm:$0xff]
    %v430 = vld [vmem:[#allocation8 + $0x48] sm:$0xff]
    %v431 = vld [vmem:[#allocation8 + $0x50] sm:$0xff]
    %v432 = vld [vmem:[#allocation8 + $0x58] sm:$0xff]
    %v433 = vld [vmem:[#allocation8 + $0x60] sm:$0xff]
    %v434 = vld [vmem:[#allocation8 + $0x68] sm:$0xff]
    %v435 = vld [vmem:[#allocation8 + $0x70] sm:$0xff]
    %v436 = vld [vmem:[#allocation8 + $0x78] sm:$0xff]
    %v437 = vld [vmem:[#allocation10] sm:$0x3]
    %v439 = vlaneseq
    %v440 = vshrl.u32 %v439, 7
    %v441 = vsub.s32 0, %v440
    %v442 = vrot.slane %v437, %v441
    %v443 = vlaneseq
    %v444 = vshrl.u32 %v443, 7
    %v445 = vsub.s32 1, %v444
    %v446 = vrot.slane %v437, %v445
    %v465 = vunpack.c.l.b16 %v421
    %v466 = vunpack.c.h.b16 %v421
    %v467 = vunpack.c.l.b16 %v422
    %v468 = vunpack.c.h.b16 %v422
    %v469 = vunpack.c.l.b16 %v423
    %v470 = vunpack.c.h.b16 %v423
    %v471 = vunpack.c.l.b16 %v424
    %v472 = vunpack.c.h.b16 %v424
    %v473 = vunpack.c.l.b16 %v425
    %v474 = vunpack.c.h.b16 %v425
    %v475 = vunpack.c.l.b16 %v426
    %v476 = vunpack.c.h.b16 %v426
    %v477 = vunpack.c.l.b16 %v427
    %v478 = vunpack.c.h.b16 %v427
    %v479 = vunpack.c.l.b16 %v428
    %v480 = vunpack.c.h.b16 %v428
    %v481 = vunpack.c.l.b16 %v429
    %v482 = vunpack.c.h.b16 %v429
    %v483 = vunpack.c.l.b16 %v430
    %v484 = vunpack.c.h.b16 %v430
    %v485 = vunpack.c.l.b16 %v431
    %v486 = vunpack.c.h.b16 %v431
    %v487 = vunpack.c.l.b16 %v432
    %v488 = vunpack.c.h.b16 %v432
    %v489 = vunpack.c.l.b16 %v433
    %v490 = vunpack.c.h.b16 %v433
    %v491 = vunpack.c.l.b16 %v434
    %v492 = vunpack.c.h.b16 %v434
    %v493 = vunpack.c.l.b16 %v435
    %v494 = vunpack.c.h.b16 %v435
    %v495 = vunpack.c.l.b16 %v436
    %v496 = vunpack.c.h.b16 %v436
    %v497 = vpack.c.b16 %v467, %v465
    %v498 = vpack.c.b16 %v468, %v466
    %v499 = vpack.c.b16 %v471, %v469
    %v500 = vpack.c.b16 %v472, %v470
    %v501 = vpack.c.b16 %v475, %v473
    %v502 = vpack.c.b16 %v476, %v474
    %v503 = vpack.c.b16 %v479, %v477
    %v504 = vpack.c.b16 %v480, %v478
    %v505 = vpack.c.b16 %v483, %v481
    %v506 = vpack.c.b16 %v484, %v482
    %v507 = vpack.c.b16 %v487, %v485
    %v508 = vpack.c.b16 %v488, %v486
    %v509 = vpack.c.b16 %v491, %v489
    %v510 = vpack.c.b16 %v492, %v490
    %v511 = vpack.c.b16 %v495, %v493
    %v512 = vpack.c.b16 %v496, %v494
    %529 = vmatprep.subr.bf16.mxu0 %v498
    %530 = vmatpush1.bf16.msra.mxu0 %v497
    %531 = vmatprep.subr.bf16.mxu0 %v500
    %532 = vmatpush1.bf16.msra.mxu0 %v499
    %533 = vmatprep.subr.bf16.mxu0 %v502
    %534 = vmatpush1.bf16.msra.mxu0 %v501
    %535 = vmatprep.subr.bf16.mxu0 %v504
    %536 = vmatpush1.bf16.msra.mxu0 %v503
    %537 = vmatprep.subr.bf16.mxu0 %v506
    %538 = vmatpush1.bf16.msra.mxu0 %v505
    %539 = vmatprep.subr.bf16.mxu0 %v508
    %540 = vmatpush1.bf16.msra.mxu0 %v507
    %541 = vmatprep.subr.bf16.mxu0 %v510
    %542 = vmatpush1.bf16.msra.mxu0 %v509
    %543 = vmatprep.subr.bf16.mxu0 %v512
    %544 = vmatpush1.bf16.msra.mxu0 %v511
    %545 = vmatprep.subr.bf16.mxu0 0
    %546 = vmatpush1.bf16.msra.mxu0 0
    %547 = vmatprep.subr.bf16.mxu0 0
    %548 = vmatpush1.bf16.msra.mxu0 0
    %549 = vmatprep.subr.bf16.mxu0 0
    %550 = vmatpush1.bf16.msra.mxu0 0
    %551 = vmatprep.subr.bf16.mxu0 0
    %552 = vmatpush1.bf16.msra.mxu0 0
    %553 = vmatprep.subr.bf16.mxu0 0
    %554 = vmatpush1.bf16.msra.mxu0 0
    %555 = vmatprep.subr.bf16.mxu0 0
    %556 = vmatpush1.bf16.msra.mxu0 0
    %557 = vmatprep.subr.bf16.mxu0 0
    %558 = vmatpush1.bf16.msra.mxu0 0
    %559 = vmatprep.subr.bf16.mxu0 0
    %560 = vmatpush1.bf16.msra.mxu0 0
    %561 = vmatprep.mubr.bf16.mxu0 0
    %562 = vmatmul.mubr.bf16.gmra.mrb[0].mxu0 %v420
    %v563 = vpop.f32.mrb[0].mxu0
    %v564 = vadd.f32 %v442, %v563
    %v565 = vpop.f32.mrb[0].mxu0
    %v566 = vadd.f32 %v446, %v565
    %v567 = vpop.f32.mrb[0].mxu0
    %v568 = vadd.f32 %v442, %v567
    %v569 = vpop.f32.mrb[0].mxu0
    %v570 = vadd.f32 %v446, %v569
    %571 = vdwg.mxu0
    %v572 = vmax.f32 %v564, 0.0
    %v573 = vmax.f32 %v566, 0.0
    %v574 = vmax.f32 %v568, 0.0
    %v575 = vmax.f32 %v570, 0.0
    %v576 = vpack.c.bf16 %v574, %v572
    %v577 = vpack.c.bf16 %v575, %v573
    %v578 = vld [vmem:[#allocation11] sm:$0xff]
    %v579 = vld [vmem:[#allocation11 + $0x8] sm:$0xff]
    %v580 = vld [vmem:[#allocation11 + $0x10] sm:$0xff]
    %v581 = vld [vmem:[#allocation11 + $0x18] sm:$0xff]
    %v582 = vld [vmem:[#allocation11 + $0x20] sm:$0xff]
    %v583 = vld [vmem:[#allocation11 + $0x28] sm:$0xff]
    %v584 = vld [vmem:[#allocation11 + $0x30] sm:$0xff]
    %v585 = vld [vmem:[#allocation11 + $0x38] sm:$0xff]
    %v586 = vld [vmem:[#allocation11 + $0x40] sm:$0xff]
    %v587 = vld [vmem:[#allocation11 + $0x48] sm:$0xff]
    %v588 = vld [vmem:[#allocation11 + $0x50] sm:$0xff]
    %v589 = vld [vmem:[#allocation11 + $0x58] sm:$0xff]
    %v590 = vld [vmem:[#allocation11 + $0x60] sm:$0xff]
    %v591 = vld [vmem:[#allocation11 + $0x68] sm:$0xff]
    %v592 = vld [vmem:[#allocation11 + $0x70] sm:$0xff]
    %v593 = vld [vmem:[#allocation11 + $0x78] sm:$0xff]
    %v594 = vld [vmem:[#allocation11 + $0x80] sm:$0xff]
    %v595 = vld [vmem:[#allocation11 + $0x88] sm:$0xff]
    %v596 = vld [vmem:[#allocation11 + $0x90] sm:$0xff]
    %v597 = vld [vmem:[#allocation11 + $0x98] sm:$0xff]
    %v598 = vld [vmem:[#allocation11 + $0xa0] sm:$0xff]
    %v599 = vld [vmem:[#allocation11 + $0xa8] sm:$0xff]
    %v600 = vld [vmem:[#allocation11 + $0xb0] sm:$0xff]
    %v601 = vld [vmem:[#allocation11 + $0xb8] sm:$0xff]
    %v602 = vld [vmem:[#allocation11 + $0xc0] sm:$0xff]
    %v603 = vld [vmem:[#allocation11 + $0xc8] sm:$0xff]
    %v604 = vld [vmem:[#allocation11 + $0xd0] sm:$0xff]
    %v605 = vld [vmem:[#allocation11 + $0xd8] sm:$0xff]
    %v606 = vld [vmem:[#allocation11 + $0xe0] sm:$0xff]
    %v607 = vld [vmem:[#allocation11 + $0xe8] sm:$0xff]
    %v608 = vld [vmem:[#allocation11 + $0xf0] sm:$0xff]
    %v609 = vld [vmem:[#allocation11 + $0xf8] sm:$0xff]
    %v610 = vld [vmem:[#allocation11 + $0x100] sm:$0xff]
    %v611 = vld [vmem:[#allocation11 + $0x108] sm:$0xff]
    %v612 = vld [vmem:[#allocation11 + $0x110] sm:$0xff]
    %v613 = vld [vmem:[#allocation11 + $0x118] sm:$0xff]
    %v614 = vld [vmem:[#allocation11 + $0x120] sm:$0xff]
    %v615 = vld [vmem:[#allocation11 + $0x128] sm:$0xff]
    %v616 = vld [vmem:[#allocation11 + $0x130] sm:$0xff]
    %v617 = vld [vmem:[#allocation11 + $0x138] sm:$0xff]
    %v618 = vld [vmem:[#allocation11 + $0x140] sm:$0xff]
    %v619 = vld [vmem:[#allocation11 + $0x148] sm:$0xff]
    %v620 = vld [vmem:[#allocation11 + $0x150] sm:$0xff]
    %v621 = vld [vmem:[#allocation11 + $0x158] sm:$0xff]
    %v622 = vld [vmem:[#allocation11 + $0x160] sm:$0xff]
    %v623 = vld [vmem:[#allocation11 + $0x168] sm:$0xff]
    %v624 = vld [vmem:[#allocation11 + $0x170] sm:$0xff]
    %v625 = vld [vmem:[#allocation11 + $0x178] sm:$0xff]
    %v626 = vld [vmem:[#allocation11 + $0x180] sm:$0xff]
    %v627 = vld [vmem:[#allocation11 + $0x188] sm:$0xff]
    %v628 = vld [vmem:[#allocation11 + $0x190] sm:$0xff]
    %v629 = vld [vmem:[#allocation11 + $0x198] sm:$0xff]
    %v630 = vld [vmem:[#allocation11 + $0x1a0] sm:$0xff]
    %v631 = vld [vmem:[#allocation11 + $0x1a8] sm:$0xff]
    %v632 = vld [vmem:[#allocation11 + $0x1b0] sm:$0xff]
    %v633 = vld [vmem:[#allocation11 + $0x1b8] sm:$0xff]
    %v634 = vld [vmem:[#allocation11 + $0x1c0] sm:$0xff]
    %v635 = vld [vmem:[#allocation11 + $0x1c8] sm:$0xff]
    %v636 = vld [vmem:[#allocation11 + $0x1d0] sm:$0xff]
    %v637 = vld [vmem:[#allocation11 + $0x1d8] sm:$0xff]
    %v638 = vld [vmem:[#allocation11 + $0x1e0] sm:$0xff]
    %v639 = vld [vmem:[#allocation11 + $0x1e8] sm:$0xff]
    %v640 = vld [vmem:[#allocation11 + $0x1f0] sm:$0xff]
    %v641 = vld [vmem:[#allocation11 + $0x1f8] sm:$0xff]
    %v642 = vld [vmem:[#allocation13] sm:$0xf]
    %v644 = vlaneseq
    %v645 = vshrl.u32 %v644, 7
    %v646 = vsub.s32 0, %v645
    %v647 = vrot.slane %v642, %v646
    %v648 = vlaneseq
    %v649 = vshrl.u32 %v648, 7
    %v650 = vsub.s32 1, %v649
    %v651 = vrot.slane %v642, %v650
    %v652 = vlaneseq
    %v653 = vshrl.u32 %v652, 7
    %v654 = vsub.s32 2, %v653
    %v655 = vrot.slane %v642, %v654
    %v656 = vlaneseq
    %v657 = vshrl.u32 %v656, 7
    %v658 = vsub.s32 3, %v657
    %v659 = vrot.slane %v642, %v658
    %v728 = vunpack.c.l.b16 %v578
    %v729 = vunpack.c.h.b16 %v578
    %v730 = vunpack.c.l.b16 %v579
    %v731 = vunpack.c.h.b16 %v579
    %v732 = vunpack.c.l.b16 %v580
    %v733 = vunpack.c.h.b16 %v580
    %v734 = vunpack.c.l.b16 %v581
    %v735 = vunpack.c.h.b16 %v581
    %v736 = vunpack.c.l.b16 %v582
    %v737 = vunpack.c.h.b16 %v582
    %v738 = vunpack.c.l.b16 %v583
    %v739 = vunpack.c.h.b16 %v583
    %v740 = vunpack.c.l.b16 %v584
    %v741 = vunpack.c.h.b16 %v584
    %v742 = vunpack.c.l.b16 %v585
    %v743 = vunpack.c.h.b16 %v585
    %v744 = vunpack.c.l.b16 %v586
    %v745 = vunpack.c.h.b16 %v586
    %v746 = vunpack.c.l.b16 %v587
    %v747 = vunpack.c.h.b16 %v587
    %v748 = vunpack.c.l.b16 %v588
    %v749 = vunpack.c.h.b16 %v588
    %v750 = vunpack.c.l.b16 %v589
    %v751 = vunpack.c.h.b16 %v589
    %v752 = vunpack.c.l.b16 %v590
    %v753 = vunpack.c.h.b16 %v590
    %v754 = vunpack.c.l.b16 %v591
    %v755 = vunpack.c.h.b16 %v591
    %v756 = vunpack.c.l.b16 %v592
    %v757 = vunpack.c.h.b16 %v592
    %v758 = vunpack.c.l.b16 %v593
    %v759 = vunpack.c.h.b16 %v593
    %v760 = vunpack.c.l.b16 %v594
    %v761 = vunpack.c.h.b16 %v594
    %v762 = vunpack.c.l.b16 %v595
    %v763 = vunpack.c.h.b16 %v595
    %v764 = vunpack.c.l.b16 %v596
    %v765 = vunpack.c.h.b16 %v596
    %v766 = vunpack.c.l.b16 %v597
    %v767 = vunpack.c.h.b16 %v597
    %v768 = vunpack.c.l.b16 %v598
    %v769 = vunpack.c.h.b16 %v598
    %v770 = vunpack.c.l.b16 %v599
    %v771 = vunpack.c.h.b16 %v599
    %v772 = vunpack.c.l.b16 %v600
    %v773 = vunpack.c.h.b16 %v600
    %v774 = vunpack.c.l.b16 %v601
    %v775 = vunpack.c.h.b16 %v601
    %v776 = vunpack.c.l.b16 %v602
    %v777 = vunpack.c.h.b16 %v602
    %v778 = vunpack.c.l.b16 %v603
    %v779 = vunpack.c.h.b16 %v603
    %v780 = vunpack.c.l.b16 %v604
    %v781 = vunpack.c.h.b16 %v604
    %v782 = vunpack.c.l.b16 %v605
    %v783 = vunpack.c.h.b16 %v605
    %v784 = vunpack.c.l.b16 %v606
    %v785 = vunpack.c.h.b16 %v606
    %v786 = vunpack.c.l.b16 %v607
    %v787 = vunpack.c.h.b16 %v607
    %v788 = vunpack.c.l.b16 %v608
    %v789 = vunpack.c.h.b16 %v608
    %v790 = vunpack.c.l.b16 %v609
    %v791 = vunpack.c.h.b16 %v609
    %v792 = vunpack.c.l.b16 %v610
    %v793 = vunpack.c.h.b16 %v610
    %v794 = vunpack.c.l.b16 %v611
    %v795 = vunpack.c.h.b16 %v611
    %v796 = vunpack.c.l.b16 %v612
    %v797 = vunpack.c.h.b16 %v612
    %v798 = vunpack.c.l.b16 %v613
    %v799 = vunpack.c.h.b16 %v613
    %v800 = vunpack.c.l.b16 %v614
    %v801 = vunpack.c.h.b16 %v614
    %v802 = vunpack.c.l.b16 %v615
    %v803 = vunpack.c.h.b16 %v615
    %v804 = vunpack.c.l.b16 %v616
    %v805 = vunpack.c.h.b16 %v616
    %v806 = vunpack.c.l.b16 %v617
    %v807 = vunpack.c.h.b16 %v617
    %v808 = vunpack.c.l.b16 %v618
    %v809 = vunpack.c.h.b16 %v618
    %v810 = vunpack.c.l.b16 %v619
    %v811 = vunpack.c.h.b16 %v619
    %v812 = vunpack.c.l.b16 %v620
    %v813 = vunpack.c.h.b16 %v620
    %v814 = vunpack.c.l.b16 %v621
    %v815 = vunpack.c.h.b16 %v621
    %v816 = vunpack.c.l.b16 %v622
    %v817 = vunpack.c.h.b16 %v622
    %v818 = vunpack.c.l.b16 %v623
    %v819 = vunpack.c.h.b16 %v623
    %v820 = vunpack.c.l.b16 %v624
    %v821 = vunpack.c.h.b16 %v624
    %v822 = vunpack.c.l.b16 %v625
    %v823 = vunpack.c.h.b16 %v625
    %v824 = vunpack.c.l.b16 %v626
    %v825 = vunpack.c.h.b16 %v626
    %v826 = vunpack.c.l.b16 %v627
    %v827 = vunpack.c.h.b16 %v627
    %v828 = vunpack.c.l.b16 %v628
    %v829 = vunpack.c.h.b16 %v628
    %v830 = vunpack.c.l.b16 %v629
    %v831 = vunpack.c.h.b16 %v629
    %v832 = vunpack.c.l.b16 %v630
    %v833 = vunpack.c.h.b16 %v630
    %v834 = vunpack.c.l.b16 %v631
    %v835 = vunpack.c.h.b16 %v631
    %v836 = vunpack.c.l.b16 %v632
    %v837 = vunpack.c.h.b16 %v632
    %v838 = vunpack.c.l.b16 %v633
    %v839 = vunpack.c.h.b16 %v633
    %v840 = vunpack.c.l.b16 %v634
    %v841 = vunpack.c.h.b16 %v634
    %v842 = vunpack.c.l.b16 %v635
    %v843 = vunpack.c.h.b16 %v635
    %v844 = vunpack.c.l.b16 %v636
    %v845 = vunpack.c.h.b16 %v636
    %v846 = vunpack.c.l.b16 %v637
    %v847 = vunpack.c.h.b16 %v637
    %v848 = vunpack.c.l.b16 %v638
    %v849 = vunpack.c.h.b16 %v638
    %v850 = vunpack.c.l.b16 %v639
    %v851 = vunpack.c.h.b16 %v639
    %v852 = vunpack.c.l.b16 %v640
    %v853 = vunpack.c.h.b16 %v640
    %v854 = vunpack.c.l.b16 %v641
    %v855 = vunpack.c.h.b16 %v641
    %v856 = vpack.c.b16 %v732, %v728
    %v857 = vpack.c.b16 %v733, %v729
    %v858 = vpack.c.b16 %v734, %v730
    %v859 = vpack.c.b16 %v735, %v731
    %v860 = vpack.c.b16 %v740, %v736
    %v861 = vpack.c.b16 %v741, %v737
    %v862 = vpack.c.b16 %v742, %v738
    %v863 = vpack.c.b16 %v743, %v739
    %v864 = vpack.c.b16 %v748, %v744
    %v865 = vpack.c.b16 %v749, %v745
    %v866 = vpack.c.b16 %v750, %v746
    %v867 = vpack.c.b16 %v751, %v747
    %v868 = vpack.c.b16 %v756, %v752
    %v869 = vpack.c.b16 %v757, %v753
    %v870 = vpack.c.b16 %v758, %v754
    %v871 = vpack.c.b16 %v759, %v755
    %v872 = vpack.c.b16 %v764, %v760
    %v873 = vpack.c.b16 %v765, %v761
    %v874 = vpack.c.b16 %v766, %v762
    %v875 = vpack.c.b16 %v767, %v763
    %v876 = vpack.c.b16 %v772, %v768
    %v877 = vpack.c.b16 %v773, %v769
    %v878 = vpack.c.b16 %v774, %v770
    %v879 = vpack.c.b16 %v775, %v771
    %v880 = vpack.c.b16 %v780, %v776
    %v881 = vpack.c.b16 %v781, %v777
    %v882 = vpack.c.b16 %v782, %v778
    %v883 = vpack.c.b16 %v783, %v779
    %v884 = vpack.c.b16 %v788, %v784
    %v885 = vpack.c.b16 %v789, %v785
    %v886 = vpack.c.b16 %v790, %v786
    %v887 = vpack.c.b16 %v791, %v787
    %v888 = vpack.c.b16 %v796, %v792
    %v889 = vpack.c.b16 %v797, %v793
    %v890 = vpack.c.b16 %v798, %v794
    %v891 = vpack.c.b16 %v799, %v795
    %v892 = vpack.c.b16 %v804, %v800
    %v893 = vpack.c.b16 %v805, %v801
    %v894 = vpack.c.b16 %v806, %v802
    %v895 = vpack.c.b16 %v807, %v803
    %v896 = vpack.c.b16 %v812, %v808
    %v897 = vpack.c.b16 %v813, %v809
    %v898 = vpack.c.b16 %v814, %v810
    %v899 = vpack.c.b16 %v815, %v811
    %v900 = vpack.c.b16 %v820, %v816
    %v901 = vpack.c.b16 %v821, %v817
    %v902 = vpack.c.b16 %v822, %v818
    %v903 = vpack.c.b16 %v823, %v819
    %v904 = vpack.c.b16 %v828, %v824
    %v905 = vpack.c.b16 %v829, %v825
    %v906 = vpack.c.b16 %v830, %v826
    %v907 = vpack.c.b16 %v831, %v827
    %v908 = vpack.c.b16 %v836, %v832
    %v909 = vpack.c.b16 %v837, %v833
    %v910 = vpack.c.b16 %v838, %v834
    %v911 = vpack.c.b16 %v839, %v835
    %v912 = vpack.c.b16 %v844, %v840
    %v913 = vpack.c.b16 %v845, %v841
    %v914 = vpack.c.b16 %v846, %v842
    %v915 = vpack.c.b16 %v847, %v843
    %v916 = vpack.c.b16 %v852, %v848
    %v917 = vpack.c.b16 %v853, %v849
    %v918 = vpack.c.b16 %v854, %v850
    %v919 = vpack.c.b16 %v855, %v851
    %984 = vmatprep.subr.bf16.mxu0 %v857
    %985 = vmatpush1.bf16.msra.mxu0 %v856
    %986 = vmatprep.subr.bf16.mxu0 %v861
    %987 = vmatpush1.bf16.msra.mxu0 %v860
    %988 = vmatprep.subr.bf16.mxu0 %v865
    %989 = vmatpush1.bf16.msra.mxu0 %v864
    %990 = vmatprep.subr.bf16.mxu0 %v869
    %991 = vmatpush1.bf16.msra.mxu0 %v868
    %992 = vmatprep.subr.bf16.mxu0 %v873
    %993 = vmatpush1.bf16.msra.mxu0 %v872
    %994 = vmatprep.subr.bf16.mxu0 %v877
    %995 = vmatpush1.bf16.msra.mxu0 %v876
    %996 = vmatprep.subr.bf16.mxu0 %v881
    %997 = vmatpush1.bf16.msra.mxu0 %v880
    %998 = vmatprep.subr.bf16.mxu0 %v885
    %999 = vmatpush1.bf16.msra.mxu0 %v884
    %1000 = vmatprep.subr.bf16.mxu0 %v889
    %1001 = vmatpush1.bf16.msra.mxu0 %v888
    %1002 = vmatprep.subr.bf16.mxu0 %v893
    %1003 = vmatpush1.bf16.msra.mxu0 %v892
    %1004 = vmatprep.subr.bf16.mxu0 %v897
    %1005 = vmatpush1.bf16.msra.mxu0 %v896
    %1006 = vmatprep.subr.bf16.mxu0 %v901
    %1007 = vmatpush1.bf16.msra.mxu0 %v900
    %1008 = vmatprep.subr.bf16.mxu0 %v905
    %1009 = vmatpush1.bf16.msra.mxu0 %v904
    %1010 = vmatprep.subr.bf16.mxu0 %v909
    %1011 = vmatpush1.bf16.msra.mxu0 %v908
    %1012 = vmatprep.subr.bf16.mxu0 %v913
    %1013 = vmatpush1.bf16.msra.mxu0 %v912
    %1014 = vmatprep.subr.bf16.mxu0 %v917
    %1015 = vmatpush1.bf16.msra.mxu0 %v916
    %1016 = vmatprep.mubr.bf16.mxu0 %v577
    %1017 = vmatmul.mubr.bf16.gmra.mrb[0].mxu0 %v576
    %v1018 = vpop.f32.mrb[0].mxu0
    %v1019 = vadd.f32 %v647, %v1018
    %v1020 = vpop.f32.mrb[0].mxu0
    %v1021 = vadd.f32 %v651, %v1020
    %v1022 = vpop.f32.mrb[0].mxu0
    %v1023 = vadd.f32 %v647, %v1022
    %v1024 = vpop.f32.mrb[0].mxu0
    %v1025 = vadd.f32 %v651, %v1024
    %1026 = vdwg.mxu0
    %1027 = vmatprep.subr.bf16.mxu0 %v859
    %1028 = vmatpush1.bf16.msra.mxu0 %v858
    %1029 = vmatprep.subr.bf16.mxu0 %v863
    %1030 = vmatpush1.bf16.msra.mxu0 %v862
    %1031 = vmatprep.subr.bf16.mxu0 %v867
    %1032 = vmatpush1.bf16.msra.mxu0 %v866
    %1033 = vmatprep.subr.bf16.mxu0 %v871
    %1034 = vmatpush1.bf16.msra.mxu0 %v870
    %1035 = vmatprep.subr.bf16.mxu0 %v875
    %1036 = vmatpush1.bf16.msra.mxu0 %v874
    %1037 = vmatprep.subr.bf16.mxu0 %v879
    %1038 = vmatpush1.bf16.msra.mxu0 %v878
    %1039 = vmatprep.subr.bf16.mxu0 %v883
    %1040 = vmatpush1.bf16.msra.mxu0 %v882
    %1041 = vmatprep.subr.bf16.mxu0 %v887
    %1042 = vmatpush1.bf16.msra.mxu0 %v886
    %1043 = vmatprep.subr.bf16.mxu0 %v891
    %1044 = vmatpush1.bf16.msra.mxu0 %v890
    %1045 = vmatprep.subr.bf16.mxu0 %v895
    %1046 = vmatpush1.bf16.msra.mxu0 %v894
    %1047 = vmatprep.subr.bf16.mxu0 %v899
    %1048 = vmatpush1.bf16.msra.mxu0 %v898
    %1049 = vmatprep.subr.bf16.mxu0 %v903
    %1050 = vmatpush1.bf16.msra.mxu0 %v902
    %1051 = vmatprep.subr.bf16.mxu0 %v907
    %1052 = vmatpush1.bf16.msra.mxu0 %v906
    %1053 = vmatprep.subr.bf16.mxu0 %v911
    %1054 = vmatpush1.bf16.msra.mxu0 %v910
    %1055 = vmatprep.subr.bf16.mxu0 %v915
    %1056 = vmatpush1.bf16.msra.mxu0 %v914
    %1057 = vmatprep.subr.bf16.mxu0 %v919
    %1058 = vmatpush1.bf16.msra.mxu0 %v918
    %1059 = vmatprep.mubr.bf16.mxu0 %v577
    %1060 = vmatmul.mubr.bf16.gmra.mrb[0].mxu0 %v576
    %v1061 = vpop.f32.mrb[0].mxu0
    %v1062 = vadd.f32 %v655, %v1061
    %v1063 = vpop.f32.mrb[0].mxu0
    %v1064 = vadd.f32 %v659, %v1063
    %v1065 = vpop.f32.mrb[0].mxu0
    %v1066 = vadd.f32 %v655, %v1065
    %v1067 = vpop.f32.mrb[0].mxu0
    %v1068 = vadd.f32 %v659, %v1067
    %1069 = vdwg.mxu0
    %v1070 = vmax.f32 %v1019, 0.0
    %v1071 = vmax.f32 %v1021, 0.0
    %v1072 = vmax.f32 %v1062, 0.0
    %v1073 = vmax.f32 %v1064, 0.0
    %v1074 = vmax.f32 %v1023, 0.0
    %v1075 = vmax.f32 %v1025, 0.0
    %v1076 = vmax.f32 %v1066, 0.0
    %v1077 = vmax.f32 %v1068, 0.0
    %v1078 = vpack.c.bf16 %v1074, %v1070
    %v1079 = vpack.c.bf16 %v1075, %v1071
    %v1080 = vpack.c.bf16 %v1076, %v1072
    %v1081 = vpack.c.bf16 %v1077, %v1073
    %v1082 = vld [vmem:[#allocation14] sm:$0xff]
    %v1083 = vld [vmem:[#allocation14 + $0x8] sm:$0xff]
    %v1084 = vld [vmem:[#allocation14 + $0x10] sm:$0xff]
    %v1085 = vld [vmem:[#allocation14 + $0x18] sm:$0xff]
    %v1086 = vld [vmem:[#allocation14 + $0x20] sm:$0xff]
    %v1087 = vld [vmem:[#allocation14 + $0x28] sm:$0xff]
    %v1088 = vld [vmem:[#allocation14 + $0x30] sm:$0xff]
    %v1089 = vld [vmem:[#allocation14 + $0x38] sm:$0xff]
    %v1090 = vld [vmem:[#allocation14 + $0x40] sm:$0xff]
    %v1091 = vld [vmem:[#allocation14 + $0x48] sm:$0xff]
    %v1092 = vld [vmem:[#allocation14 + $0x50] sm:$0xff]
    %v1093 = vld [vmem:[#allocation14 + $0x58] sm:$0xff]
    %v1094 = vld [vmem:[#allocation14 + $0x60] sm:$0xff]
    %v1095 = vld [vmem:[#allocation14 + $0x68] sm:$0xff]
    %v1096 = vld [vmem:[#allocation14 + $0x70] sm:$0xff]
    %v1097 = vld [vmem:[#allocation14 + $0x78] sm:$0xff]
    %v1098 = vld [vmem:[#allocation14 + $0x80] sm:$0xff]
    %v1099 = vld [vmem:[#allocation14 + $0x88] sm:$0xff]
    %v1100 = vld [vmem:[#allocation14 + $0x90] sm:$0xff]
    %v1101 = vld [vmem:[#allocation14 + $0x98] sm:$0xff]
    %v1102 = vld [vmem:[#allocation14 + $0xa0] sm:$0xff]
    %v1103 = vld [vmem:[#allocation14 + $0xa8] sm:$0xff]
    %v1104 = vld [vmem:[#allocation14 + $0xb0] sm:$0xff]
    %v1105 = vld [vmem:[#allocation14 + $0xb8] sm:$0xff]
    %v1106 = vld [vmem:[#allocation14 + $0xc0] sm:$0xff]
    %v1107 = vld [vmem:[#allocation14 + $0xc8] sm:$0xff]
    %v1108 = vld [vmem:[#allocation14 + $0xd0] sm:$0xff]
    %v1109 = vld [vmem:[#allocation14 + $0xd8] sm:$0xff]
    %v1110 = vld [vmem:[#allocation14 + $0xe0] sm:$0xff]
    %v1111 = vld [vmem:[#allocation14 + $0xe8] sm:$0xff]
    %v1112 = vld [vmem:[#allocation14 + $0xf0] sm:$0xff]
    %v1113 = vld [vmem:[#allocation14 + $0xf8] sm:$0xff]
    %v1114 = vld [vmem:[#allocation14 + $0x100] sm:$0xff]
    %v1115 = vld [vmem:[#allocation14 + $0x108] sm:$0xff]
    %v1116 = vld [vmem:[#allocation14 + $0x110] sm:$0xff]
    %v1117 = vld [vmem:[#allocation14 + $0x118] sm:$0xff]
    %v1118 = vld [vmem:[#allocation14 + $0x120] sm:$0xff]
    %v1119 = vld [vmem:[#allocation14 + $0x128] sm:$0xff]
    %v1120 = vld [vmem:[#allocation14 + $0x130] sm:$0xff]
    %v1121 = vld [vmem:[#allocation14 + $0x138] sm:$0xff]
    %v1122 = vld [vmem:[#allocation14 + $0x140] sm:$0xff]
    %v1123 = vld [vmem:[#allocation14 + $0x148] sm:$0xff]
    %v1124 = vld [vmem:[#allocation14 + $0x150] sm:$0xff]
    %v1125 = vld [vmem:[#allocation14 + $0x158] sm:$0xff]
    %v1126 = vld [vmem:[#allocation14 + $0x160] sm:$0xff]
    %v1127 = vld [vmem:[#allocation14 + $0x168] sm:$0xff]
    %v1128 = vld [vmem:[#allocation14 + $0x170] sm:$0xff]
    %v1129 = vld [vmem:[#allocation14 + $0x178] sm:$0xff]
    %v1130 = vld [vmem:[#allocation14 + $0x180] sm:$0xff]
    %v1131 = vld [vmem:[#allocation14 + $0x188] sm:$0xff]
    %v1132 = vld [vmem:[#allocation14 + $0x190] sm:$0xff]
    %v1133 = vld [vmem:[#allocation14 + $0x198] sm:$0xff]
    %v1134 = vld [vmem:[#allocation14 + $0x1a0] sm:$0xff]
    %v1135 = vld [vmem:[#allocation14 + $0x1a8] sm:$0xff]
    %v1136 = vld [vmem:[#allocation14 + $0x1b0] sm:$0xff]
    %v1137 = vld [vmem:[#allocation14 + $0x1b8] sm:$0xff]
    %v1138 = vld [vmem:[#allocation14 + $0x1c0] sm:$0xff]
    %v1139 = vld [vmem:[#allocation14 + $0x1c8] sm:$0xff]
    %v1140 = vld [vmem:[#allocation14 + $0x1d0] sm:$0xff]
    %v1141 = vld [vmem:[#allocation14 + $0x1d8] sm:$0xff]
    %v1142 = vld [vmem:[#allocation14 + $0x1e0] sm:$0xff]
    %v1143 = vld [vmem:[#allocation14 + $0x1e8] sm:$0xff]
    %v1144 = vld [vmem:[#allocation14 + $0x1f0] sm:$0xff]
    %v1145 = vld [vmem:[#allocation14 + $0x1f8] sm:$0xff]
    %v1146 = vld [vmem:[#allocation14 + $0x200] sm:$0xff]
    %v1147 = vld [vmem:[#allocation14 + $0x208] sm:$0xff]
    %v1148 = vld [vmem:[#allocation14 + $0x210] sm:$0xff]
    %v1149 = vld [vmem:[#allocation14 + $0x218] sm:$0xff]
    %v1150 = vld [vmem:[#allocation14 + $0x220] sm:$0xff]
    %v1151 = vld [vmem:[#allocation14 + $0x228] sm:$0xff]
    %v1152 = vld [vmem:[#allocation14 + $0x230] sm:$0xff]
    %v1153 = vld [vmem:[#allocation14 + $0x238] sm:$0xff]
    %v1154 = vld [vmem:[#allocation14 + $0x240] sm:$0xff]
    %v1155 = vld [vmem:[#allocation14 + $0x248] sm:$0xff]
    %v1156 = vld [vmem:[#allocation14 + $0x250] sm:$0xff]
    %v1157 = vld [vmem:[#allocation14 + $0x258] sm:$0xff]
    %v1158 = vld [vmem:[#allocation14 + $0x260] sm:$0xff]
    %v1159 = vld [vmem:[#allocation14 + $0x268] sm:$0xff]
    %v1160 = vld [vmem:[#allocation14 + $0x270] sm:$0xff]
    %v1161 = vld [vmem:[#allocation14 + $0x278] sm:$0xff]
    %v1162 = vld [vmem:[#allocation14 + $0x280] sm:$0xff]
    %v1163 = vld [vmem:[#allocation14 + $0x288] sm:$0xff]
    %v1164 = vld [vmem:[#allocation14 + $0x290] sm:$0xff]
    %v1165 = vld [vmem:[#allocation14 + $0x298] sm:$0xff]
    %v1166 = vld [vmem:[#allocation14 + $0x2a0] sm:$0xff]
    %v1167 = vld [vmem:[#allocation14 + $0x2a8] sm:$0xff]
    %v1168 = vld [vmem:[#allocation14 + $0x2b0] sm:$0xff]
    %v1169 = vld [vmem:[#allocation14 + $0x2b8] sm:$0xff]
    %v1170 = vld [vmem:[#allocation14 + $0x2c0] sm:$0xff]
    %v1171 = vld [vmem:[#allocation14 + $0x2c8] sm:$0xff]
    %v1172 = vld [vmem:[#allocation14 + $0x2d0] sm:$0xff]
    %v1173 = vld [vmem:[#allocation14 + $0x2d8] sm:$0xff]
    %v1174 = vld [vmem:[#allocation14 + $0x2e0] sm:$0xff]
    %v1175 = vld [vmem:[#allocation14 + $0x2e8] sm:$0xff]
    %v1176 = vld [vmem:[#allocation14 + $0x2f0] sm:$0xff]
    %v1177 = vld [vmem:[#allocation14 + $0x2f8] sm:$0xff]
    %v1178 = vld [vmem:[#allocation14 + $0x300] sm:$0xff]
    %v1179 = vld [vmem:[#allocation14 + $0x308] sm:$0xff]
    %v1180 = vld [vmem:[#allocation14 + $0x310] sm:$0xff]
    %v1181 = vld [vmem:[#allocation14 + $0x318] sm:$0xff]
    %v1182 = vld [vmem:[#allocation14 + $0x320] sm:$0xff]
    %v1183 = vld [vmem:[#allocation14 + $0x328] sm:$0xff]
    %v1184 = vld [vmem:[#allocation14 + $0x330] sm:$0xff]
    %v1185 = vld [vmem:[#allocation14 + $0x338] sm:$0xff]
    %v1186 = vld [vmem:[#allocation14 + $0x340] sm:$0xff]
    %v1187 = vld [vmem:[#allocation14 + $0x348] sm:$0xff]
    %v1188 = vld [vmem:[#allocation14 + $0x350] sm:$0xff]
    %v1189 = vld [vmem:[#allocation14 + $0x358] sm:$0xff]
    %v1190 = vld [vmem:[#allocation14 + $0x360] sm:$0xff]
    %v1191 = vld [vmem:[#allocation14 + $0x368] sm:$0xff]
    %v1192 = vld [vmem:[#allocation14 + $0x370] sm:$0xff]
    %v1193 = vld [vmem:[#allocation14 + $0x378] sm:$0xff]
    %v1194 = vld [vmem:[#allocation14 + $0x380] sm:$0xff]
    %v1195 = vld [vmem:[#allocation14 + $0x388] sm:$0xff]
    %v1196 = vld [vmem:[#allocation14 + $0x390] sm:$0xff]
    %v1197 = vld [vmem:[#allocation14 + $0x398] sm:$0xff]
    %v1198 = vld [vmem:[#allocation14 + $0x3a0] sm:$0xff]
    %v1199 = vld [vmem:[#allocation14 + $0x3a8] sm:$0xff]
    %v1200 = vld [vmem:[#allocation14 + $0x3b0] sm:$0xff]
    %v1201 = vld [vmem:[#allocation14 + $0x3b8] sm:$0xff]
    %v1202 = vld [vmem:[#allocation14 + $0x3c0] sm:$0xff]
    %v1203 = vld [vmem:[#allocation14 + $0x3c8] sm:$0xff]
    %v1204 = vld [vmem:[#allocation14 + $0x3d0] sm:$0xff]
    %v1205 = vld [vmem:[#allocation14 + $0x3d8] sm:$0xff]
    %v1206 = vld [vmem:[#allocation14 + $0x3e0] sm:$0xff]
    %v1207 = vld [vmem:[#allocation14 + $0x3e8] sm:$0xff]
    %v1208 = vld [vmem:[#allocation14 + $0x3f0] sm:$0xff]
    %v1209 = vld [vmem:[#allocation14 + $0x3f8] sm:$0xff]
    %v1210 = vld [vmem:[#allocation14 + $0x400] sm:$0xff]
    %v1211 = vld [vmem:[#allocation14 + $0x408] sm:$0xff]
    %v1212 = vld [vmem:[#allocation14 + $0x410] sm:$0xff]
    %v1213 = vld [vmem:[#allocation14 + $0x418] sm:$0xff]
    %v1214 = vld [vmem:[#allocation14 + $0x420] sm:$0xff]
    %v1215 = vld [vmem:[#allocation14 + $0x428] sm:$0xff]
    %v1216 = vld [vmem:[#allocation14 + $0x430] sm:$0xff]
    %v1217 = vld [vmem:[#allocation14 + $0x438] sm:$0xff]
    %v1218 = vld [vmem:[#allocation14 + $0x440] sm:$0xff]
    %v1219 = vld [vmem:[#allocation14 + $0x448] sm:$0xff]
    %v1220 = vld [vmem:[#allocation14 + $0x450] sm:$0xff]
    %v1221 = vld [vmem:[#allocation14 + $0x458] sm:$0xff]
    %v1222 = vld [vmem:[#allocation14 + $0x460] sm:$0xff]
    %v1223 = vld [vmem:[#allocation14 + $0x468] sm:$0xff]
    %v1224 = vld [vmem:[#allocation14 + $0x470] sm:$0xff]
    %v1225 = vld [vmem:[#allocation14 + $0x478] sm:$0xff]
    %v1226 = vld [vmem:[#allocation14 + $0x480] sm:$0xff]
    %v1227 = vld [vmem:[#allocation14 + $0x488] sm:$0xff]
    %v1228 = vld [vmem:[#allocation14 + $0x490] sm:$0xff]
    %v1229 = vld [vmem:[#allocation14 + $0x498] sm:$0xff]
    %v1230 = vld [vmem:[#allocation14 + $0x4a0] sm:$0xff]
    %v1231 = vld [vmem:[#allocation14 + $0x4a8] sm:$0xff]
    %v1232 = vld [vmem:[#allocation14 + $0x4b0] sm:$0xff]
    %v1233 = vld [vmem:[#allocation14 + $0x4b8] sm:$0xff]
    %v1234 = vld [vmem:[#allocation14 + $0x4c0] sm:$0xff]
    %v1235 = vld [vmem:[#allocation14 + $0x4c8] sm:$0xff]
    %v1236 = vld [vmem:[#allocation14 + $0x4d0] sm:$0xff]
    %v1237 = vld [vmem:[#allocation14 + $0x4d8] sm:$0xff]
    %v1238 = vld [vmem:[#allocation14 + $0x4e0] sm:$0xff]
    %v1239 = vld [vmem:[#allocation14 + $0x4e8] sm:$0xff]
    %v1240 = vld [vmem:[#allocation14 + $0x4f0] sm:$0xff]
    %v1241 = vld [vmem:[#allocation14 + $0x4f8] sm:$0xff]
    %v1242 = vld [vmem:[#allocation14 + $0x500] sm:$0xff]
    %v1243 = vld [vmem:[#allocation14 + $0x508] sm:$0xff]
    %v1244 = vld [vmem:[#allocation14 + $0x510] sm:$0xff]
    %v1245 = vld [vmem:[#allocation14 + $0x518] sm:$0xff]
    %v1246 = vld [vmem:[#allocation14 + $0x520] sm:$0xff]
    %v1247 = vld [vmem:[#allocation14 + $0x528] sm:$0xff]
    %v1248 = vld [vmem:[#allocation14 + $0x530] sm:$0xff]
    %v1249 = vld [vmem:[#allocation14 + $0x538] sm:$0xff]
    %v1250 = vld [vmem:[#allocation14 + $0x540] sm:$0xff]
    %v1251 = vld [vmem:[#allocation14 + $0x548] sm:$0xff]
    %v1252 = vld [vmem:[#allocation14 + $0x550] sm:$0xff]
    %v1253 = vld [vmem:[#allocation14 + $0x558] sm:$0xff]
    %v1254 = vld [vmem:[#allocation14 + $0x560] sm:$0xff]
    %v1255 = vld [vmem:[#allocation14 + $0x568] sm:$0xff]
    %v1256 = vld [vmem:[#allocation14 + $0x570] sm:$0xff]
    %v1257 = vld [vmem:[#allocation14 + $0x578] sm:$0xff]
    %v1258 = vld [vmem:[#allocation14 + $0x580] sm:$0xff]
    %v1259 = vld [vmem:[#allocation14 + $0x588] sm:$0xff]
    %v1260 = vld [vmem:[#allocation14 + $0x590] sm:$0xff]
    %v1261 = vld [vmem:[#allocation14 + $0x598] sm:$0xff]
    %v1262 = vld [vmem:[#allocation14 + $0x5a0] sm:$0xff]
    %v1263 = vld [vmem:[#allocation14 + $0x5a8] sm:$0xff]
    %v1264 = vld [vmem:[#allocation14 + $0x5b0] sm:$0xff]
    %v1265 = vld [vmem:[#allocation14 + $0x5b8] sm:$0xff]
    %v1266 = vld [vmem:[#allocation14 + $0x5c0] sm:$0xff]
    %v1267 = vld [vmem:[#allocation14 + $0x5c8] sm:$0xff]
    %v1268 = vld [vmem:[#allocation14 + $0x5d0] sm:$0xff]
    %v1269 = vld [vmem:[#allocation14 + $0x5d8] sm:$0xff]
    %v1270 = vld [vmem:[#allocation14 + $0x5e0] sm:$0xff]
    %v1271 = vld [vmem:[#allocation14 + $0x5e8] sm:$0xff]
    %v1272 = vld [vmem:[#allocation14 + $0x5f0] sm:$0xff]
    %v1273 = vld [vmem:[#allocation14 + $0x5f8] sm:$0xff]
    %v1274 = vld [vmem:[#allocation14 + $0x600] sm:$0xff]
    %v1275 = vld [vmem:[#allocation14 + $0x608] sm:$0xff]
    %v1276 = vld [vmem:[#allocation14 + $0x610] sm:$0xff]
    %v1277 = vld [vmem:[#allocation14 + $0x618] sm:$0xff]
    %v1278 = vld [vmem:[#allocation14 + $0x620] sm:$0xff]
    %v1279 = vld [vmem:[#allocation14 + $0x628] sm:$0xff]
    %v1280 = vld [vmem:[#allocation14 + $0x630] sm:$0xff]
    %v1281 = vld [vmem:[#allocation14 + $0x638] sm:$0xff]
    %v1282 = vld [vmem:[#allocation14 + $0x640] sm:$0xff]
    %v1283 = vld [vmem:[#allocation14 + $0x648] sm:$0xff]
    %v1284 = vld [vmem:[#allocation14 + $0x650] sm:$0xff]
    %v1285 = vld [vmem:[#allocation14 + $0x658] sm:$0xff]
    %v1286 = vld [vmem:[#allocation14 + $0x660] sm:$0xff]
    %v1287 = vld [vmem:[#allocation14 + $0x668] sm:$0xff]
    %v1288 = vld [vmem:[#allocation14 + $0x670] sm:$0xff]
    %v1289 = vld [vmem:[#allocation14 + $0x678] sm:$0xff]
    %v1290 = vld [vmem:[#allocation14 + $0x680] sm:$0xff]
    %v1291 = vld [vmem:[#allocation14 + $0x688] sm:$0xff]
    %v1292 = vld [vmem:[#allocation14 + $0x690] sm:$0xff]
    %v1293 = vld [vmem:[#allocation14 + $0x698] sm:$0xff]
    %v1294 = vld [vmem:[#allocation14 + $0x6a0] sm:$0xff]
    %v1295 = vld [vmem:[#allocation14 + $0x6a8] sm:$0xff]
    %v1296 = vld [vmem:[#allocation14 + $0x6b0] sm:$0xff]
    %v1297 = vld [vmem:[#allocation14 + $0x6b8] sm:$0xff]
    %v1298 = vld [vmem:[#allocation14 + $0x6c0] sm:$0xff]
    %v1299 = vld [vmem:[#allocation14 + $0x6c8] sm:$0xff]
    %v1300 = vld [vmem:[#allocation14 + $0x6d0] sm:$0xff]
    %v1301 = vld [vmem:[#allocation14 + $0x6d8] sm:$0xff]
    %v1302 = vld [vmem:[#allocation14 + $0x6e0] sm:$0xff]
    %v1303 = vld [vmem:[#allocation14 + $0x6e8] sm:$0xff]
    %v1304 = vld [vmem:[#allocation14 + $0x6f0] sm:$0xff]
    %v1305 = vld [vmem:[#allocation14 + $0x6f8] sm:$0xff]
    %v1306 = vld [vmem:[#allocation14 + $0x700] sm:$0xff]
    %v1307 = vld [vmem:[#allocation14 + $0x708] sm:$0xff]
    %v1308 = vld [vmem:[#allocation14 + $0x710] sm:$0xff]
    %v1309 = vld [vmem:[#allocation14 + $0x718] sm:$0xff]
    %v1310 = vld [vmem:[#allocation14 + $0x720] sm:$0xff]
    %v1311 = vld [vmem:[#allocation14 + $0x728] sm:$0xff]
    %v1312 = vld [vmem:[#allocation14 + $0x730] sm:$0xff]
    %v1313 = vld [vmem:[#allocation14 + $0x738] sm:$0xff]
    %v1314 = vld [vmem:[#allocation14 + $0x740] sm:$0xff]
    %v1315 = vld [vmem:[#allocation14 + $0x748] sm:$0xff]
    %v1316 = vld [vmem:[#allocation14 + $0x750] sm:$0xff]
    %v1317 = vld [vmem:[#allocation14 + $0x758] sm:$0xff]
    %v1318 = vld [vmem:[#allocation14 + $0x760] sm:$0xff]
    %v1319 = vld [vmem:[#allocation14 + $0x768] sm:$0xff]
    %v1320 = vld [vmem:[#allocation14 + $0x770] sm:$0xff]
    %v1321 = vld [vmem:[#allocation14 + $0x778] sm:$0xff]
    %v1322 = vld [vmem:[#allocation14 + $0x780] sm:$0xff]
    %v1323 = vld [vmem:[#allocation14 + $0x788] sm:$0xff]
    %v1324 = vld [vmem:[#allocation14 + $0x790] sm:$0xff]
    %v1325 = vld [vmem:[#allocation14 + $0x798] sm:$0xff]
    %v1326 = vld [vmem:[#allocation14 + $0x7a0] sm:$0xff]
    %v1327 = vld [vmem:[#allocation14 + $0x7a8] sm:$0xff]
    %v1328 = vld [vmem:[#allocation14 + $0x7b0] sm:$0xff]
    %v1329 = vld [vmem:[#allocation14 + $0x7b8] sm:$0xff]
    %v1330 = vld [vmem:[#allocation14 + $0x7c0] sm:$0xff]
    %v1331 = vld [vmem:[#allocation14 + $0x7c8] sm:$0xff]
    %v1332 = vld [vmem:[#allocation14 + $0x7d0] sm:$0xff]
    %v1333 = vld [vmem:[#allocation14 + $0x7d8] sm:$0xff]
    %v1334 = vld [vmem:[#allocation14 + $0x7e0] sm:$0xff]
    %v1335 = vld [vmem:[#allocation14 + $0x7e8] sm:$0xff]
    %v1336 = vld [vmem:[#allocation14 + $0x7f0] sm:$0xff]
    %v1337 = vld [vmem:[#allocation14 + $0x7f8] sm:$0xff]
    %v1338 = vld [vmem:[#allocation16] sm:$0xff]
    %v1340 = vlaneseq
    %v1341 = vshrl.u32 %v1340, 7
    %v1342 = vsub.s32 0, %v1341
    %v1343 = vrot.slane %v1338, %v1342
    %v1344 = vlaneseq
    %v1345 = vshrl.u32 %v1344, 7
    %v1346 = vsub.s32 1, %v1345
    %v1347 = vrot.slane %v1338, %v1346
    %v1348 = vlaneseq
    %v1349 = vshrl.u32 %v1348, 7
    %v1350 = vsub.s32 2, %v1349
    %v1351 = vrot.slane %v1338, %v1350
    %v1352 = vlaneseq
    %v1353 = vshrl.u32 %v1352, 7
    %v1354 = vsub.s32 3, %v1353
    %v1355 = vrot.slane %v1338, %v1354
    %v1356 = vlaneseq
    %v1357 = vshrl.u32 %v1356, 7
    %v1358 = vsub.s32 4, %v1357
    %v1359 = vrot.slane %v1338, %v1358
    %v1360 = vlaneseq
    %v1361 = vshrl.u32 %v1360, 7
    %v1362 = vsub.s32 5, %v1361
    %v1363 = vrot.slane %v1338, %v1362
    %v1364 = vlaneseq
    %v1365 = vshrl.u32 %v1364, 7
    %v1366 = vsub.s32 6, %v1365
    %v1367 = vrot.slane %v1338, %v1366
    %v1368 = vlaneseq
    %v1369 = vshrl.u32 %v1368, 7
    %v1370 = vsub.s32 7, %v1369
    %v1371 = vrot.slane %v1338, %v1370
    %v1636 = vunpack.c.l.b16 %v1082
    %v1637 = vunpack.c.h.b16 %v1082
    %v1638 = vunpack.c.l.b16 %v1083
    %v1639 = vunpack.c.h.b16 %v1083
    %v1640 = vunpack.c.l.b16 %v1084
    %v1641 = vunpack.c.h.b16 %v1084
    %v1642 = vunpack.c.l.b16 %v1085
    %v1643 = vunpack.c.h.b16 %v1085
    %v1644 = vunpack.c.l.b16 %v1086
    %v1645 = vunpack.c.h.b16 %v1086
    %v1646 = vunpack.c.l.b16 %v1087
    %v1647 = vunpack.c.h.b16 %v1087
    %v1648 = vunpack.c.l.b16 %v1088
    %v1649 = vunpack.c.h.b16 %v1088
    %v1650 = vunpack.c.l.b16 %v1089
    %v1651 = vunpack.c.h.b16 %v1089
    %v1652 = vunpack.c.l.b16 %v1090
    %v1653 = vunpack.c.h.b16 %v1090
    %v1654 = vunpack.c.l.b16 %v1091
    %v1655 = vunpack.c.h.b16 %v1091
    %v1656 = vunpack.c.l.b16 %v1092
    %v1657 = vunpack.c.h.b16 %v1092
    %v1658 = vunpack.c.l.b16 %v1093
    %v1659 = vunpack.c.h.b16 %v1093
    %v1660 = vunpack.c.l.b16 %v1094
    %v1661 = vunpack.c.h.b16 %v1094
    %v1662 = vunpack.c.l.b16 %v1095
    %v1663 = vunpack.c.h.b16 %v1095
    %v1664 = vunpack.c.l.b16 %v1096
    %v1665 = vunpack.c.h.b16 %v1096
    %v1666 = vunpack.c.l.b16 %v1097
    %v1667 = vunpack.c.h.b16 %v1097
    %v1668 = vunpack.c.l.b16 %v1098
    %v1669 = vunpack.c.h.b16 %v1098
    %v1670 = vunpack.c.l.b16 %v1099
    %v1671 = vunpack.c.h.b16 %v1099
    %v1672 = vunpack.c.l.b16 %v1100
    %v1673 = vunpack.c.h.b16 %v1100
    %v1674 = vunpack.c.l.b16 %v1101
    %v1675 = vunpack.c.h.b16 %v1101
    %v1676 = vunpack.c.l.b16 %v1102
    %v1677 = vunpack.c.h.b16 %v1102
    %v1678 = vunpack.c.l.b16 %v1103
    %v1679 = vunpack.c.h.b16 %v1103
    %v1680 = vunpack.c.l.b16 %v1104
    %v1681 = vunpack.c.h.b16 %v1104
    %v1682 = vunpack.c.l.b16 %v1105
    %v1683 = vunpack.c.h.b16 %v1105
    %v1684 = vunpack.c.l.b16 %v1106
    %v1685 = vunpack.c.h.b16 %v1106
    %v1686 = vunpack.c.l.b16 %v1107
    %v1687 = vunpack.c.h.b16 %v1107
    %v1688 = vunpack.c.l.b16 %v1108
    %v1689 = vunpack.c.h.b16 %v1108
    %v1690 = vunpack.c.l.b16 %v1109
    %v1691 = vunpack.c.h.b16 %v1109
    %v1692 = vunpack.c.l.b16 %v1110
    %v1693 = vunpack.c.h.b16 %v1110
    %v1694 = vunpack.c.l.b16 %v1111
    %v1695 = vunpack.c.h.b16 %v1111
    %v1696 = vunpack.c.l.b16 %v1112
    %v1697 = vunpack.c.h.b16 %v1112
    %v1698 = vunpack.c.l.b16 %v1113
    %v1699 = vunpack.c.h.b16 %v1113
    %v1700 = vunpack.c.l.b16 %v1114
    %v1701 = vunpack.c.h.b16 %v1114
    %v1702 = vunpack.c.l.b16 %v1115
    %v1703 = vunpack.c.h.b16 %v1115
    %v1704 = vunpack.c.l.b16 %v1116
    %v1705 = vunpack.c.h.b16 %v1116
    %v1706 = vunpack.c.l.b16 %v1117
    %v1707 = vunpack.c.h.b16 %v1117
    %v1708 = vunpack.c.l.b16 %v1118
    %v1709 = vunpack.c.h.b16 %v1118
    %v1710 = vunpack.c.l.b16 %v1119
    %v1711 = vunpack.c.h.b16 %v1119
    %v1712 = vunpack.c.l.b16 %v1120
    %v1713 = vunpack.c.h.b16 %v1120
    %v1714 = vunpack.c.l.b16 %v1121
    %v1715 = vunpack.c.h.b16 %v1121
    %v1716 = vunpack.c.l.b16 %v1122
    %v1717 = vunpack.c.h.b16 %v1122
    %v1718 = vunpack.c.l.b16 %v1123
    %v1719 = vunpack.c.h.b16 %v1123
    %v1720 = vunpack.c.l.b16 %v1124
    %v1721 = vunpack.c.h.b16 %v1124
    %v1722 = vunpack.c.l.b16 %v1125
    %v1723 = vunpack.c.h.b16 %v1125
    %v1724 = vunpack.c.l.b16 %v1126
    %v1725 = vunpack.c.h.b16 %v1126
    %v1726 = vunpack.c.l.b16 %v1127
    %v1727 = vunpack.c.h.b16 %v1127
    %v1728 = vunpack.c.l.b16 %v1128
    %v1729 = vunpack.c.h.b16 %v1128
    %v1730 = vunpack.c.l.b16 %v1129
    %v1731 = vunpack.c.h.b16 %v1129
    %v1732 = vunpack.c.l.b16 %v1130
    %v1733 = vunpack.c.h.b16 %v1130
    %v1734 = vunpack.c.l.b16 %v1131
    %v1735 = vunpack.c.h.b16 %v1131
    %v1736 = vunpack.c.l.b16 %v1132
    %v1737 = vunpack.c.h.b16 %v1132
    %v1738 = vunpack.c.l.b16 %v1133
    %v1739 = vunpack.c.h.b16 %v1133
    %v1740 = vunpack.c.l.b16 %v1134
    %v1741 = vunpack.c.h.b16 %v1134
    %v1742 = vunpack.c.l.b16 %v1135
    %v1743 = vunpack.c.h.b16 %v1135
    %v1744 = vunpack.c.l.b16 %v1136
    %v1745 = vunpack.c.h.b16 %v1136
    %v1746 = vunpack.c.l.b16 %v1137
    %v1747 = vunpack.c.h.b16 %v1137
    %v1748 = vunpack.c.l.b16 %v1138
    %v1749 = vunpack.c.h.b16 %v1138
    %v1750 = vunpack.c.l.b16 %v1139
    %v1751 = vunpack.c.h.b16 %v1139
    %v1752 = vunpack.c.l.b16 %v1140
    %v1753 = vunpack.c.h.b16 %v1140
    %v1754 = vunpack.c.l.b16 %v1141
    %v1755 = vunpack.c.h.b16 %v1141
    %v1756 = vunpack.c.l.b16 %v1142
    %v1757 = vunpack.c.h.b16 %v1142
    %v1758 = vunpack.c.l.b16 %v1143
    %v1759 = vunpack.c.h.b16 %v1143
    %v1760 = vunpack.c.l.b16 %v1144
    %v1761 = vunpack.c.h.b16 %v1144
    %v1762 = vunpack.c.l.b16 %v1145
    %v1763 = vunpack.c.h.b16 %v1145
    %v1764 = vunpack.c.l.b16 %v1146
    %v1765 = vunpack.c.h.b16 %v1146
    %v1766 = vunpack.c.l.b16 %v1147
    %v1767 = vunpack.c.h.b16 %v1147
    %v1768 = vunpack.c.l.b16 %v1148
    %v1769 = vunpack.c.h.b16 %v1148
    %v1770 = vunpack.c.l.b16 %v1149
    %v1771 = vunpack.c.h.b16 %v1149
    %v1772 = vunpack.c.l.b16 %v1150
    %v1773 = vunpack.c.h.b16 %v1150
    %v1774 = vunpack.c.l.b16 %v1151
    %v1775 = vunpack.c.h.b16 %v1151
    %v1776 = vunpack.c.l.b16 %v1152
    %v1777 = vunpack.c.h.b16 %v1152
    %v1778 = vunpack.c.l.b16 %v1153
    %v1779 = vunpack.c.h.b16 %v1153
    %v1780 = vunpack.c.l.b16 %v1154
    %v1781 = vunpack.c.h.b16 %v1154
    %v1782 = vunpack.c.l.b16 %v1155
    %v1783 = vunpack.c.h.b16 %v1155
    %v1784 = vunpack.c.l.b16 %v1156
    %v1785 = vunpack.c.h.b16 %v1156
    %v1786 = vunpack.c.l.b16 %v1157
    %v1787 = vunpack.c.h.b16 %v1157
    %v1788 = vunpack.c.l.b16 %v1158
    %v1789 = vunpack.c.h.b16 %v1158
    %v1790 = vunpack.c.l.b16 %v1159
    %v1791 = vunpack.c.h.b16 %v1159
    %v1792 = vunpack.c.l.b16 %v1160
    %v1793 = vunpack.c.h.b16 %v1160
    %v1794 = vunpack.c.l.b16 %v1161
    %v1795 = vunpack.c.h.b16 %v1161
    %v1796 = vunpack.c.l.b16 %v1162
    %v1797 = vunpack.c.h.b16 %v1162
    %v1798 = vunpack.c.l.b16 %v1163
    %v1799 = vunpack.c.h.b16 %v1163
    %v1800 = vunpack.c.l.b16 %v1164
    %v1801 = vunpack.c.h.b16 %v1164
    %v1802 = vunpack.c.l.b16 %v1165
    %v1803 = vunpack.c.h.b16 %v1165
    %v1804 = vunpack.c.l.b16 %v1166
    %v1805 = vunpack.c.h.b16 %v1166
    %v1806 = vunpack.c.l.b16 %v1167
    %v1807 = vunpack.c.h.b16 %v1167
    %v1808 = vunpack.c.l.b16 %v1168
    %v1809 = vunpack.c.h.b16 %v1168
    %v1810 = vunpack.c.l.b16 %v1169
    %v1811 = vunpack.c.h.b16 %v1169
    %v1812 = vunpack.c.l.b16 %v1170
    %v1813 = vunpack.c.h.b16 %v1170
    %v1814 = vunpack.c.l.b16 %v1171
    %v1815 = vunpack.c.h.b16 %v1171
    %v1816 = vunpack.c.l.b16 %v1172
    %v1817 = vunpack.c.h.b16 %v1172
    %v1818 = vunpack.c.l.b16 %v1173
    %v1819 = vunpack.c.h.b16 %v1173
    %v1820 = vunpack.c.l.b16 %v1174
    %v1821 = vunpack.c.h.b16 %v1174
    %v1822 = vunpack.c.l.b16 %v1175
    %v1823 = vunpack.c.h.b16 %v1175
    %v1824 = vunpack.c.l.b16 %v1176
    %v1825 = vunpack.c.h.b16 %v1176
    %v1826 = vunpack.c.l.b16 %v1177
    %v1827 = vunpack.c.h.b16 %v1177
    %v1828 = vunpack.c.l.b16 %v1178
    %v1829 = vunpack.c.h.b16 %v1178
    %v1830 = vunpack.c.l.b16 %v1179
    %v1831 = vunpack.c.h.b16 %v1179
    %v1832 = vunpack.c.l.b16 %v1180
    %v1833 = vunpack.c.h.b16 %v1180
    %v1834 = vunpack.c.l.b16 %v1181
    %v1835 = vunpack.c.h.b16 %v1181
    %v1836 = vunpack.c.l.b16 %v1182
    %v1837 = vunpack.c.h.b16 %v1182
    %v1838 = vunpack.c.l.b16 %v1183
    %v1839 = vunpack.c.h.b16 %v1183
    %v1840 = vunpack.c.l.b16 %v1184
    %v1841 = vunpack.c.h.b16 %v1184
    %v1842 = vunpack.c.l.b16 %v1185
    %v1843 = vunpack.c.h.b16 %v1185
    %v1844 = vunpack.c.l.b16 %v1186
    %v1845 = vunpack.c.h.b16 %v1186
    %v1846 = vunpack.c.l.b16 %v1187
    %v1847 = vunpack.c.h.b16 %v1187
    %v1848 = vunpack.c.l.b16 %v1188
    %v1849 = vunpack.c.h.b16 %v1188
    %v1850 = vunpack.c.l.b16 %v1189
    %v1851 = vunpack.c.h.b16 %v1189
    %v1852 = vunpack.c.l.b16 %v1190
    %v1853 = vunpack.c.h.b16 %v1190
    %v1854 = vunpack.c.l.b16 %v1191
    %v1855 = vunpack.c.h.b16 %v1191
    %v1856 = vunpack.c.l.b16 %v1192
    %v1857 = vunpack.c.h.b16 %v1192
    %v1858 = vunpack.c.l.b16 %v1193
    %v1859 = vunpack.c.h.b16 %v1193
    %v1860 = vunpack.c.l.b16 %v1194
    %v1861 = vunpack.c.h.b16 %v1194
    %v1862 = vunpack.c.l.b16 %v1195
    %v1863 = vunpack.c.h.b16 %v1195
    %v1864 = vunpack.c.l.b16 %v1196
    %v1865 = vunpack.c.h.b16 %v1196
    %v1866 = vunpack.c.l.b16 %v1197
    %v1867 = vunpack.c.h.b16 %v1197
    %v1868 = vunpack.c.l.b16 %v1198
    %v1869 = vunpack.c.h.b16 %v1198
    %v1870 = vunpack.c.l.b16 %v1199
    %v1871 = vunpack.c.h.b16 %v1199
    %v1872 = vunpack.c.l.b16 %v1200
    %v1873 = vunpack.c.h.b16 %v1200
    %v1874 = vunpack.c.l.b16 %v1201
    %v1875 = vunpack.c.h.b16 %v1201
    %v1876 = vunpack.c.l.b16 %v1202
    %v1877 = vunpack.c.h.b16 %v1202
    %v1878 = vunpack.c.l.b16 %v1203
    %v1879 = vunpack.c.h.b16 %v1203
    %v1880 = vunpack.c.l.b16 %v1204
    %v1881 = vunpack.c.h.b16 %v1204
    %v1882 = vunpack.c.l.b16 %v1205
    %v1883 = vunpack.c.h.b16 %v1205
    %v1884 = vunpack.c.l.b16 %v1206
    %v1885 = vunpack.c.h.b16 %v1206
    %v1886 = vunpack.c.l.b16 %v1207
    %v1887 = vunpack.c.h.b16 %v1207
    %v1888 = vunpack.c.l.b16 %v1208
    %v1889 = vunpack.c.h.b16 %v1208
    %v1890 = vunpack.c.l.b16 %v1209
    %v1891 = vunpack.c.h.b16 %v1209
    %v1892 = vunpack.c.l.b16 %v1210
    %v1893 = vunpack.c.h.b16 %v1210
    %v1894 = vunpack.c.l.b16 %v1211
    %v1895 = vunpack.c.h.b16 %v1211
    %v1896 = vunpack.c.l.b16 %v1212
    %v1897 = vunpack.c.h.b16 %v1212
    %v1898 = vunpack.c.l.b16 %v1213
    %v1899 = vunpack.c.h.b16 %v1213
    %v1900 = vunpack.c.l.b16 %v1214
    %v1901 = vunpack.c.h.b16 %v1214
    %v1902 = vunpack.c.l.b16 %v1215
    %v1903 = vunpack.c.h.b16 %v1215
    %v1904 = vunpack.c.l.b16 %v1216
    %v1905 = vunpack.c.h.b16 %v1216
    %v1906 = vunpack.c.l.b16 %v1217
    %v1907 = vunpack.c.h.b16 %v1217
    %v1908 = vunpack.c.l.b16 %v1218
    %v1909 = vunpack.c.h.b16 %v1218
    %v1910 = vunpack.c.l.b16 %v1219
    %v1911 = vunpack.c.h.b16 %v1219
    %v1912 = vunpack.c.l.b16 %v1220
    %v1913 = vunpack.c.h.b16 %v1220
    %v1914 = vunpack.c.l.b16 %v1221
    %v1915 = vunpack.c.h.b16 %v1221
    %v1916 = vunpack.c.l.b16 %v1222
    %v1917 = vunpack.c.h.b16 %v1222
    %v1918 = vunpack.c.l.b16 %v1223
    %v1919 = vunpack.c.h.b16 %v1223
    %v1920 = vunpack.c.l.b16 %v1224
    %v1921 = vunpack.c.h.b16 %v1224
    %v1922 = vunpack.c.l.b16 %v1225
    %v1923 = vunpack.c.h.b16 %v1225
    %v1924 = vunpack.c.l.b16 %v1226
    %v1925 = vunpack.c.h.b16 %v1226
    %v1926 = vunpack.c.l.b16 %v1227
    %v1927 = vunpack.c.h.b16 %v1227
    %v1928 = vunpack.c.l.b16 %v1228
    %v1929 = vunpack.c.h.b16 %v1228
    %v1930 = vunpack.c.l.b16 %v1229
    %v1931 = vunpack.c.h.b16 %v1229
    %v1932 = vunpack.c.l.b16 %v1230
    %v1933 = vunpack.c.h.b16 %v1230
    %v1934 = vunpack.c.l.b16 %v1231
    %v1935 = vunpack.c.h.b16 %v1231
    %v1936 = vunpack.c.l.b16 %v1232
    %v1937 = vunpack.c.h.b16 %v1232
    %v1938 = vunpack.c.l.b16 %v1233
    %v1939 = vunpack.c.h.b16 %v1233
    %v1940 = vunpack.c.l.b16 %v1234
    %v1941 = vunpack.c.h.b16 %v1234
    %v1942 = vunpack.c.l.b16 %v1235
    %v1943 = vunpack.c.h.b16 %v1235
    %v1944 = vunpack.c.l.b16 %v1236
    %v1945 = vunpack.c.h.b16 %v1236
    %v1946 = vunpack.c.l.b16 %v1237
    %v1947 = vunpack.c.h.b16 %v1237
    %v1948 = vunpack.c.l.b16 %v1238
    %v1949 = vunpack.c.h.b16 %v1238
    %v1950 = vunpack.c.l.b16 %v1239
    %v1951 = vunpack.c.h.b16 %v1239
    %v1952 = vunpack.c.l.b16 %v1240
    %v1953 = vunpack.c.h.b16 %v1240
    %v1954 = vunpack.c.l.b16 %v1241
    %v1955 = vunpack.c.h.b16 %v1241
    %v1956 = vunpack.c.l.b16 %v1242
    %v1957 = vunpack.c.h.b16 %v1242
    %v1958 = vunpack.c.l.b16 %v1243
    %v1959 = vunpack.c.h.b16 %v1243
    %v1960 = vunpack.c.l.b16 %v1244
    %v1961 = vunpack.c.h.b16 %v1244
    %v1962 = vunpack.c.l.b16 %v1245
    %v1963 = vunpack.c.h.b16 %v1245
    %v1964 = vunpack.c.l.b16 %v1246
    %v1965 = vunpack.c.h.b16 %v1246
    %v1966 = vunpack.c.l.b16 %v1247
    %v1967 = vunpack.c.h.b16 %v1247
    %v1968 = vunpack.c.l.b16 %v1248
    %v1969 = vunpack.c.h.b16 %v1248
    %v1970 = vunpack.c.l.b16 %v1249
    %v1971 = vunpack.c.h.b16 %v1249
    %v1972 = vunpack.c.l.b16 %v1250
    %v1973 = vunpack.c.h.b16 %v1250
    %v1974 = vunpack.c.l.b16 %v1251
    %v1975 = vunpack.c.h.b16 %v1251
    %v1976 = vunpack.c.l.b16 %v1252
    %v1977 = vunpack.c.h.b16 %v1252
    %v1978 = vunpack.c.l.b16 %v1253
    %v1979 = vunpack.c.h.b16 %v1253
    %v1980 = vunpack.c.l.b16 %v1254
    %v1981 = vunpack.c.h.b16 %v1254
    %v1982 = vunpack.c.l.b16 %v1255
    %v1983 = vunpack.c.h.b16 %v1255
    %v1984 = vunpack.c.l.b16 %v1256
    %v1985 = vunpack.c.h.b16 %v1256
    %v1986 = vunpack.c.l.b16 %v1257
    %v1987 = vunpack.c.h.b16 %v1257
    %v1988 = vunpack.c.l.b16 %v1258
    %v1989 = vunpack.c.h.b16 %v1258
    %v1990 = vunpack.c.l.b16 %v1259
    %v1991 = vunpack.c.h.b16 %v1259
    %v1992 = vunpack.c.l.b16 %v1260
    %v1993 = vunpack.c.h.b16 %v1260
    %v1994 = vunpack.c.l.b16 %v1261
    %v1995 = vunpack.c.h.b16 %v1261
    %v1996 = vunpack.c.l.b16 %v1262
    %v1997 = vunpack.c.h.b16 %v1262
    %v1998 = vunpack.c.l.b16 %v1263
    %v1999 = vunpack.c.h.b16 %v1263
    %v2000 = vunpack.c.l.b16 %v1264
    %v2001 = vunpack.c.h.b16 %v1264
    %v2002 = vunpack.c.l.b16 %v1265
    %v2003 = vunpack.c.h.b16 %v1265
    %v2004 = vunpack.c.l.b16 %v1266
    %v2005 = vunpack.c.h.b16 %v1266
    %v2006 = vunpack.c.l.b16 %v1267
    %v2007 = vunpack.c.h.b16 %v1267
    %v2008 = vunpack.c.l.b16 %v1268
    %v2009 = vunpack.c.h.b16 %v1268
    %v2010 = vunpack.c.l.b16 %v1269
    %v2011 = vunpack.c.h.b16 %v1269
    %v2012 = vunpack.c.l.b16 %v1270
    %v2013 = vunpack.c.h.b16 %v1270
    %v2014 = vunpack.c.l.b16 %v1271
    %v2015 = vunpack.c.h.b16 %v1271
    %v2016 = vunpack.c.l.b16 %v1272
    %v2017 = vunpack.c.h.b16 %v1272
    %v2018 = vunpack.c.l.b16 %v1273
    %v2019 = vunpack.c.h.b16 %v1273
    %v2020 = vunpack.c.l.b16 %v1274
    %v2021 = vunpack.c.h.b16 %v1274
    %v2022 = vunpack.c.l.b16 %v1275
    %v2023 = vunpack.c.h.b16 %v1275
    %v2024 = vunpack.c.l.b16 %v1276
    %v2025 = vunpack.c.h.b16 %v1276
    %v2026 = vunpack.c.l.b16 %v1277
    %v2027 = vunpack.c.h.b16 %v1277
    %v2028 = vunpack.c.l.b16 %v1278
    %v2029 = vunpack.c.h.b16 %v1278
    %v2030 = vunpack.c.l.b16 %v1279
    %v2031 = vunpack.c.h.b16 %v1279
    %v2032 = vunpack.c.l.b16 %v1280
    %v2033 = vunpack.c.h.b16 %v1280
    %v2034 = vunpack.c.l.b16 %v1281
    %v2035 = vunpack.c.h.b16 %v1281
    %v2036 = vunpack.c.l.b16 %v1282
    %v2037 = vunpack.c.h.b16 %v1282
    %v2038 = vunpack.c.l.b16 %v1283
    %v2039 = vunpack.c.h.b16 %v1283
    %v2040 = vunpack.c.l.b16 %v1284
    %v2041 = vunpack.c.h.b16 %v1284
    %v2042 = vunpack.c.l.b16 %v1285
    %v2043 = vunpack.c.h.b16 %v1285
    %v2044 = vunpack.c.l.b16 %v1286
    %v2045 = vunpack.c.h.b16 %v1286
    %v2046 = vunpack.c.l.b16 %v1287
    %v2047 = vunpack.c.h.b16 %v1287
    %v2048 = vunpack.c.l.b16 %v1288
    %v2049 = vunpack.c.h.b16 %v1288
    %v2050 = vunpack.c.l.b16 %v1289
    %v2051 = vunpack.c.h.b16 %v1289
    %v2052 = vunpack.c.l.b16 %v1290
    %v2053 = vunpack.c.h.b16 %v1290
    %v2054 = vunpack.c.l.b16 %v1291
    %v2055 = vunpack.c.h.b16 %v1291
    %v2056 = vunpack.c.l.b16 %v1292
    %v2057 = vunpack.c.h.b16 %v1292
    %v2058 = vunpack.c.l.b16 %v1293
    %v2059 = vunpack.c.h.b16 %v1293
    %v2060 = vunpack.c.l.b16 %v1294
    %v2061 = vunpack.c.h.b16 %v1294
    %v2062 = vunpack.c.l.b16 %v1295
    %v2063 = vunpack.c.h.b16 %v1295
    %v2064 = vunpack.c.l.b16 %v1296
    %v2065 = vunpack.c.h.b16 %v1296
    %v2066 = vunpack.c.l.b16 %v1297
    %v2067 = vunpack.c.h.b16 %v1297
    %v2068 = vunpack.c.l.b16 %v1298
    %v2069 = vunpack.c.h.b16 %v1298
    %v2070 = vunpack.c.l.b16 %v1299
    %v2071 = vunpack.c.h.b16 %v1299
    %v2072 = vunpack.c.l.b16 %v1300
    %v2073 = vunpack.c.h.b16 %v1300
    %v2074 = vunpack.c.l.b16 %v1301
    %v2075 = vunpack.c.h.b16 %v1301
    %v2076 = vunpack.c.l.b16 %v1302
    %v2077 = vunpack.c.h.b16 %v1302
    %v2078 = vunpack.c.l.b16 %v1303
    %v2079 = vunpack.c.h.b16 %v1303
    %v2080 = vunpack.c.l.b16 %v1304
    %v2081 = vunpack.c.h.b16 %v1304
    %v2082 = vunpack.c.l.b16 %v1305
    %v2083 = vunpack.c.h.b16 %v1305
    %v2084 = vunpack.c.l.b16 %v1306
    %v2085 = vunpack.c.h.b16 %v1306
    %v2086 = vunpack.c.l.b16 %v1307
    %v2087 = vunpack.c.h.b16 %v1307
    %v2088 = vunpack.c.l.b16 %v1308
    %v2089 = vunpack.c.h.b16 %v1308
    %v2090 = vunpack.c.l.b16 %v1309
    %v2091 = vunpack.c.h.b16 %v1309
    %v2092 = vunpack.c.l.b16 %v1310
    %v2093 = vunpack.c.h.b16 %v1310
    %v2094 = vunpack.c.l.b16 %v1311
    %v2095 = vunpack.c.h.b16 %v1311
    %v2096 = vunpack.c.l.b16 %v1312
    %v2097 = vunpack.c.h.b16 %v1312
    %v2098 = vunpack.c.l.b16 %v1313
    %v2099 = vunpack.c.h.b16 %v1313
    %v2100 = vunpack.c.l.b16 %v1314
    %v2101 = vunpack.c.h.b16 %v1314
    %v2102 = vunpack.c.l.b16 %v1315
    %v2103 = vunpack.c.h.b16 %v1315
    %v2104 = vunpack.c.l.b16 %v1316
    %v2105 = vunpack.c.h.b16 %v1316
    %v2106 = vunpack.c.l.b16 %v1317
    %v2107 = vunpack.c.h.b16 %v1317
    %v2108 = vunpack.c.l.b16 %v1318
    %v2109 = vunpack.c.h.b16 %v1318
    %v2110 = vunpack.c.l.b16 %v1319
    %v2111 = vunpack.c.h.b16 %v1319
    %v2112 = vunpack.c.l.b16 %v1320
    %v2113 = vunpack.c.h.b16 %v1320
    %v2114 = vunpack.c.l.b16 %v1321
    %v2115 = vunpack.c.h.b16 %v1321
    %v2116 = vunpack.c.l.b16 %v1322
    %v2117 = vunpack.c.h.b16 %v1322
    %v2118 = vunpack.c.l.b16 %v1323
    %v2119 = vunpack.c.h.b16 %v1323
    %v2120 = vunpack.c.l.b16 %v1324
    %v2121 = vunpack.c.h.b16 %v1324
    %v2122 = vunpack.c.l.b16 %v1325
    %v2123 = vunpack.c.h.b16 %v1325
    %v2124 = vunpack.c.l.b16 %v1326
    %v2125 = vunpack.c.h.b16 %v1326
    %v2126 = vunpack.c.l.b16 %v1327
    %v2127 = vunpack.c.h.b16 %v1327
    %v2128 = vunpack.c.l.b16 %v1328
    %v2129 = vunpack.c.h.b16 %v1328
    %v2130 = vunpack.c.l.b16 %v1329
    %v2131 = vunpack.c.h.b16 %v1329
    %v2132 = vunpack.c.l.b16 %v1330
    %v2133 = vunpack.c.h.b16 %v1330
    %v2134 = vunpack.c.l.b16 %v1331
    %v2135 = vunpack.c.h.b16 %v1331
    %v2136 = vunpack.c.l.b16 %v1332
    %v2137 = vunpack.c.h.b16 %v1332
    %v2138 = vunpack.c.l.b16 %v1333
    %v2139 = vunpack.c.h.b16 %v1333
    %v2140 = vunpack.c.l.b16 %v1334
    %v2141 = vunpack.c.h.b16 %v1334
    %v2142 = vunpack.c.l.b16 %v1335
    %v2143 = vunpack.c.h.b16 %v1335
    %v2144 = vunpack.c.l.b16 %v1336
    %v2145 = vunpack.c.h.b16 %v1336
    %v2146 = vunpack.c.l.b16 %v1337
    %v2147 = vunpack.c.h.b16 %v1337
    %v2148 = vpack.c.b16 %v1644, %v1636
    %v2149 = vpack.c.b16 %v1645, %v1637
    %v2150 = vpack.c.b16 %v1646, %v1638
    %v2151 = vpack.c.b16 %v1647, %v1639
    %v2152 = vpack.c.b16 %v1648, %v1640
    %v2153 = vpack.c.b16 %v1649, %v1641
    %v2154 = vpack.c.b16 %v1650, %v1642
    %v2155 = vpack.c.b16 %v1651, %v1643
    %v2156 = vpack.c.b16 %v1660, %v1652
    %v2157 = vpack.c.b16 %v1661, %v1653
    %v2158 = vpack.c.b16 %v1662, %v1654
    %v2159 = vpack.c.b16 %v1663, %v1655
    %v2160 = vpack.c.b16 %v1664, %v1656
    %v2161 = vpack.c.b16 %v1665, %v1657
    %v2162 = vpack.c.b16 %v1666, %v1658
    %v2163 = vpack.c.b16 %v1667, %v1659
    %v2164 = vpack.c.b16 %v1676, %v1668
    %v2165 = vpack.c.b16 %v1677, %v1669
    %v2166 = vpack.c.b16 %v1678, %v1670
    %v2167 = vpack.c.b16 %v1679, %v1671
    %v2168 = vpack.c.b16 %v1680, %v1672
    %v2169 = vpack.c.b16 %v1681, %v1673
    %v2170 = vpack.c.b16 %v1682, %v1674
    %v2171 = vpack.c.b16 %v1683, %v1675
    %v2172 = vpack.c.b16 %v1692, %v1684
    %v2173 = vpack.c.b16 %v1693, %v1685
    %v2174 = vpack.c.b16 %v1694, %v1686
    %v2175 = vpack.c.b16 %v1695, %v1687
    %v2176 = vpack.c.b16 %v1696, %v1688
    %v2177 = vpack.c.b16 %v1697, %v1689
    %v2178 = vpack.c.b16 %v1698, %v1690
    %v2179 = vpack.c.b16 %v1699, %v1691
    %v2180 = vpack.c.b16 %v1708, %v1700
    %v2181 = vpack.c.b16 %v1709, %v1701
    %v2182 = vpack.c.b16 %v1710, %v1702
    %v2183 = vpack.c.b16 %v1711, %v1703
    %v2184 = vpack.c.b16 %v1712, %v1704
    %v2185 = vpack.c.b16 %v1713, %v1705
    %v2186 = vpack.c.b16 %v1714, %v1706
    %v2187 = vpack.c.b16 %v1715, %v1707
    %v2188 = vpack.c.b16 %v1724, %v1716
    %v2189 = vpack.c.b16 %v1725, %v1717
    %v2190 = vpack.c.b16 %v1726, %v1718
    %v2191 = vpack.c.b16 %v1727, %v1719
    %v2192 = vpack.c.b16 %v1728, %v1720
    %v2193 = vpack.c.b16 %v1729, %v1721
    %v2194 = vpack.c.b16 %v1730, %v1722
    %v2195 = vpack.c.b16 %v1731, %v1723
    %v2196 = vpack.c.b16 %v1740, %v1732
    %v2197 = vpack.c.b16 %v1741, %v1733
    %v2198 = vpack.c.b16 %v1742, %v1734
    %v2199 = vpack.c.b16 %v1743, %v1735
    %v2200 = vpack.c.b16 %v1744, %v1736
    %v2201 = vpack.c.b16 %v1745, %v1737
    %v2202 = vpack.c.b16 %v1746, %v1738
    %v2203 = vpack.c.b16 %v1747, %v1739
    %v2204 = vpack.c.b16 %v1756, %v1748
    %v2205 = vpack.c.b16 %v1757, %v1749
    %v2206 = vpack.c.b16 %v1758, %v1750
    %v2207 = vpack.c.b16 %v1759, %v1751
    %v2208 = vpack.c.b16 %v1760, %v1752
    %v2209 = vpack.c.b16 %v1761, %v1753
    %v2210 = vpack.c.b16 %v1762, %v1754
    %v2211 = vpack.c.b16 %v1763, %v1755
    %v2212 = vpack.c.b16 %v1772, %v1764
    %v2213 = vpack.c.b16 %v1773, %v1765
    %v2214 = vpack.c.b16 %v1774, %v1766
    %v2215 = vpack.c.b16 %v1775, %v1767
    %v2216 = vpack.c.b16 %v1776, %v1768
    %v2217 = vpack.c.b16 %v1777, %v1769
    %v2218 = vpack.c.b16 %v1778, %v1770
    %v2219 = vpack.c.b16 %v1779, %v1771
    %v2220 = vpack.c.b16 %v1788, %v1780
    %v2221 = vpack.c.b16 %v1789, %v1781
    %v2222 = vpack.c.b16 %v1790, %v1782
    %v2223 = vpack.c.b16 %v1791, %v1783
    %v2224 = vpack.c.b16 %v1792, %v1784
    %v2225 = vpack.c.b16 %v1793, %v1785
    %v2226 = vpack.c.b16 %v1794, %v1786
    %v2227 = vpack.c.b16 %v1795, %v1787
    %v2228 = vpack.c.b16 %v1804, %v1796
    %v2229 = vpack.c.b16 %v1805, %v1797
    %v2230 = vpack.c.b16 %v1806, %v1798
    %v2231 = vpack.c.b16 %v1807, %v1799
    %v2232 = vpack.c.b16 %v1808, %v1800
    %v2233 = vpack.c.b16 %v1809, %v1801
    %v2234 = vpack.c.b16 %v1810, %v1802
    %v2235 = vpack.c.b16 %v1811, %v1803
    %v2236 = vpack.c.b16 %v1820, %v1812
    %v2237 = vpack.c.b16 %v1821, %v1813
    %v2238 = vpack.c.b16 %v1822, %v1814
    %v2239 = vpack.c.b16 %v1823, %v1815
    %v2240 = vpack.c.b16 %v1824, %v1816
    %v2241 = vpack.c.b16 %v1825, %v1817
    %v2242 = vpack.c.b16 %v1826, %v1818
    %v2243 = vpack.c.b16 %v1827, %v1819
    %v2244 = vpack.c.b16 %v1836, %v1828
    %v2245 = vpack.c.b16 %v1837, %v1829
    %v2246 = vpack.c.b16 %v1838, %v1830
    %v2247 = vpack.c.b16 %v1839, %v1831
    %v2248 = vpack.c.b16 %v1840, %v1832
    %v2249 = vpack.c.b16 %v1841, %v1833
    %v2250 = vpack.c.b16 %v1842, %v1834
    %v2251 = vpack.c.b16 %v1843, %v1835
    %v2252 = vpack.c.b16 %v1852, %v1844
    %v2253 = vpack.c.b16 %v1853, %v1845
    %v2254 = vpack.c.b16 %v1854, %v1846
    %v2255 = vpack.c.b16 %v1855, %v1847
    %v2256 = vpack.c.b16 %v1856, %v1848
    %v2257 = vpack.c.b16 %v1857, %v1849
    %v2258 = vpack.c.b16 %v1858, %v1850
    %v2259 = vpack.c.b16 %v1859, %v1851
    %v2260 = vpack.c.b16 %v1868, %v1860
    %v2261 = vpack.c.b16 %v1869, %v1861
    %v2262 = vpack.c.b16 %v1870, %v1862
    %v2263 = vpack.c.b16 %v1871, %v1863
    %v2264 = vpack.c.b16 %v1872, %v1864
    %v2265 = vpack.c.b16 %v1873, %v1865
    %v2266 = vpack.c.b16 %v1874, %v1866
    %v2267 = vpack.c.b16 %v1875, %v1867
    %v2268 = vpack.c.b16 %v1884, %v1876
    %v2269 = vpack.c.b16 %v1885, %v1877
    %v2270 = vpack.c.b16 %v1886, %v1878
    %v2271 = vpack.c.b16 %v1887, %v1879
    %v2272 = vpack.c.b16 %v1888, %v1880
    %v2273 = vpack.c.b16 %v1889, %v1881
    %v2274 = vpack.c.b16 %v1890, %v1882
    %v2275 = vpack.c.b16 %v1891, %v1883
    %v2276 = vpack.c.b16 %v1900, %v1892
    %v2277 = vpack.c.b16 %v1901, %v1893
    %v2278 = vpack.c.b16 %v1902, %v1894
    %v2279 = vpack.c.b16 %v1903, %v1895
    %v2280 = vpack.c.b16 %v1904, %v1896
    %v2281 = vpack.c.b16 %v1905, %v1897
    %v2282 = vpack.c.b16 %v1906, %v1898
    %v2283 = vpack.c.b16 %v1907, %v1899
    %v2284 = vpack.c.b16 %v1916, %v1908
    %v2285 = vpack.c.b16 %v1917, %v1909
    %v2286 = vpack.c.b16 %v1918, %v1910
    %v2287 = vpack.c.b16 %v1919, %v1911
    %v2288 = vpack.c.b16 %v1920, %v1912
    %v2289 = vpack.c.b16 %v1921, %v1913
    %v2290 = vpack.c.b16 %v1922, %v1914
    %v2291 = vpack.c.b16 %v1923, %v1915
    %v2292 = vpack.c.b16 %v1932, %v1924
    %v2293 = vpack.c.b16 %v1933, %v1925
    %v2294 = vpack.c.b16 %v1934, %v1926
    %v2295 = vpack.c.b16 %v1935, %v1927
    %v2296 = vpack.c.b16 %v1936, %v1928
    %v2297 = vpack.c.b16 %v1937, %v1929
    %v2298 = vpack.c.b16 %v1938, %v1930
    %v2299 = vpack.c.b16 %v1939, %v1931
    %v2300 = vpack.c.b16 %v1948, %v1940
    %v2301 = vpack.c.b16 %v1949, %v1941
    %v2302 = vpack.c.b16 %v1950, %v1942
    %v2303 = vpack.c.b16 %v1951, %v1943
    %v2304 = vpack.c.b16 %v1952, %v1944
    %v2305 = vpack.c.b16 %v1953, %v1945
    %v2306 = vpack.c.b16 %v1954, %v1946
    %v2307 = vpack.c.b16 %v1955, %v1947
    %v2308 = vpack.c.b16 %v1964, %v1956
    %v2309 = vpack.c.b16 %v1965, %v1957
    %v2310 = vpack.c.b16 %v1966, %v1958
    %v2311 = vpack.c.b16 %v1967, %v1959
    %v2312 = vpack.c.b16 %v1968, %v1960
    %v2313 = vpack.c.b16 %v1969, %v1961
    %v2314 = vpack.c.b16 %v1970, %v1962
    %v2315 = vpack.c.b16 %v1971, %v1963
    %v2316 = vpack.c.b16 %v1980, %v1972
    %v2317 = vpack.c.b16 %v1981, %v1973
    %v2318 = vpack.c.b16 %v1982, %v1974
    %v2319 = vpack.c.b16 %v1983, %v1975
    %v2320 = vpack.c.b16 %v1984, %v1976
    %v2321 = vpack.c.b16 %v1985, %v1977
    %v2322 = vpack.c.b16 %v1986, %v1978
    %v2323 = vpack.c.b16 %v1987, %v1979
    %v2324 = vpack.c.b16 %v1996, %v1988
    %v2325 = vpack.c.b16 %v1997, %v1989
    %v2326 = vpack.c.b16 %v1998, %v1990
    %v2327 = vpack.c.b16 %v1999, %v1991
    %v2328 = vpack.c.b16 %v2000, %v1992
    %v2329 = vpack.c.b16 %v2001, %v1993
    %v2330 = vpack.c.b16 %v2002, %v1994
    %v2331 = vpack.c.b16 %v2003, %v1995
    %v2332 = vpack.c.b16 %v2012, %v2004
    %v2333 = vpack.c.b16 %v2013, %v2005
    %v2334 = vpack.c.b16 %v2014, %v2006
    %v2335 = vpack.c.b16 %v2015, %v2007
    %v2336 = vpack.c.b16 %v2016, %v2008
    %v2337 = vpack.c.b16 %v2017, %v2009
    %v2338 = vpack.c.b16 %v2018, %v2010
    %v2339 = vpack.c.b16 %v2019, %v2011
    %v2340 = vpack.c.b16 %v2028, %v2020
    %v2341 = vpack.c.b16 %v2029, %v2021
    %v2342 = vpack.c.b16 %v2030, %v2022
    %v2343 = vpack.c.b16 %v2031, %v2023
    %v2344 = vpack.c.b16 %v2032, %v2024
    %v2345 = vpack.c.b16 %v2033, %v2025
    %v2346 = vpack.c.b16 %v2034, %v2026
    %v2347 = vpack.c.b16 %v2035, %v2027
    %v2348 = vpack.c.b16 %v2044, %v2036
    %v2349 = vpack.c.b16 %v2045, %v2037
    %v2350 = vpack.c.b16 %v2046, %v2038
    %v2351 = vpack.c.b16 %v2047, %v2039
    %v2352 = vpack.c.b16 %v2048, %v2040
    %v2353 = vpack.c.b16 %v2049, %v2041
    %v2354 = vpack.c.b16 %v2050, %v2042
    %v2355 = vpack.c.b16 %v2051, %v2043
    %v2356 = vpack.c.b16 %v2060, %v2052
    %v2357 = vpack.c.b16 %v2061, %v2053
    %v2358 = vpack.c.b16 %v2062, %v2054
    %v2359 = vpack.c.b16 %v2063, %v2055
    %v2360 = vpack.c.b16 %v2064, %v2056
    %v2361 = vpack.c.b16 %v2065, %v2057
    %v2362 = vpack.c.b16 %v2066, %v2058
    %v2363 = vpack.c.b16 %v2067, %v2059
    %v2364 = vpack.c.b16 %v2076, %v2068
    %v2365 = vpack.c.b16 %v2077, %v2069
    %v2366 = vpack.c.b16 %v2078, %v2070
    %v2367 = vpack.c.b16 %v2079, %v2071
    %v2368 = vpack.c.b16 %v2080, %v2072
    %v2369 = vpack.c.b16 %v2081, %v2073
    %v2370 = vpack.c.b16 %v2082, %v2074
    %v2371 = vpack.c.b16 %v2083, %v2075
    %v2372 = vpack.c.b16 %v2092, %v2084
    %v2373 = vpack.c.b16 %v2093, %v2085
    %v2374 = vpack.c.b16 %v2094, %v2086
    %v2375 = vpack.c.b16 %v2095, %v2087
    %v2376 = vpack.c.b16 %v2096, %v2088
    %v2377 = vpack.c.b16 %v2097, %v2089
    %v2378 = vpack.c.b16 %v2098, %v2090
    %v2379 = vpack.c.b16 %v2099, %v2091
    %v2380 = vpack.c.b16 %v2108, %v2100
    %v2381 = vpack.c.b16 %v2109, %v2101
    %v2382 = vpack.c.b16 %v2110, %v2102
    %v2383 = vpack.c.b16 %v2111, %v2103
    %v2384 = vpack.c.b16 %v2112, %v2104
    %v2385 = vpack.c.b16 %v2113, %v2105
    %v2386 = vpack.c.b16 %v2114, %v2106
    %v2387 = vpack.c.b16 %v2115, %v2107
    %v2388 = vpack.c.b16 %v2124, %v2116
    %v2389 = vpack.c.b16 %v2125, %v2117
    %v2390 = vpack.c.b16 %v2126, %v2118
    %v2391 = vpack.c.b16 %v2127, %v2119
    %v2392 = vpack.c.b16 %v2128, %v2120
    %v2393 = vpack.c.b16 %v2129, %v2121
    %v2394 = vpack.c.b16 %v2130, %v2122
    %v2395 = vpack.c.b16 %v2131, %v2123
    %v2396 = vpack.c.b16 %v2140, %v2132
    %v2397 = vpack.c.b16 %v2141, %v2133
    %v2398 = vpack.c.b16 %v2142, %v2134
    %v2399 = vpack.c.b16 %v2143, %v2135
    %v2400 = vpack.c.b16 %v2144, %v2136
    %v2401 = vpack.c.b16 %v2145, %v2137
    %v2402 = vpack.c.b16 %v2146, %v2138
    %v2403 = vpack.c.b16 %v2147, %v2139
    %2660 = vmatprep.subr.bf16.mxu0 %v2149
    %2661 = vmatpush1.bf16.msra.mxu0 %v2148
    %2662 = vmatprep.subr.bf16.mxu0 %v2157
    %2663 = vmatpush1.bf16.msra.mxu0 %v2156
    %2664 = vmatprep.subr.bf16.mxu0 %v2165
    %2665 = vmatpush1.bf16.msra.mxu0 %v2164
    %2666 = vmatprep.subr.bf16.mxu0 %v2173
    %2667 = vmatpush1.bf16.msra.mxu0 %v2172
    %2668 = vmatprep.subr.bf16.mxu0 %v2181
    %2669 = vmatpush1.bf16.msra.mxu0 %v2180
    %2670 = vmatprep.subr.bf16.mxu0 %v2189
    %2671 = vmatpush1.bf16.msra.mxu0 %v2188
    %2672 = vmatprep.subr.bf16.mxu0 %v2197
    %2673 = vmatpush1.bf16.msra.mxu0 %v2196
    %2674 = vmatprep.subr.bf16.mxu0 %v2205
    %2675 = vmatpush1.bf16.msra.mxu0 %v2204
    %2676 = vmatprep.subr.bf16.mxu0 %v2213
    %2677 = vmatpush1.bf16.msra.mxu0 %v2212
    %2678 = vmatprep.subr.bf16.mxu0 %v2221
    %2679 = vmatpush1.bf16.msra.mxu0 %v2220
    %2680 = vmatprep.subr.bf16.mxu0 %v2229
    %2681 = vmatpush1.bf16.msra.mxu0 %v2228
    %2682 = vmatprep.subr.bf16.mxu0 %v2237
    %2683 = vmatpush1.bf16.msra.mxu0 %v2236
    %2684 = vmatprep.subr.bf16.mxu0 %v2245
    %2685 = vmatpush1.bf16.msra.mxu0 %v2244
    %2686 = vmatprep.subr.bf16.mxu0 %v2253
    %2687 = vmatpush1.bf16.msra.mxu0 %v2252
    %2688 = vmatprep.subr.bf16.mxu0 %v2261
    %2689 = vmatpush1.bf16.msra.mxu0 %v2260
    %2690 = vmatprep.subr.bf16.mxu0 %v2269
    %2691 = vmatpush1.bf16.msra.mxu0 %v2268
    %2692 = vmatprep.mubr.bf16.mxu0 %v1079
    %2693 = vmatmul.mubr.bf16.gmra.mrb[0].mxu0 %v1078
    %v2694 = vpop.f32.mrb[0].mxu0
    %v2695 = vadd.f32 %v1343, %v2694
    %v2696 = vpop.f32.mrb[0].mxu0
    %v2697 = vadd.f32 %v1347, %v2696
    %v2698 = vpop.f32.mrb[0].mxu0
    %v2699 = vadd.f32 %v1343, %v2698
    %v2700 = vpop.f32.mrb[0].mxu0
    %v2701 = vadd.f32 %v1347, %v2700
    %2702 = vdwg.mxu0
    %2703 = vmatprep.subr.bf16.mxu0 %v2277
    %2704 = vmatpush1.bf16.msra.mxu0 %v2276
    %2705 = vmatprep.subr.bf16.mxu0 %v2285
    %2706 = vmatpush1.bf16.msra.mxu0 %v2284
    %2707 = vmatprep.subr.bf16.mxu0 %v2293
    %2708 = vmatpush1.bf16.msra.mxu0 %v2292
    %2709 = vmatprep.subr.bf16.mxu0 %v2301
    %2710 = vmatpush1.bf16.msra.mxu0 %v2300
    %2711 = vmatprep.subr.bf16.mxu0 %v2309
    %2712 = vmatpush1.bf16.msra.mxu0 %v2308
    %2713 = vmatprep.subr.bf16.mxu0 %v2317
    %2714 = vmatpush1.bf16.msra.mxu0 %v2316
    %2715 = vmatprep.subr.bf16.mxu0 %v2325
    %2716 = vmatpush1.bf16.msra.mxu0 %v2324
    %2717 = vmatprep.subr.bf16.mxu0 %v2333
    %2718 = vmatpush1.bf16.msra.mxu0 %v2332
    %2719 = vmatprep.subr.bf16.mxu0 %v2341
    %2720 = vmatpush1.bf16.msra.mxu0 %v2340
    %2721 = vmatprep.subr.bf16.mxu0 %v2349
    %2722 = vmatpush1.bf16.msra.mxu0 %v2348
    %2723 = vmatprep.subr.bf16.mxu0 %v2357
    %2724 = vmatpush1.bf16.msra.mxu0 %v2356
    %2725 = vmatprep.subr.bf16.mxu0 %v2365
    %2726 = vmatpush1.bf16.msra.mxu0 %v2364
    %2727 = vmatprep.subr.bf16.mxu0 %v2373
    %2728 = vmatpush1.bf16.msra.mxu0 %v2372
    %2729 = vmatprep.subr.bf16.mxu0 %v2381
    %2730 = vmatpush1.bf16.msra.mxu0 %v2380
    %2731 = vmatprep.subr.bf16.mxu0 %v2389
    %2732 = vmatpush1.bf16.msra.mxu0 %v2388
    %2733 = vmatprep.subr.bf16.mxu0 %v2397
    %2734 = vmatpush1.bf16.msra.mxu0 %v2396
    %2735 = vmatprep.mubr.bf16.mxu0 %v1081
    %2736 = vmatmul.mubr.bf16.gmra.mrb[0].mxu0 %v1080
    %v2737 = vpop.f32.mrb[0].mxu0
    %v2738 = vadd.f32 %v2695, %v2737
    %v2739 = vpop.f32.mrb[0].mxu0
    %v2740 = vadd.f32 %v2697, %v2739
    %v2741 = vpop.f32.mrb[0].mxu0
    %v2742 = vadd.f32 %v2699, %v2741
    %v2743 = vpop.f32.mrb[0].mxu0
    %v2744 = vadd.f32 %v2701, %v2743
    %2745 = vdwg.mxu0
    %2746 = vmatprep.subr.bf16.mxu0 %v2151
    %2747 = vmatpush1.bf16.msra.mxu0 %v2150
    %2748 = vmatprep.subr.bf16.mxu0 %v2159
    %2749 = vmatpush1.bf16.msra.mxu0 %v2158
    %2750 = vmatprep.subr.bf16.mxu0 %v2167
    %2751 = vmatpush1.bf16.msra.mxu0 %v2166
    %2752 = vmatprep.subr.bf16.mxu0 %v2175
    %2753 = vmatpush1.bf16.msra.mxu0 %v2174
    %2754 = vmatprep.subr.bf16.mxu0 %v2183
    %2755 = vmatpush1.bf16.msra.mxu0 %v2182
    %2756 = vmatprep.subr.bf16.mxu0 %v2191
    %2757 = vmatpush1.bf16.msra.mxu0 %v2190
    %2758 = vmatprep.subr.bf16.mxu0 %v2199
    %2759 = vmatpush1.bf16.msra.mxu0 %v2198
    %2760 = vmatprep.subr.bf16.mxu0 %v2207
    %2761 = vmatpush1.bf16.msra.mxu0 %v2206
    %2762 = vmatprep.subr.bf16.mxu0 %v2215
    %2763 = vmatpush1.bf16.msra.mxu0 %v2214
    %2764 = vmatprep.subr.bf16.mxu0 %v2223
    %2765 = vmatpush1.bf16.msra.mxu0 %v2222
    %2766 = vmatprep.subr.bf16.mxu0 %v2231
    %2767 = vmatpush1.bf16.msra.mxu0 %v2230
    %2768 = vmatprep.subr.bf16.mxu0 %v2239
    %2769 = vmatpush1.bf16.msra.mxu0 %v2238
    %2770 = vmatprep.subr.bf16.mxu0 %v2247
    %2771 = vmatpush1.bf16.msra.mxu0 %v2246
    %2772 = vmatprep.subr.bf16.mxu0 %v2255
    %2773 = vmatpush1.bf16.msra.mxu0 %v2254
    %2774 = vmatprep.subr.bf16.mxu0 %v2263
    %2775 = vmatpush1.bf16.msra.mxu0 %v2262
    %2776 = vmatprep.subr.bf16.mxu0 %v2271
    %2777 = vmatpush1.bf16.msra.mxu0 %v2270
    %2778 = vmatprep.mubr.bf16.mxu0 %v1079
    %2779 = vmatmul.mubr.bf16.gmra.mrb[0].mxu0 %v1078
    %v2780 = vpop.f32.mrb[0].mxu0
    %v2781 = vadd.f32 %v1351, %v2780
    %v2782 = vpop.f32.mrb[0].mxu0
    %v2783 = vadd.f32 %v1355, %v2782
    %v2784 = vpop.f32.mrb[0].mxu0
    %v2785 = vadd.f32 %v1351, %v2784
    %v2786 = vpop.f32.mrb[0].mxu0
    %v2787 = vadd.f32 %v1355, %v2786
    %2788 = vdwg.mxu0
    %2789 = vmatprep.subr.bf16.mxu0 %v2279
    %2790 = vmatpush1.bf16.msra.mxu0 %v2278
    %2791 = vmatprep.subr.bf16.mxu0 %v2287
    %2792 = vmatpush1.bf16.msra.mxu0 %v2286
    %2793 = vmatprep.subr.bf16.mxu0 %v2295
    %2794 = vmatpush1.bf16.msra.mxu0 %v2294
    %2795 = vmatprep.subr.bf16.mxu0 %v2303
    %2796 = vmatpush1.bf16.msra.mxu0 %v2302
    %2797 = vmatprep.subr.bf16.mxu0 %v2311
    %2798 = vmatpush1.bf16.msra.mxu0 %v2310
    %2799 = vmatprep.subr.bf16.mxu0 %v2319
    %2800 = vmatpush1.bf16.msra.mxu0 %v2318
    %2801 = vmatprep.subr.bf16.mxu0 %v2327
    %2802 = vmatpush1.bf16.msra.mxu0 %v2326
    %2803 = vmatprep.subr.bf16.mxu0 %v2335
    %2804 = vmatpush1.bf16.msra.mxu0 %v2334
    %2805 = vmatprep.subr.bf16.mxu0 %v2343
    %2806 = vmatpush1.bf16.msra.mxu0 %v2342
    %2807 = vmatprep.subr.bf16.mxu0 %v2351
    %2808 = vmatpush1.bf16.msra.mxu0 %v2350
    %2809 = vmatprep.subr.bf16.mxu0 %v2359
    %2810 = vmatpush1.bf16.msra.mxu0 %v2358
    %2811 = vmatprep.subr.bf16.mxu0 %v2367
    %2812 = vmatpush1.bf16.msra.mxu0 %v2366
    %2813 = vmatprep.subr.bf16.mxu0 %v2375
    %2814 = vmatpush1.bf16.msra.mxu0 %v2374
    %2815 = vmatprep.subr.bf16.mxu0 %v2383
    %2816 = vmatpush1.bf16.msra.mxu0 %v2382
    %2817 = vmatprep.subr.bf16.mxu0 %v2391
    %2818 = vmatpush1.bf16.msra.mxu0 %v2390
    %2819 = vmatprep.subr.bf16.mxu0 %v2399
    %2820 = vmatpush1.bf16.msra.mxu0 %v2398
    %2821 = vmatprep.mubr.bf16.mxu0 %v1081
    %2822 = vmatmul.mubr.bf16.gmra.mrb[0].mxu0 %v1080
    %v2823 = vpop.f32.mrb[0].mxu0
    %v2824 = vadd.f32 %v2781, %v2823
    %v2825 = vpop.f32.mrb[0].mxu0
    %v2826 = vadd.f32 %v2783, %v2825
    %v2827 = vpop.f32.mrb[0].mxu0
    %v2828 = vadd.f32 %v2785, %v2827
    %v2829 = vpop.f32.mrb[0].mxu0
    %v2830 = vadd.f32 %v2787, %v2829
    %2831 = vdwg.mxu0
    %2832 = vmatprep.subr.bf16.mxu0 %v2153
    %2833 = vmatpush1.bf16.msra.mxu0 %v2152
    %2834 = vmatprep.subr.bf16.mxu0 %v2161
    %2835 = vmatpush1.bf16.msra.mxu0 %v2160
    %2836 = vmatprep.subr.bf16.mxu0 %v2169
    %2837 = vmatpush1.bf16.msra.mxu0 %v2168
    %2838 = vmatprep.subr.bf16.mxu0 %v2177
    %2839 = vmatpush1.bf16.msra.mxu0 %v2176
    %2840 = vmatprep.subr.bf16.mxu0 %v2185
    %2841 = vmatpush1.bf16.msra.mxu0 %v2184
    %2842 = vmatprep.subr.bf16.mxu0 %v2193
    %2843 = vmatpush1.bf16.msra.mxu0 %v2192
    %2844 = vmatprep.subr.bf16.mxu0 %v2201
    %2845 = vmatpush1.bf16.msra.mxu0 %v2200
    %2846 = vmatprep.subr.bf16.mxu0 %v2209
    %2847 = vmatpush1.bf16.msra.mxu0 %v2208
    %2848 = vmatprep.subr.bf16.mxu0 %v2217
    %2849 = vmatpush1.bf16.msra.mxu0 %v2216
    %2850 = vmatprep.subr.bf16.mxu0 %v2225
    %2851 = vmatpush1.bf16.msra.mxu0 %v2224
    %2852 = vmatprep.subr.bf16.mxu0 %v2233
    %2853 = vmatpush1.bf16.msra.mxu0 %v2232
    %2854 = vmatprep.subr.bf16.mxu0 %v2241
    %2855 = vmatpush1.bf16.msra.mxu0 %v2240
    %2856 = vmatprep.subr.bf16.mxu0 %v2249
    %2857 = vmatpush1.bf16.msra.mxu0 %v2248
    %2858 = vmatprep.subr.bf16.mxu0 %v2257
    %2859 = vmatpush1.bf16.msra.mxu0 %v2256
    %2860 = vmatprep.subr.bf16.mxu0 %v2265
    %2861 = vmatpush1.bf16.msra.mxu0 %v2264
    %2862 = vmatprep.subr.bf16.mxu0 %v2273
    %2863 = vmatpush1.bf16.msra.mxu0 %v2272
    %2864 = vmatprep.mubr.bf16.mxu0 %v1079
    %2865 = vmatmul.mubr.bf16.gmra.mrb[0].mxu0 %v1078
    %v2866 = vpop.f32.mrb[0].mxu0
    %v2867 = vadd.f32 %v1359, %v2866
    %v2868 = vpop.f32.mrb[0].mxu0
    %v2869 = vadd.f32 %v1363, %v2868
    %v2870 = vpop.f32.mrb[0].mxu0
    %v2871 = vadd.f32 %v1359, %v2870
    %v2872 = vpop.f32.mrb[0].mxu0
    %v2873 = vadd.f32 %v1363, %v2872
    %2874 = vdwg.mxu0
    %2875 = vmatprep.subr.bf16.mxu0 %v2281
    %2876 = vmatpush1.bf16.msra.mxu0 %v2280
    %2877 = vmatprep.subr.bf16.mxu0 %v2289
    %2878 = vmatpush1.bf16.msra.mxu0 %v2288
    %2879 = vmatprep.subr.bf16.mxu0 %v2297
    %2880 = vmatpush1.bf16.msra.mxu0 %v2296
    %2881 = vmatprep.subr.bf16.mxu0 %v2305
    %2882 = vmatpush1.bf16.msra.mxu0 %v2304
    %2883 = vmatprep.subr.bf16.mxu0 %v2313
    %2884 = vmatpush1.bf16.msra.mxu0 %v2312
    %2885 = vmatprep.subr.bf16.mxu0 %v2321
    %2886 = vmatpush1.bf16.msra.mxu0 %v2320
    %2887 = vmatprep.subr.bf16.mxu0 %v2329
    %2888 = vmatpush1.bf16.msra.mxu0 %v2328
    %2889 = vmatprep.subr.bf16.mxu0 %v2337
    %2890 = vmatpush1.bf16.msra.mxu0 %v2336
    %2891 = vmatprep.subr.bf16.mxu0 %v2345
    %2892 = vmatpush1.bf16.msra.mxu0 %v2344
    %2893 = vmatprep.subr.bf16.mxu0 %v2353
    %2894 = vmatpush1.bf16.msra.mxu0 %v2352
    %2895 = vmatprep.subr.bf16.mxu0 %v2361
    %2896 = vmatpush1.bf16.msra.mxu0 %v2360
    %2897 = vmatprep.subr.bf16.mxu0 %v2369
    %2898 = vmatpush1.bf16.msra.mxu0 %v2368
    %2899 = vmatprep.subr.bf16.mxu0 %v2377
    %2900 = vmatpush1.bf16.msra.mxu0 %v2376
    %2901 = vmatprep.subr.bf16.mxu0 %v2385
    %2902 = vmatpush1.bf16.msra.mxu0 %v2384
    %2903 = vmatprep.subr.bf16.mxu0 %v2393
    %2904 = vmatpush1.bf16.msra.mxu0 %v2392
    %2905 = vmatprep.subr.bf16.mxu0 %v2401
    %2906 = vmatpush1.bf16.msra.mxu0 %v2400
    %2907 = vmatprep.mubr.bf16.mxu0 %v1081
    %2908 = vmatmul.mubr.bf16.gmra.mrb[0].mxu0 %v1080
    %v2909 = vpop.f32.mrb[0].mxu0
    %v2910 = vadd.f32 %v2867, %v2909
    %v2911 = vpop.f32.mrb[0].mxu0
    %v2912 = vadd.f32 %v2869, %v2911
    %v2913 = vpop.f32.mrb[0].mxu0
    %v2914 = vadd.f32 %v2871, %v2913
    %v2915 = vpop.f32.mrb[0].mxu0
    %v2916 = vadd.f32 %v2873, %v2915
    %2917 = vdwg.mxu0
    %2918 = vmatprep.subr.bf16.mxu0 %v2155
    %2919 = vmatpush1.bf16.msra.mxu0 %v2154
    %2920 = vmatprep.subr.bf16.mxu0 %v2163
    %2921 = vmatpush1.bf16.msra.mxu0 %v2162
    %2922 = vmatprep.subr.bf16.mxu0 %v2171
    %2923 = vmatpush1.bf16.msra.mxu0 %v2170
    %2924 = vmatprep.subr.bf16.mxu0 %v2179
    %2925 = vmatpush1.bf16.msra.mxu0 %v2178
    %2926 = vmatprep.subr.bf16.mxu0 %v2187
    %2927 = vmatpush1.bf16.msra.mxu0 %v2186
    %2928 = vmatprep.subr.bf16.mxu0 %v2195
    %2929 = vmatpush1.bf16.msra.mxu0 %v2194
    %2930 = vmatprep.subr.bf16.mxu0 %v2203
    %2931 = vmatpush1.bf16.msra.mxu0 %v2202
    %2932 = vmatprep.subr.bf16.mxu0 %v2211
    %2933 = vmatpush1.bf16.msra.mxu0 %v2210
    %2934 = vmatprep.subr.bf16.mxu0 %v2219
    %2935 = vmatpush1.bf16.msra.mxu0 %v2218
    %2936 = vmatprep.subr.bf16.mxu0 %v2227
    %2937 = vmatpush1.bf16.msra.mxu0 %v2226
    %2938 = vmatprep.subr.bf16.mxu0 %v2235
    %2939 = vmatpush1.bf16.msra.mxu0 %v2234
    %2940 = vmatprep.subr.bf16.mxu0 %v2243
    %2941 = vmatpush1.bf16.msra.mxu0 %v2242
    %2942 = vmatprep.subr.bf16.mxu0 %v2251
    %2943 = vmatpush1.bf16.msra.mxu0 %v2250
    %2944 = vmatprep.subr.bf16.mxu0 %v2259
    %2945 = vmatpush1.bf16.msra.mxu0 %v2258
    %2946 = vmatprep.subr.bf16.mxu0 %v2267
    %2947 = vmatpush1.bf16.msra.mxu0 %v2266
    %2948 = vmatprep.subr.bf16.mxu0 %v2275
    %2949 = vmatpush1.bf16.msra.mxu0 %v2274
    %2950 = vmatprep.mubr.bf16.mxu0 %v1079
    %2951 = vmatmul.mubr.bf16.gmra.mrb[0].mxu0 %v1078
    %v2952 = vpop.f32.mrb[0].mxu0
    %v2953 = vadd.f32 %v1367, %v2952
    %v2954 = vpop.f32.mrb[0].mxu0
    %v2955 = vadd.f32 %v1371, %v2954
    %v2956 = vpop.f32.mrb[0].mxu0
    %v2957 = vadd.f32 %v1367, %v2956
    %v2958 = vpop.f32.mrb[0].mxu0
    %v2959 = vadd.f32 %v1371, %v2958
    %2960 = vdwg.mxu0
    %2961 = vmatprep.subr.bf16.mxu0 %v2283
    %2962 = vmatpush1.bf16.msra.mxu0 %v2282
    %2963 = vmatprep.subr.bf16.mxu0 %v2291
    %2964 = vmatpush1.bf16.msra.mxu0 %v2290
    %2965 = vmatprep.subr.bf16.mxu0 %v2299
    %2966 = vmatpush1.bf16.msra.mxu0 %v2298
    %2967 = vmatprep.subr.bf16.mxu0 %v2307
    %2968 = vmatpush1.bf16.msra.mxu0 %v2306
    %2969 = vmatprep.subr.bf16.mxu0 %v2315
    %2970 = vmatpush1.bf16.msra.mxu0 %v2314
    %2971 = vmatprep.subr.bf16.mxu0 %v2323
    %2972 = vmatpush1.bf16.msra.mxu0 %v2322
    %2973 = vmatprep.subr.bf16.mxu0 %v2331
    %2974 = vmatpush1.bf16.msra.mxu0 %v2330
    %2975 = vmatprep.subr.bf16.mxu0 %v2339
    %2976 = vmatpush1.bf16.msra.mxu0 %v2338
    %2977 = vmatprep.subr.bf16.mxu0 %v2347
    %2978 = vmatpush1.bf16.msra.mxu0 %v2346
    %2979 = vmatprep.subr.bf16.mxu0 %v2355
    %2980 = vmatpush1.bf16.msra.mxu0 %v2354
    %2981 = vmatprep.subr.bf16.mxu0 %v2363
    %2982 = vmatpush1.bf16.msra.mxu0 %v2362
    %2983 = vmatprep.subr.bf16.mxu0 %v2371
    %2984 = vmatpush1.bf16.msra.mxu0 %v2370
    %2985 = vmatprep.subr.bf16.mxu0 %v2379
    %2986 = vmatpush1.bf16.msra.mxu0 %v2378
    %2987 = vmatprep.subr.bf16.mxu0 %v2387
    %2988 = vmatpush1.bf16.msra.mxu0 %v2386
    %2989 = vmatprep.subr.bf16.mxu0 %v2395
    %2990 = vmatpush1.bf16.msra.mxu0 %v2394
    %2991 = vmatprep.subr.bf16.mxu0 %v2403
    %2992 = vmatpush1.bf16.msra.mxu0 %v2402
    %2993 = vmatprep.mubr.bf16.mxu0 %v1081
    %2994 = vmatmul.mubr.bf16.gmra.mrb[0].mxu0 %v1080
    %v2995 = vpop.f32.mrb[0].mxu0
    %v2996 = vadd.f32 %v2953, %v2995
    %v2997 = vpop.f32.mrb[0].mxu0
    %v2998 = vadd.f32 %v2955, %v2997
    %v2999 = vpop.f32.mrb[0].mxu0
    %v3000 = vadd.f32 %v2957, %v2999
    %v3001 = vpop.f32.mrb[0].mxu0
    %v3002 = vadd.f32 %v2959, %v3001
    %3003 = vdwg.mxu0
    %v3004 = vmax.f32 %v2738, 0.0
    %v3005 = vmax.f32 %v2740, 0.0
    %v3006 = vmax.f32 %v2824, 0.0
    %v3007 = vmax.f32 %v2826, 0.0
    %v3008 = vmax.f32 %v2910, 0.0
    %v3009 = vmax.f32 %v2912, 0.0
    %v3010 = vmax.f32 %v2996, 0.0
    %v3011 = vmax.f32 %v2998, 0.0
    %v3012 = vmax.f32 %v2742, 0.0
    %v3013 = vmax.f32 %v2744, 0.0
    %v3014 = vmax.f32 %v2828, 0.0
    %v3015 = vmax.f32 %v2830, 0.0
    %v3016 = vmax.f32 %v2914, 0.0
    %v3017 = vmax.f32 %v2916, 0.0
    %v3018 = vmax.f32 %v3000, 0.0
    %v3019 = vmax.f32 %v3002, 0.0
    %v3020 = vpack.c.bf16 %v3012, %v3004
    %v3021 = vpack.c.bf16 %v3013, %v3005
    %v3022 = vpack.c.bf16 %v3014, %v3006
    %v3023 = vpack.c.bf16 %v3015, %v3007
    %v3024 = vpack.c.bf16 %v3016, %v3008
    %v3025 = vpack.c.bf16 %v3017, %v3009
    %v3026 = vpack.c.bf16 %v3018, %v3010
    %v3027 = vpack.c.bf16 %v3019, %v3011
    %v3028 = vld [vmem:[#allocation17] sm:$0xff]
    %v3029 = vld [vmem:[#allocation17 + $0x8] sm:$0xff]
    %v3030 = vld [vmem:[#allocation17 + $0x10] sm:$0xff]
    %v3031 = vld [vmem:[#allocation17 + $0x18] sm:$0xff]
    %v3032 = vld [vmem:[#allocation17 + $0x20] sm:$0xff]
    %v3033 = vld [vmem:[#allocation17 + $0x28] sm:$0xff]
    %v3034 = vld [vmem:[#allocation17 + $0x30] sm:$0xff]
    %v3035 = vld [vmem:[#allocation17 + $0x38] sm:$0xff]
    %v3036 = vld [vmem:[#allocation17 + $0x40] sm:$0xff]
    %v3037 = vld [vmem:[#allocation17 + $0x48] sm:$0xff]
    %v3038 = vld [vmem:[#allocation17 + $0x50] sm:$0xff]
    %v3039 = vld [vmem:[#allocation17 + $0x58] sm:$0xff]
    %v3040 = vld [vmem:[#allocation17 + $0x60] sm:$0xff]
    %v3041 = vld [vmem:[#allocation17 + $0x68] sm:$0xff]
    %v3042 = vld [vmem:[#allocation17 + $0x70] sm:$0xff]
    %v3043 = vld [vmem:[#allocation17 + $0x78] sm:$0xff]
    %v3044 = vld [vmem:[#allocation17 + $0x80] sm:$0xff]
    %v3045 = vld [vmem:[#allocation17 + $0x88] sm:$0xff]
    %v3046 = vld [vmem:[#allocation17 + $0x90] sm:$0xff]
    %v3047 = vld [vmem:[#allocation17 + $0x98] sm:$0xff]
    %v3048 = vld [vmem:[#allocation17 + $0xa0] sm:$0xff]
    %v3049 = vld [vmem:[#allocation17 + $0xa8] sm:$0xff]
    %v3050 = vld [vmem:[#allocation17 + $0xb0] sm:$0xff]
    %v3051 = vld [vmem:[#allocation17 + $0xb8] sm:$0xff]
    %v3052 = vld [vmem:[#allocation17 + $0xc0] sm:$0xff]
    %v3053 = vld [vmem:[#allocation17 + $0xc8] sm:$0xff]
    %v3054 = vld [vmem:[#allocation17 + $0xd0] sm:$0xff]
    %v3055 = vld [vmem:[#allocation17 + $0xd8] sm:$0xff]
    %v3056 = vld [vmem:[#allocation17 + $0xe0] sm:$0xff]
    %v3057 = vld [vmem:[#allocation17 + $0xe8] sm:$0xff]
    %v3058 = vld [vmem:[#allocation17 + $0xf0] sm:$0xff]
    %v3059 = vld [vmem:[#allocation17 + $0xf8] sm:$0xff]
    %v3060 = vld [vmem:[#allocation17 + $0x100] sm:$0xff]
    %v3061 = vld [vmem:[#allocation17 + $0x108] sm:$0xff]
    %v3062 = vld [vmem:[#allocation17 + $0x110] sm:$0xff]
    %v3063 = vld [vmem:[#allocation17 + $0x118] sm:$0xff]
    %v3064 = vld [vmem:[#allocation17 + $0x120] sm:$0xff]
    %v3065 = vld [vmem:[#allocation17 + $0x128] sm:$0xff]
    %v3066 = vld [vmem:[#allocation17 + $0x130] sm:$0xff]
    %v3067 = vld [vmem:[#allocation17 + $0x138] sm:$0xff]
    %v3068 = vld [vmem:[#allocation17 + $0x140] sm:$0xff]
    %v3069 = vld [vmem:[#allocation17 + $0x148] sm:$0xff]
    %v3070 = vld [vmem:[#allocation17 + $0x150] sm:$0xff]
    %v3071 = vld [vmem:[#allocation17 + $0x158] sm:$0xff]
    %v3072 = vld [vmem:[#allocation17 + $0x160] sm:$0xff]
    %v3073 = vld [vmem:[#allocation17 + $0x168] sm:$0xff]
    %v3074 = vld [vmem:[#allocation17 + $0x170] sm:$0xff]
    %v3075 = vld [vmem:[#allocation17 + $0x178] sm:$0xff]
    %v3076 = vld [vmem:[#allocation17 + $0x180] sm:$0xff]
    %v3077 = vld [vmem:[#allocation17 + $0x188] sm:$0xff]
    %v3078 = vld [vmem:[#allocation17 + $0x190] sm:$0xff]
    %v3079 = vld [vmem:[#allocation17 + $0x198] sm:$0xff]
    %v3080 = vld [vmem:[#allocation17 + $0x1a0] sm:$0xff]
    %v3081 = vld [vmem:[#allocation17 + $0x1a8] sm:$0xff]
    %v3082 = vld [vmem:[#allocation17 + $0x1b0] sm:$0xff]
    %v3083 = vld [vmem:[#allocation17 + $0x1b8] sm:$0xff]
    %v3084 = vld [vmem:[#allocation17 + $0x1c0] sm:$0xff]
    %v3085 = vld [vmem:[#allocation17 + $0x1c8] sm:$0xff]
    %v3086 = vld [vmem:[#allocation17 + $0x1d0] sm:$0xff]
    %v3087 = vld [vmem:[#allocation17 + $0x1d8] sm:$0xff]
    %v3088 = vld [vmem:[#allocation17 + $0x1e0] sm:$0xff]
    %v3089 = vld [vmem:[#allocation17 + $0x1e8] sm:$0xff]
    %v3090 = vld [vmem:[#allocation17 + $0x1f0] sm:$0xff]
    %v3091 = vld [vmem:[#allocation17 + $0x1f8] sm:$0xff]
    %v3092 = vld [vmem:[#allocation17 + $0x200] sm:$0xff]
    %v3093 = vld [vmem:[#allocation17 + $0x208] sm:$0xff]
    %v3094 = vld [vmem:[#allocation17 + $0x210] sm:$0xff]
    %v3095 = vld [vmem:[#allocation17 + $0x218] sm:$0xff]
    %v3096 = vld [vmem:[#allocation17 + $0x220] sm:$0xff]
    %v3097 = vld [vmem:[#allocation17 + $0x228] sm:$0xff]
    %v3098 = vld [vmem:[#allocation17 + $0x230] sm:$0xff]
    %v3099 = vld [vmem:[#allocation17 + $0x238] sm:$0xff]
    %v3100 = vld [vmem:[#allocation17 + $0x240] sm:$0xff]
    %v3101 = vld [vmem:[#allocation17 + $0x248] sm:$0xff]
    %v3102 = vld [vmem:[#allocation17 + $0x250] sm:$0xff]
    %v3103 = vld [vmem:[#allocation17 + $0x258] sm:$0xff]
    %v3104 = vld [vmem:[#allocation17 + $0x260] sm:$0xff]
    %v3105 = vld [vmem:[#allocation17 + $0x268] sm:$0xff]
    %v3106 = vld [vmem:[#allocation17 + $0x270] sm:$0xff]
    %v3107 = vld [vmem:[#allocation17 + $0x278] sm:$0xff]
    %v3108 = vld [vmem:[#allocation17 + $0x280] sm:$0xff]
    %v3109 = vld [vmem:[#allocation17 + $0x288] sm:$0xff]
    %v3110 = vld [vmem:[#allocation17 + $0x290] sm:$0xff]
    %v3111 = vld [vmem:[#allocation17 + $0x298] sm:$0xff]
    %v3112 = vld [vmem:[#allocation17 + $0x2a0] sm:$0xff]
    %v3113 = vld [vmem:[#allocation17 + $0x2a8] sm:$0xff]
    %v3114 = vld [vmem:[#allocation17 + $0x2b0] sm:$0xff]
    %v3115 = vld [vmem:[#allocation17 + $0x2b8] sm:$0xff]
    %v3116 = vld [vmem:[#allocation17 + $0x2c0] sm:$0xff]
    %v3117 = vld [vmem:[#allocation17 + $0x2c8] sm:$0xff]
    %v3118 = vld [vmem:[#allocation17 + $0x2d0] sm:$0xff]
    %v3119 = vld [vmem:[#allocation17 + $0x2d8] sm:$0xff]
    %v3120 = vld [vmem:[#allocation17 + $0x2e0] sm:$0xff]
    %v3121 = vld [vmem:[#allocation17 + $0x2e8] sm:$0xff]
    %v3122 = vld [vmem:[#allocation17 + $0x2f0] sm:$0xff]
    %v3123 = vld [vmem:[#allocation17 + $0x2f8] sm:$0xff]
    %v3124 = vld [vmem:[#allocation17 + $0x300] sm:$0xff]
    %v3125 = vld [vmem:[#allocation17 + $0x308] sm:$0xff]
    %v3126 = vld [vmem:[#allocation17 + $0x310] sm:$0xff]
    %v3127 = vld [vmem:[#allocation17 + $0x318] sm:$0xff]
    %v3128 = vld [vmem:[#allocation17 + $0x320] sm:$0xff]
    %v3129 = vld [vmem:[#allocation17 + $0x328] sm:$0xff]
    %v3130 = vld [vmem:[#allocation17 + $0x330] sm:$0xff]
    %v3131 = vld [vmem:[#allocation17 + $0x338] sm:$0xff]
    %v3132 = vld [vmem:[#allocation17 + $0x340] sm:$0xff]
    %v3133 = vld [vmem:[#allocation17 + $0x348] sm:$0xff]
    %v3134 = vld [vmem:[#allocation17 + $0x350] sm:$0xff]
    %v3135 = vld [vmem:[#allocation17 + $0x358] sm:$0xff]
    %v3136 = vld [vmem:[#allocation17 + $0x360] sm:$0xff]
    %v3137 = vld [vmem:[#allocation17 + $0x368] sm:$0xff]
    %v3138 = vld [vmem:[#allocation17 + $0x370] sm:$0xff]
    %v3139 = vld [vmem:[#allocation17 + $0x378] sm:$0xff]
    %v3140 = vld [vmem:[#allocation17 + $0x380] sm:$0xff]
    %v3141 = vld [vmem:[#allocation17 + $0x388] sm:$0xff]
    %v3142 = vld [vmem:[#allocation17 + $0x390] sm:$0xff]
    %v3143 = vld [vmem:[#allocation17 + $0x398] sm:$0xff]
    %v3144 = vld [vmem:[#allocation17 + $0x3a0] sm:$0xff]
    %v3145 = vld [vmem:[#allocation17 + $0x3a8] sm:$0xff]
    %v3146 = vld [vmem:[#allocation17 + $0x3b0] sm:$0xff]
    %v3147 = vld [vmem:[#allocation17 + $0x3b8] sm:$0xff]
    %v3148 = vld [vmem:[#allocation17 + $0x3c0] sm:$0xff]
    %v3149 = vld [vmem:[#allocation17 + $0x3c8] sm:$0xff]
    %v3150 = vld [vmem:[#allocation17 + $0x3d0] sm:$0xff]
    %v3151 = vld [vmem:[#allocation17 + $0x3d8] sm:$0xff]
    %v3152 = vld [vmem:[#allocation17 + $0x3e0] sm:$0xff]
    %v3153 = vld [vmem:[#allocation17 + $0x3e8] sm:$0xff]
    %v3154 = vld [vmem:[#allocation17 + $0x3f0] sm:$0xff]
    %v3155 = vld [vmem:[#allocation17 + $0x3f8] sm:$0xff]
    %v3156 = vld [vmem:[#allocation17 + $0x400] sm:$0xff]
    %v3157 = vld [vmem:[#allocation17 + $0x408] sm:$0xff]
    %v3158 = vld [vmem:[#allocation17 + $0x410] sm:$0xff]
    %v3159 = vld [vmem:[#allocation17 + $0x418] sm:$0xff]
    %v3160 = vld [vmem:[#allocation17 + $0x420] sm:$0xff]
    %v3161 = vld [vmem:[#allocation17 + $0x428] sm:$0xff]
    %v3162 = vld [vmem:[#allocation17 + $0x430] sm:$0xff]
    %v3163 = vld [vmem:[#allocation17 + $0x438] sm:$0xff]
    %v3164 = vld [vmem:[#allocation17 + $0x440] sm:$0xff]
    %v3165 = vld [vmem:[#allocation17 + $0x448] sm:$0xff]
    %v3166 = vld [vmem:[#allocation17 + $0x450] sm:$0xff]
    %v3167 = vld [vmem:[#allocation17 + $0x458] sm:$0xff]
    %v3168 = vld [vmem:[#allocation17 + $0x460] sm:$0xff]
    %v3169 = vld [vmem:[#allocation17 + $0x468] sm:$0xff]
    %v3170 = vld [vmem:[#allocation17 + $0x470] sm:$0xff]
    %v3171 = vld [vmem:[#allocation17 + $0x478] sm:$0xff]
    %v3172 = vld [vmem:[#allocation17 + $0x480] sm:$0xff]
    %v3173 = vld [vmem:[#allocation17 + $0x488] sm:$0xff]
    %v3174 = vld [vmem:[#allocation17 + $0x490] sm:$0xff]
    %v3175 = vld [vmem:[#allocation17 + $0x498] sm:$0xff]
    %v3176 = vld [vmem:[#allocation17 + $0x4a0] sm:$0xff]
    %v3177 = vld [vmem:[#allocation17 + $0x4a8] sm:$0xff]
    %v3178 = vld [vmem:[#allocation17 + $0x4b0] sm:$0xff]
    %v3179 = vld [vmem:[#allocation17 + $0x4b8] sm:$0xff]
    %v3180 = vld [vmem:[#allocation17 + $0x4c0] sm:$0xff]
    %v3181 = vld [vmem:[#allocation17 + $0x4c8] sm:$0xff]
    %v3182 = vld [vmem:[#allocation17 + $0x4d0] sm:$0xff]
    %v3183 = vld [vmem:[#allocation17 + $0x4d8] sm:$0xff]
    %v3184 = vld [vmem:[#allocation17 + $0x4e0] sm:$0xff]
    %v3185 = vld [vmem:[#allocation17 + $0x4e8] sm:$0xff]
    %v3186 = vld [vmem:[#allocation17 + $0x4f0] sm:$0xff]
    %v3187 = vld [vmem:[#allocation17 + $0x4f8] sm:$0xff]
    %v3188 = vld [vmem:[#allocation17 + $0x500] sm:$0xff]
    %v3189 = vld [vmem:[#allocation17 + $0x508] sm:$0xff]
    %v3190 = vld [vmem:[#allocation17 + $0x510] sm:$0xff]
    %v3191 = vld [vmem:[#allocation17 + $0x518] sm:$0xff]
    %v3192 = vld [vmem:[#allocation17 + $0x520] sm:$0xff]
    %v3193 = vld [vmem:[#allocation17 + $0x528] sm:$0xff]
    %v3194 = vld [vmem:[#allocation17 + $0x530] sm:$0xff]
    %v3195 = vld [vmem:[#allocation17 + $0x538] sm:$0xff]
    %v3196 = vld [vmem:[#allocation17 + $0x540] sm:$0xff]
    %v3197 = vld [vmem:[#allocation17 + $0x548] sm:$0xff]
    %v3198 = vld [vmem:[#allocation17 + $0x550] sm:$0xff]
    %v3199 = vld [vmem:[#allocation17 + $0x558] sm:$0xff]
    %v3200 = vld [vmem:[#allocation17 + $0x560] sm:$0xff]
    %v3201 = vld [vmem:[#allocation17 + $0x568] sm:$0xff]
    %v3202 = vld [vmem:[#allocation17 + $0x570] sm:$0xff]
    %v3203 = vld [vmem:[#allocation17 + $0x578] sm:$0xff]
    %v3204 = vld [vmem:[#allocation17 + $0x580] sm:$0xff]
    %v3205 = vld [vmem:[#allocation17 + $0x588] sm:$0xff]
    %v3206 = vld [vmem:[#allocation17 + $0x590] sm:$0xff]
    %v3207 = vld [vmem:[#allocation17 + $0x598] sm:$0xff]
    %v3208 = vld [vmem:[#allocation17 + $0x5a0] sm:$0xff]
    %v3209 = vld [vmem:[#allocation17 + $0x5a8] sm:$0xff]
    %v3210 = vld [vmem:[#allocation17 + $0x5b0] sm:$0xff]
    %v3211 = vld [vmem:[#allocation17 + $0x5b8] sm:$0xff]
    %v3212 = vld [vmem:[#allocation17 + $0x5c0] sm:$0xff]
    %v3213 = vld [vmem:[#allocation17 + $0x5c8] sm:$0xff]
    %v3214 = vld [vmem:[#allocation17 + $0x5d0] sm:$0xff]
    %v3215 = vld [vmem:[#allocation17 + $0x5d8] sm:$0xff]
    %v3216 = vld [vmem:[#allocation17 + $0x5e0] sm:$0xff]
    %v3217 = vld [vmem:[#allocation17 + $0x5e8] sm:$0xff]
    %v3218 = vld [vmem:[#allocation17 + $0x5f0] sm:$0xff]
    %v3219 = vld [vmem:[#allocation17 + $0x5f8] sm:$0xff]
    %v3220 = vld [vmem:[#allocation17 + $0x600] sm:$0xff]
    %v3221 = vld [vmem:[#allocation17 + $0x608] sm:$0xff]
    %v3222 = vld [vmem:[#allocation17 + $0x610] sm:$0xff]
    %v3223 = vld [vmem:[#allocation17 + $0x618] sm:$0xff]
    %v3224 = vld [vmem:[#allocation17 + $0x620] sm:$0xff]
    %v3225 = vld [vmem:[#allocation17 + $0x628] sm:$0xff]
    %v3226 = vld [vmem:[#allocation17 + $0x630] sm:$0xff]
    %v3227 = vld [vmem:[#allocation17 + $0x638] sm:$0xff]
    %v3228 = vld [vmem:[#allocation17 + $0x640] sm:$0xff]
    %v3229 = vld [vmem:[#allocation17 + $0x648] sm:$0xff]
    %v3230 = vld [vmem:[#allocation17 + $0x650] sm:$0xff]
    %v3231 = vld [vmem:[#allocation17 + $0x658] sm:$0xff]
    %v3232 = vld [vmem:[#allocation17 + $0x660] sm:$0xff]
    %v3233 = vld [vmem:[#allocation17 + $0x668] sm:$0xff]
    %v3234 = vld [vmem:[#allocation17 + $0x670] sm:$0xff]
    %v3235 = vld [vmem:[#allocation17 + $0x678] sm:$0xff]
    %v3236 = vld [vmem:[#allocation17 + $0x680] sm:$0xff]
    %v3237 = vld [vmem:[#allocation17 + $0x688] sm:$0xff]
    %v3238 = vld [vmem:[#allocation17 + $0x690] sm:$0xff]
    %v3239 = vld [vmem:[#allocation17 + $0x698] sm:$0xff]
    %v3240 = vld [vmem:[#allocation17 + $0x6a0] sm:$0xff]
    %v3241 = vld [vmem:[#allocation17 + $0x6a8] sm:$0xff]
    %v3242 = vld [vmem:[#allocation17 + $0x6b0] sm:$0xff]
    %v3243 = vld [vmem:[#allocation17 + $0x6b8] sm:$0xff]
    %v3244 = vld [vmem:[#allocation17 + $0x6c0] sm:$0xff]
    %v3245 = vld [vmem:[#allocation17 + $0x6c8] sm:$0xff]
    %v3246 = vld [vmem:[#allocation17 + $0x6d0] sm:$0xff]
    %v3247 = vld [vmem:[#allocation17 + $0x6d8] sm:$0xff]
    %v3248 = vld [vmem:[#allocation17 + $0x6e0] sm:$0xff]
    %v3249 = vld [vmem:[#allocation17 + $0x6e8] sm:$0xff]
    %v3250 = vld [vmem:[#allocation17 + $0x6f0] sm:$0xff]
    %v3251 = vld [vmem:[#allocation17 + $0x6f8] sm:$0xff]
    %v3252 = vld [vmem:[#allocation17 + $0x700] sm:$0xff]
    %v3253 = vld [vmem:[#allocation17 + $0x708] sm:$0xff]
    %v3254 = vld [vmem:[#allocation17 + $0x710] sm:$0xff]
    %v3255 = vld [vmem:[#allocation17 + $0x718] sm:$0xff]
    %v3256 = vld [vmem:[#allocation17 + $0x720] sm:$0xff]
    %v3257 = vld [vmem:[#allocation17 + $0x728] sm:$0xff]
    %v3258 = vld [vmem:[#allocation17 + $0x730] sm:$0xff]
    %v3259 = vld [vmem:[#allocation17 + $0x738] sm:$0xff]
    %v3260 = vld [vmem:[#allocation17 + $0x740] sm:$0xff]
    %v3261 = vld [vmem:[#allocation17 + $0x748] sm:$0xff]
    %v3262 = vld [vmem:[#allocation17 + $0x750] sm:$0xff]
    %v3263 = vld [vmem:[#allocation17 + $0x758] sm:$0xff]
    %v3264 = vld [vmem:[#allocation17 + $0x760] sm:$0xff]
    %v3265 = vld [vmem:[#allocation17 + $0x768] sm:$0xff]
    %v3266 = vld [vmem:[#allocation17 + $0x770] sm:$0xff]
    %v3267 = vld [vmem:[#allocation17 + $0x778] sm:$0xff]
    %v3268 = vld [vmem:[#allocation17 + $0x780] sm:$0xff]
    %v3269 = vld [vmem:[#allocation17 + $0x788] sm:$0xff]
    %v3270 = vld [vmem:[#allocation17 + $0x790] sm:$0xff]
    %v3271 = vld [vmem:[#allocation17 + $0x798] sm:$0xff]
    %v3272 = vld [vmem:[#allocation17 + $0x7a0] sm:$0xff]
    %v3273 = vld [vmem:[#allocation17 + $0x7a8] sm:$0xff]
    %v3274 = vld [vmem:[#allocation17 + $0x7b0] sm:$0xff]
    %v3275 = vld [vmem:[#allocation17 + $0x7b8] sm:$0xff]
    %v3276 = vld [vmem:[#allocation17 + $0x7c0] sm:$0xff]
    %v3277 = vld [vmem:[#allocation17 + $0x7c8] sm:$0xff]
    %v3278 = vld [vmem:[#allocation17 + $0x7d0] sm:$0xff]
    %v3279 = vld [vmem:[#allocation17 + $0x7d8] sm:$0xff]
    %v3280 = vld [vmem:[#allocation17 + $0x7e0] sm:$0xff]
    %v3281 = vld [vmem:[#allocation17 + $0x7e8] sm:$0xff]
    %v3282 = vld [vmem:[#allocation17 + $0x7f0] sm:$0xff]
    %v3283 = vld [vmem:[#allocation17 + $0x7f8] sm:$0xff]
    %v3284 = vld [vmem:[#allocation19] sm:$0xf]
    %v3286 = vlaneseq
    %v3287 = vshrl.u32 %v3286, 7
    %v3288 = vsub.s32 0, %v3287
    %v3289 = vrot.slane %v3284, %v3288
    %v3290 = vlaneseq
    %v3291 = vshrl.u32 %v3290, 7
    %v3292 = vsub.s32 1, %v3291
    %v3293 = vrot.slane %v3284, %v3292
    %v3294 = vlaneseq
    %v3295 = vshrl.u32 %v3294, 7
    %v3296 = vsub.s32 2, %v3295
    %v3297 = vrot.slane %v3284, %v3296
    %v3298 = vlaneseq
    %v3299 = vshrl.u32 %v3298, 7
    %v3300 = vsub.s32 3, %v3299
    %v3301 = vrot.slane %v3284, %v3300
    %v3562 = vunpack.c.l.b16 %v3028
    %v3563 = vunpack.c.h.b16 %v3028
    %v3564 = vunpack.c.l.b16 %v3029
    %v3565 = vunpack.c.h.b16 %v3029
    %v3566 = vunpack.c.l.b16 %v3030
    %v3567 = vunpack.c.h.b16 %v3030
    %v3568 = vunpack.c.l.b16 %v3031
    %v3569 = vunpack.c.h.b16 %v3031
    %v3570 = vunpack.c.l.b16 %v3032
    %v3571 = vunpack.c.h.b16 %v3032
    %v3572 = vunpack.c.l.b16 %v3033
    %v3573 = vunpack.c.h.b16 %v3033
    %v3574 = vunpack.c.l.b16 %v3034
    %v3575 = vunpack.c.h.b16 %v3034
    %v3576 = vunpack.c.l.b16 %v3035
    %v3577 = vunpack.c.h.b16 %v3035
    %v3578 = vunpack.c.l.b16 %v3036
    %v3579 = vunpack.c.h.b16 %v3036
    %v3580 = vunpack.c.l.b16 %v3037
    %v3581 = vunpack.c.h.b16 %v3037
    %v3582 = vunpack.c.l.b16 %v3038
    %v3583 = vunpack.c.h.b16 %v3038
    %v3584 = vunpack.c.l.b16 %v3039
    %v3585 = vunpack.c.h.b16 %v3039
    %v3586 = vunpack.c.l.b16 %v3040
    %v3587 = vunpack.c.h.b16 %v3040
    %v3588 = vunpack.c.l.b16 %v3041
    %v3589 = vunpack.c.h.b16 %v3041
    %v3590 = vunpack.c.l.b16 %v3042
    %v3591 = vunpack.c.h.b16 %v3042
    %v3592 = vunpack.c.l.b16 %v3043
    %v3593 = vunpack.c.h.b16 %v3043
    %v3594 = vunpack.c.l.b16 %v3044
    %v3595 = vunpack.c.h.b16 %v3044
    %v3596 = vunpack.c.l.b16 %v3045
    %v3597 = vunpack.c.h.b16 %v3045
    %v3598 = vunpack.c.l.b16 %v3046
    %v3599 = vunpack.c.h.b16 %v3046
    %v3600 = vunpack.c.l.b16 %v3047
    %v3601 = vunpack.c.h.b16 %v3047
    %v3602 = vunpack.c.l.b16 %v3048
    %v3603 = vunpack.c.h.b16 %v3048
    %v3604 = vunpack.c.l.b16 %v3049
    %v3605 = vunpack.c.h.b16 %v3049
    %v3606 = vunpack.c.l.b16 %v3050
    %v3607 = vunpack.c.h.b16 %v3050
    %v3608 = vunpack.c.l.b16 %v3051
    %v3609 = vunpack.c.h.b16 %v3051
    %v3610 = vunpack.c.l.b16 %v3052
    %v3611 = vunpack.c.h.b16 %v3052
    %v3612 = vunpack.c.l.b16 %v3053
    %v3613 = vunpack.c.h.b16 %v3053
    %v3614 = vunpack.c.l.b16 %v3054
    %v3615 = vunpack.c.h.b16 %v3054
    %v3616 = vunpack.c.l.b16 %v3055
    %v3617 = vunpack.c.h.b16 %v3055
    %v3618 = vunpack.c.l.b16 %v3056
    %v3619 = vunpack.c.h.b16 %v3056
    %v3620 = vunpack.c.l.b16 %v3057
    %v3621 = vunpack.c.h.b16 %v3057
    %v3622 = vunpack.c.l.b16 %v3058
    %v3623 = vunpack.c.h.b16 %v3058
    %v3624 = vunpack.c.l.b16 %v3059
    %v3625 = vunpack.c.h.b16 %v3059
    %v3626 = vunpack.c.l.b16 %v3060
    %v3627 = vunpack.c.h.b16 %v3060
    %v3628 = vunpack.c.l.b16 %v3061
    %v3629 = vunpack.c.h.b16 %v3061
    %v3630 = vunpack.c.l.b16 %v3062
    %v3631 = vunpack.c.h.b16 %v3062
    %v3632 = vunpack.c.l.b16 %v3063
    %v3633 = vunpack.c.h.b16 %v3063
    %v3634 = vunpack.c.l.b16 %v3064
    %v3635 = vunpack.c.h.b16 %v3064
    %v3636 = vunpack.c.l.b16 %v3065
    %v3637 = vunpack.c.h.b16 %v3065
    %v3638 = vunpack.c.l.b16 %v3066
    %v3639 = vunpack.c.h.b16 %v3066
    %v3640 = vunpack.c.l.b16 %v3067
    %v3641 = vunpack.c.h.b16 %v3067
    %v3642 = vunpack.c.l.b16 %v3068
    %v3643 = vunpack.c.h.b16 %v3068
    %v3644 = vunpack.c.l.b16 %v3069
    %v3645 = vunpack.c.h.b16 %v3069
    %v3646 = vunpack.c.l.b16 %v3070
    %v3647 = vunpack.c.h.b16 %v3070
    %v3648 = vunpack.c.l.b16 %v3071
    %v3649 = vunpack.c.h.b16 %v3071
    %v3650 = vunpack.c.l.b16 %v3072
    %v3651 = vunpack.c.h.b16 %v3072
    %v3652 = vunpack.c.l.b16 %v3073
    %v3653 = vunpack.c.h.b16 %v3073
    %v3654 = vunpack.c.l.b16 %v3074
    %v3655 = vunpack.c.h.b16 %v3074
    %v3656 = vunpack.c.l.b16 %v3075
    %v3657 = vunpack.c.h.b16 %v3075
    %v3658 = vunpack.c.l.b16 %v3076
    %v3659 = vunpack.c.h.b16 %v3076
    %v3660 = vunpack.c.l.b16 %v3077
    %v3661 = vunpack.c.h.b16 %v3077
    %v3662 = vunpack.c.l.b16 %v3078
    %v3663 = vunpack.c.h.b16 %v3078
    %v3664 = vunpack.c.l.b16 %v3079
    %v3665 = vunpack.c.h.b16 %v3079
    %v3666 = vunpack.c.l.b16 %v3080
    %v3667 = vunpack.c.h.b16 %v3080
    %v3668 = vunpack.c.l.b16 %v3081
    %v3669 = vunpack.c.h.b16 %v3081
    %v3670 = vunpack.c.l.b16 %v3082
    %v3671 = vunpack.c.h.b16 %v3082
    %v3672 = vunpack.c.l.b16 %v3083
    %v3673 = vunpack.c.h.b16 %v3083
    %v3674 = vunpack.c.l.b16 %v3084
    %v3675 = vunpack.c.h.b16 %v3084
    %v3676 = vunpack.c.l.b16 %v3085
    %v3677 = vunpack.c.h.b16 %v3085
    %v3678 = vunpack.c.l.b16 %v3086
    %v3679 = vunpack.c.h.b16 %v3086
    %v3680 = vunpack.c.l.b16 %v3087
    %v3681 = vunpack.c.h.b16 %v3087
    %v3682 = vunpack.c.l.b16 %v3088
    %v3683 = vunpack.c.h.b16 %v3088
    %v3684 = vunpack.c.l.b16 %v3089
    %v3685 = vunpack.c.h.b16 %v3089
    %v3686 = vunpack.c.l.b16 %v3090
    %v3687 = vunpack.c.h.b16 %v3090
    %v3688 = vunpack.c.l.b16 %v3091
    %v3689 = vunpack.c.h.b16 %v3091
    %v3690 = vunpack.c.l.b16 %v3092
    %v3691 = vunpack.c.h.b16 %v3092
    %v3692 = vunpack.c.l.b16 %v3093
    %v3693 = vunpack.c.h.b16 %v3093
    %v3694 = vunpack.c.l.b16 %v3094
    %v3695 = vunpack.c.h.b16 %v3094
    %v3696 = vunpack.c.l.b16 %v3095
    %v3697 = vunpack.c.h.b16 %v3095
    %v3698 = vunpack.c.l.b16 %v3096
    %v3699 = vunpack.c.h.b16 %v3096
    %v3700 = vunpack.c.l.b16 %v3097
    %v3701 = vunpack.c.h.b16 %v3097
    %v3702 = vunpack.c.l.b16 %v3098
    %v3703 = vunpack.c.h.b16 %v3098
    %v3704 = vunpack.c.l.b16 %v3099
    %v3705 = vunpack.c.h.b16 %v3099
    %v3706 = vunpack.c.l.b16 %v3100
    %v3707 = vunpack.c.h.b16 %v3100
    %v3708 = vunpack.c.l.b16 %v3101
    %v3709 = vunpack.c.h.b16 %v3101
    %v3710 = vunpack.c.l.b16 %v3102
    %v3711 = vunpack.c.h.b16 %v3102
    %v3712 = vunpack.c.l.b16 %v3103
    %v3713 = vunpack.c.h.b16 %v3103
    %v3714 = vunpack.c.l.b16 %v3104
    %v3715 = vunpack.c.h.b16 %v3104
    %v3716 = vunpack.c.l.b16 %v3105
    %v3717 = vunpack.c.h.b16 %v3105
    %v3718 = vunpack.c.l.b16 %v3106
    %v3719 = vunpack.c.h.b16 %v3106
    %v3720 = vunpack.c.l.b16 %v3107
    %v3721 = vunpack.c.h.b16 %v3107
    %v3722 = vunpack.c.l.b16 %v3108
    %v3723 = vunpack.c.h.b16 %v3108
    %v3724 = vunpack.c.l.b16 %v3109
    %v3725 = vunpack.c.h.b16 %v3109
    %v3726 = vunpack.c.l.b16 %v3110
    %v3727 = vunpack.c.h.b16 %v3110
    %v3728 = vunpack.c.l.b16 %v3111
    %v3729 = vunpack.c.h.b16 %v3111
    %v3730 = vunpack.c.l.b16 %v3112
    %v3731 = vunpack.c.h.b16 %v3112
    %v3732 = vunpack.c.l.b16 %v3113
    %v3733 = vunpack.c.h.b16 %v3113
    %v3734 = vunpack.c.l.b16 %v3114
    %v3735 = vunpack.c.h.b16 %v3114
    %v3736 = vunpack.c.l.b16 %v3115
    %v3737 = vunpack.c.h.b16 %v3115
    %v3738 = vunpack.c.l.b16 %v3116
    %v3739 = vunpack.c.h.b16 %v3116
    %v3740 = vunpack.c.l.b16 %v3117
    %v3741 = vunpack.c.h.b16 %v3117
    %v3742 = vunpack.c.l.b16 %v3118
    %v3743 = vunpack.c.h.b16 %v3118
    %v3744 = vunpack.c.l.b16 %v3119
    %v3745 = vunpack.c.h.b16 %v3119
    %v3746 = vunpack.c.l.b16 %v3120
    %v3747 = vunpack.c.h.b16 %v3120
    %v3748 = vunpack.c.l.b16 %v3121
    %v3749 = vunpack.c.h.b16 %v3121
    %v3750 = vunpack.c.l.b16 %v3122
    %v3751 = vunpack.c.h.b16 %v3122
    %v3752 = vunpack.c.l.b16 %v3123
    %v3753 = vunpack.c.h.b16 %v3123
    %v3754 = vunpack.c.l.b16 %v3124
    %v3755 = vunpack.c.h.b16 %v3124
    %v3756 = vunpack.c.l.b16 %v3125
    %v3757 = vunpack.c.h.b16 %v3125
    %v3758 = vunpack.c.l.b16 %v3126
    %v3759 = vunpack.c.h.b16 %v3126
    %v3760 = vunpack.c.l.b16 %v3127
    %v3761 = vunpack.c.h.b16 %v3127
    %v3762 = vunpack.c.l.b16 %v3128
    %v3763 = vunpack.c.h.b16 %v3128
    %v3764 = vunpack.c.l.b16 %v3129
    %v3765 = vunpack.c.h.b16 %v3129
    %v3766 = vunpack.c.l.b16 %v3130
    %v3767 = vunpack.c.h.b16 %v3130
    %v3768 = vunpack.c.l.b16 %v3131
    %v3769 = vunpack.c.h.b16 %v3131
    %v3770 = vunpack.c.l.b16 %v3132
    %v3771 = vunpack.c.h.b16 %v3132
    %v3772 = vunpack.c.l.b16 %v3133
    %v3773 = vunpack.c.h.b16 %v3133
    %v3774 = vunpack.c.l.b16 %v3134
    %v3775 = vunpack.c.h.b16 %v3134
    %v3776 = vunpack.c.l.b16 %v3135
    %v3777 = vunpack.c.h.b16 %v3135
    %v3778 = vunpack.c.l.b16 %v3136
    %v3779 = vunpack.c.h.b16 %v3136
    %v3780 = vunpack.c.l.b16 %v3137
    %v3781 = vunpack.c.h.b16 %v3137
    %v3782 = vunpack.c.l.b16 %v3138
    %v3783 = vunpack.c.h.b16 %v3138
    %v3784 = vunpack.c.l.b16 %v3139
    %v3785 = vunpack.c.h.b16 %v3139
    %v3786 = vunpack.c.l.b16 %v3140
    %v3787 = vunpack.c.h.b16 %v3140
    %v3788 = vunpack.c.l.b16 %v3141
    %v3789 = vunpack.c.h.b16 %v3141
    %v3790 = vunpack.c.l.b16 %v3142
    %v3791 = vunpack.c.h.b16 %v3142
    %v3792 = vunpack.c.l.b16 %v3143
    %v3793 = vunpack.c.h.b16 %v3143
    %v3794 = vunpack.c.l.b16 %v3144
    %v3795 = vunpack.c.h.b16 %v3144
    %v3796 = vunpack.c.l.b16 %v3145
    %v3797 = vunpack.c.h.b16 %v3145
    %v3798 = vunpack.c.l.b16 %v3146
    %v3799 = vunpack.c.h.b16 %v3146
    %v3800 = vunpack.c.l.b16 %v3147
    %v3801 = vunpack.c.h.b16 %v3147
    %v3802 = vunpack.c.l.b16 %v3148
    %v3803 = vunpack.c.h.b16 %v3148
    %v3804 = vunpack.c.l.b16 %v3149
    %v3805 = vunpack.c.h.b16 %v3149
    %v3806 = vunpack.c.l.b16 %v3150
    %v3807 = vunpack.c.h.b16 %v3150
    %v3808 = vunpack.c.l.b16 %v3151
    %v3809 = vunpack.c.h.b16 %v3151
    %v3810 = vunpack.c.l.b16 %v3152
    %v3811 = vunpack.c.h.b16 %v3152
    %v3812 = vunpack.c.l.b16 %v3153
    %v3813 = vunpack.c.h.b16 %v3153
    %v3814 = vunpack.c.l.b16 %v3154
    %v3815 = vunpack.c.h.b16 %v3154
    %v3816 = vunpack.c.l.b16 %v3155
    %v3817 = vunpack.c.h.b16 %v3155
    %v3818 = vunpack.c.l.b16 %v3156
    %v3819 = vunpack.c.h.b16 %v3156
    %v3820 = vunpack.c.l.b16 %v3157
    %v3821 = vunpack.c.h.b16 %v3157
    %v3822 = vunpack.c.l.b16 %v3158
    %v3823 = vunpack.c.h.b16 %v3158
    %v3824 = vunpack.c.l.b16 %v3159
    %v3825 = vunpack.c.h.b16 %v3159
    %v3826 = vunpack.c.l.b16 %v3160
    %v3827 = vunpack.c.h.b16 %v3160
    %v3828 = vunpack.c.l.b16 %v3161
    %v3829 = vunpack.c.h.b16 %v3161
    %v3830 = vunpack.c.l.b16 %v3162
    %v3831 = vunpack.c.h.b16 %v3162
    %v3832 = vunpack.c.l.b16 %v3163
    %v3833 = vunpack.c.h.b16 %v3163
    %v3834 = vunpack.c.l.b16 %v3164
    %v3835 = vunpack.c.h.b16 %v3164
    %v3836 = vunpack.c.l.b16 %v3165
    %v3837 = vunpack.c.h.b16 %v3165
    %v3838 = vunpack.c.l.b16 %v3166
    %v3839 = vunpack.c.h.b16 %v3166
    %v3840 = vunpack.c.l.b16 %v3167
    %v3841 = vunpack.c.h.b16 %v3167
    %v3842 = vunpack.c.l.b16 %v3168
    %v3843 = vunpack.c.h.b16 %v3168
    %v3844 = vunpack.c.l.b16 %v3169
    %v3845 = vunpack.c.h.b16 %v3169
    %v3846 = vunpack.c.l.b16 %v3170
    %v3847 = vunpack.c.h.b16 %v3170
    %v3848 = vunpack.c.l.b16 %v3171
    %v3849 = vunpack.c.h.b16 %v3171
    %v3850 = vunpack.c.l.b16 %v3172
    %v3851 = vunpack.c.h.b16 %v3172
    %v3852 = vunpack.c.l.b16 %v3173
    %v3853 = vunpack.c.h.b16 %v3173
    %v3854 = vunpack.c.l.b16 %v3174
    %v3855 = vunpack.c.h.b16 %v3174
    %v3856 = vunpack.c.l.b16 %v3175
    %v3857 = vunpack.c.h.b16 %v3175
    %v3858 = vunpack.c.l.b16 %v3176
    %v3859 = vunpack.c.h.b16 %v3176
    %v3860 = vunpack.c.l.b16 %v3177
    %v3861 = vunpack.c.h.b16 %v3177
    %v3862 = vunpack.c.l.b16 %v3178
    %v3863 = vunpack.c.h.b16 %v3178
    %v3864 = vunpack.c.l.b16 %v3179
    %v3865 = vunpack.c.h.b16 %v3179
    %v3866 = vunpack.c.l.b16 %v3180
    %v3867 = vunpack.c.h.b16 %v3180
    %v3868 = vunpack.c.l.b16 %v3181
    %v3869 = vunpack.c.h.b16 %v3181
    %v3870 = vunpack.c.l.b16 %v3182
    %v3871 = vunpack.c.h.b16 %v3182
    %v3872 = vunpack.c.l.b16 %v3183
    %v3873 = vunpack.c.h.b16 %v3183
    %v3874 = vunpack.c.l.b16 %v3184
    %v3875 = vunpack.c.h.b16 %v3184
    %v3876 = vunpack.c.l.b16 %v3185
    %v3877 = vunpack.c.h.b16 %v3185
    %v3878 = vunpack.c.l.b16 %v3186
    %v3879 = vunpack.c.h.b16 %v3186
    %v3880 = vunpack.c.l.b16 %v3187
    %v3881 = vunpack.c.h.b16 %v3187
    %v3882 = vunpack.c.l.b16 %v3188
    %v3883 = vunpack.c.h.b16 %v3188
    %v3884 = vunpack.c.l.b16 %v3189
    %v3885 = vunpack.c.h.b16 %v3189
    %v3886 = vunpack.c.l.b16 %v3190
    %v3887 = vunpack.c.h.b16 %v3190
    %v3888 = vunpack.c.l.b16 %v3191
    %v3889 = vunpack.c.h.b16 %v3191
    %v3890 = vunpack.c.l.b16 %v3192
    %v3891 = vunpack.c.h.b16 %v3192
    %v3892 = vunpack.c.l.b16 %v3193
    %v3893 = vunpack.c.h.b16 %v3193
    %v3894 = vunpack.c.l.b16 %v3194
    %v3895 = vunpack.c.h.b16 %v3194
    %v3896 = vunpack.c.l.b16 %v3195
    %v3897 = vunpack.c.h.b16 %v3195
    %v3898 = vunpack.c.l.b16 %v3196
    %v3899 = vunpack.c.h.b16 %v3196
    %v3900 = vunpack.c.l.b16 %v3197
    %v3901 = vunpack.c.h.b16 %v3197
    %v3902 = vunpack.c.l.b16 %v3198
    %v3903 = vunpack.c.h.b16 %v3198
    %v3904 = vunpack.c.l.b16 %v3199
    %v3905 = vunpack.c.h.b16 %v3199
    %v3906 = vunpack.c.l.b16 %v3200
    %v3907 = vunpack.c.h.b16 %v3200
    %v3908 = vunpack.c.l.b16 %v3201
    %v3909 = vunpack.c.h.b16 %v3201
    %v3910 = vunpack.c.l.b16 %v3202
    %v3911 = vunpack.c.h.b16 %v3202
    %v3912 = vunpack.c.l.b16 %v3203
    %v3913 = vunpack.c.h.b16 %v3203
    %v3914 = vunpack.c.l.b16 %v3204
    %v3915 = vunpack.c.h.b16 %v3204
    %v3916 = vunpack.c.l.b16 %v3205
    %v3917 = vunpack.c.h.b16 %v3205
    %v3918 = vunpack.c.l.b16 %v3206
    %v3919 = vunpack.c.h.b16 %v3206
    %v3920 = vunpack.c.l.b16 %v3207
    %v3921 = vunpack.c.h.b16 %v3207
    %v3922 = vunpack.c.l.b16 %v3208
    %v3923 = vunpack.c.h.b16 %v3208
    %v3924 = vunpack.c.l.b16 %v3209
    %v3925 = vunpack.c.h.b16 %v3209
    %v3926 = vunpack.c.l.b16 %v3210
    %v3927 = vunpack.c.h.b16 %v3210
    %v3928 = vunpack.c.l.b16 %v3211
    %v3929 = vunpack.c.h.b16 %v3211
    %v3930 = vunpack.c.l.b16 %v3212
    %v3931 = vunpack.c.h.b16 %v3212
    %v3932 = vunpack.c.l.b16 %v3213
    %v3933 = vunpack.c.h.b16 %v3213
    %v3934 = vunpack.c.l.b16 %v3214
    %v3935 = vunpack.c.h.b16 %v3214
    %v3936 = vunpack.c.l.b16 %v3215
    %v3937 = vunpack.c.h.b16 %v3215
    %v3938 = vunpack.c.l.b16 %v3216
    %v3939 = vunpack.c.h.b16 %v3216
    %v3940 = vunpack.c.l.b16 %v3217
    %v3941 = vunpack.c.h.b16 %v3217
    %v3942 = vunpack.c.l.b16 %v3218
    %v3943 = vunpack.c.h.b16 %v3218
    %v3944 = vunpack.c.l.b16 %v3219
    %v3945 = vunpack.c.h.b16 %v3219
    %v3946 = vunpack.c.l.b16 %v3220
    %v3947 = vunpack.c.h.b16 %v3220
    %v3948 = vunpack.c.l.b16 %v3221
    %v3949 = vunpack.c.h.b16 %v3221
    %v3950 = vunpack.c.l.b16 %v3222
    %v3951 = vunpack.c.h.b16 %v3222
    %v3952 = vunpack.c.l.b16 %v3223
    %v3953 = vunpack.c.h.b16 %v3223
    %v3954 = vunpack.c.l.b16 %v3224
    %v3955 = vunpack.c.h.b16 %v3224
    %v3956 = vunpack.c.l.b16 %v3225
    %v3957 = vunpack.c.h.b16 %v3225
    %v3958 = vunpack.c.l.b16 %v3226
    %v3959 = vunpack.c.h.b16 %v3226
    %v3960 = vunpack.c.l.b16 %v3227
    %v3961 = vunpack.c.h.b16 %v3227
    %v3962 = vunpack.c.l.b16 %v3228
    %v3963 = vunpack.c.h.b16 %v3228
    %v3964 = vunpack.c.l.b16 %v3229
    %v3965 = vunpack.c.h.b16 %v3229
    %v3966 = vunpack.c.l.b16 %v3230
    %v3967 = vunpack.c.h.b16 %v3230
    %v3968 = vunpack.c.l.b16 %v3231
    %v3969 = vunpack.c.h.b16 %v3231
    %v3970 = vunpack.c.l.b16 %v3232
    %v3971 = vunpack.c.h.b16 %v3232
    %v3972 = vunpack.c.l.b16 %v3233
    %v3973 = vunpack.c.h.b16 %v3233
    %v3974 = vunpack.c.l.b16 %v3234
    %v3975 = vunpack.c.h.b16 %v3234
    %v3976 = vunpack.c.l.b16 %v3235
    %v3977 = vunpack.c.h.b16 %v3235
    %v3978 = vunpack.c.l.b16 %v3236
    %v3979 = vunpack.c.h.b16 %v3236
    %v3980 = vunpack.c.l.b16 %v3237
    %v3981 = vunpack.c.h.b16 %v3237
    %v3982 = vunpack.c.l.b16 %v3238
    %v3983 = vunpack.c.h.b16 %v3238
    %v3984 = vunpack.c.l.b16 %v3239
    %v3985 = vunpack.c.h.b16 %v3239
    %v3986 = vunpack.c.l.b16 %v3240
    %v3987 = vunpack.c.h.b16 %v3240
    %v3988 = vunpack.c.l.b16 %v3241
    %v3989 = vunpack.c.h.b16 %v3241
    %v3990 = vunpack.c.l.b16 %v3242
    %v3991 = vunpack.c.h.b16 %v3242
    %v3992 = vunpack.c.l.b16 %v3243
    %v3993 = vunpack.c.h.b16 %v3243
    %v3994 = vunpack.c.l.b16 %v3244
    %v3995 = vunpack.c.h.b16 %v3244
    %v3996 = vunpack.c.l.b16 %v3245
    %v3997 = vunpack.c.h.b16 %v3245
    %v3998 = vunpack.c.l.b16 %v3246
    %v3999 = vunpack.c.h.b16 %v3246
    %v4000 = vunpack.c.l.b16 %v3247
    %v4001 = vunpack.c.h.b16 %v3247
    %v4002 = vunpack.c.l.b16 %v3248
    %v4003 = vunpack.c.h.b16 %v3248
    %v4004 = vunpack.c.l.b16 %v3249
    %v4005 = vunpack.c.h.b16 %v3249
    %v4006 = vunpack.c.l.b16 %v3250
    %v4007 = vunpack.c.h.b16 %v3250
    %v4008 = vunpack.c.l.b16 %v3251
    %v4009 = vunpack.c.h.b16 %v3251
    %v4010 = vunpack.c.l.b16 %v3252
    %v4011 = vunpack.c.h.b16 %v3252
    %v4012 = vunpack.c.l.b16 %v3253
    %v4013 = vunpack.c.h.b16 %v3253
    %v4014 = vunpack.c.l.b16 %v3254
    %v4015 = vunpack.c.h.b16 %v3254
    %v4016 = vunpack.c.l.b16 %v3255
    %v4017 = vunpack.c.h.b16 %v3255
    %v4018 = vunpack.c.l.b16 %v3256
    %v4019 = vunpack.c.h.b16 %v3256
    %v4020 = vunpack.c.l.b16 %v3257
    %v4021 = vunpack.c.h.b16 %v3257
    %v4022 = vunpack.c.l.b16 %v3258
    %v4023 = vunpack.c.h.b16 %v3258
    %v4024 = vunpack.c.l.b16 %v3259
    %v4025 = vunpack.c.h.b16 %v3259
    %v4026 = vunpack.c.l.b16 %v3260
    %v4027 = vunpack.c.h.b16 %v3260
    %v4028 = vunpack.c.l.b16 %v3261
    %v4029 = vunpack.c.h.b16 %v3261
    %v4030 = vunpack.c.l.b16 %v3262
    %v4031 = vunpack.c.h.b16 %v3262
    %v4032 = vunpack.c.l.b16 %v3263
    %v4033 = vunpack.c.h.b16 %v3263
    %v4034 = vunpack.c.l.b16 %v3264
    %v4035 = vunpack.c.h.b16 %v3264
    %v4036 = vunpack.c.l.b16 %v3265
    %v4037 = vunpack.c.h.b16 %v3265
    %v4038 = vunpack.c.l.b16 %v3266
    %v4039 = vunpack.c.h.b16 %v3266
    %v4040 = vunpack.c.l.b16 %v3267
    %v4041 = vunpack.c.h.b16 %v3267
    %v4042 = vunpack.c.l.b16 %v3268
    %v4043 = vunpack.c.h.b16 %v3268
    %v4044 = vunpack.c.l.b16 %v3269
    %v4045 = vunpack.c.h.b16 %v3269
    %v4046 = vunpack.c.l.b16 %v3270
    %v4047 = vunpack.c.h.b16 %v3270
    %v4048 = vunpack.c.l.b16 %v3271
    %v4049 = vunpack.c.h.b16 %v3271
    %v4050 = vunpack.c.l.b16 %v3272
    %v4051 = vunpack.c.h.b16 %v3272
    %v4052 = vunpack.c.l.b16 %v3273
    %v4053 = vunpack.c.h.b16 %v3273
    %v4054 = vunpack.c.l.b16 %v3274
    %v4055 = vunpack.c.h.b16 %v3274
    %v4056 = vunpack.c.l.b16 %v3275
    %v4057 = vunpack.c.h.b16 %v3275
    %v4058 = vunpack.c.l.b16 %v3276
    %v4059 = vunpack.c.h.b16 %v3276
    %v4060 = vunpack.c.l.b16 %v3277
    %v4061 = vunpack.c.h.b16 %v3277
    %v4062 = vunpack.c.l.b16 %v3278
    %v4063 = vunpack.c.h.b16 %v3278
    %v4064 = vunpack.c.l.b16 %v3279
    %v4065 = vunpack.c.h.b16 %v3279
    %v4066 = vunpack.c.l.b16 %v3280
    %v4067 = vunpack.c.h.b16 %v3280
    %v4068 = vunpack.c.l.b16 %v3281
    %v4069 = vunpack.c.h.b16 %v3281
    %v4070 = vunpack.c.l.b16 %v3282
    %v4071 = vunpack.c.h.b16 %v3282
    %v4072 = vunpack.c.l.b16 %v3283
    %v4073 = vunpack.c.h.b16 %v3283
    %v4074 = vpack.c.b16 %v3566, %v3562
    %v4075 = vpack.c.b16 %v3567, %v3563
    %v4076 = vpack.c.b16 %v3568, %v3564
    %v4077 = vpack.c.b16 %v3569, %v3565
    %v4078 = vpack.c.b16 %v3574, %v3570
    %v4079 = vpack.c.b16 %v3575, %v3571
    %v4080 = vpack.c.b16 %v3576, %v3572
    %v4081 = vpack.c.b16 %v3577, %v3573
    %v4082 = vpack.c.b16 %v3582, %v3578
    %v4083 = vpack.c.b16 %v3583, %v3579
    %v4084 = vpack.c.b16 %v3584, %v3580
    %v4085 = vpack.c.b16 %v3585, %v3581
    %v4086 = vpack.c.b16 %v3590, %v3586
    %v4087 = vpack.c.b16 %v3591, %v3587
    %v4088 = vpack.c.b16 %v3592, %v3588
    %v4089 = vpack.c.b16 %v3593, %v3589
    %v4090 = vpack.c.b16 %v3598, %v3594
    %v4091 = vpack.c.b16 %v3599, %v3595
    %v4092 = vpack.c.b16 %v3600, %v3596
    %v4093 = vpack.c.b16 %v3601, %v3597
    %v4094 = vpack.c.b16 %v3606, %v3602
    %v4095 = vpack.c.b16 %v3607, %v3603
    %v4096 = vpack.c.b16 %v3608, %v3604
    %v4097 = vpack.c.b16 %v3609, %v3605
    %v4098 = vpack.c.b16 %v3614, %v3610
    %v4099 = vpack.c.b16 %v3615, %v3611
    %v4100 = vpack.c.b16 %v3616, %v3612
    %v4101 = vpack.c.b16 %v3617, %v3613
    %v4102 = vpack.c.b16 %v3622, %v3618
    %v4103 = vpack.c.b16 %v3623, %v3619
    %v4104 = vpack.c.b16 %v3624, %v3620
    %v4105 = vpack.c.b16 %v3625, %v3621
    %v4106 = vpack.c.b16 %v3630, %v3626
    %v4107 = vpack.c.b16 %v3631, %v3627
    %v4108 = vpack.c.b16 %v3632, %v3628
    %v4109 = vpack.c.b16 %v3633, %v3629
    %v4110 = vpack.c.b16 %v3638, %v3634
    %v4111 = vpack.c.b16 %v3639, %v3635
    %v4112 = vpack.c.b16 %v3640, %v3636
    %v4113 = vpack.c.b16 %v3641, %v3637
    %v4114 = vpack.c.b16 %v3646, %v3642
    %v4115 = vpack.c.b16 %v3647, %v3643
    %v4116 = vpack.c.b16 %v3648, %v3644
    %v4117 = vpack.c.b16 %v3649, %v3645
    %v4118 = vpack.c.b16 %v3654, %v3650
    %v4119 = vpack.c.b16 %v3655, %v3651
    %v4120 = vpack.c.b16 %v3656, %v3652
    %v4121 = vpack.c.b16 %v3657, %v3653
    %v4122 = vpack.c.b16 %v3662, %v3658
    %v4123 = vpack.c.b16 %v3663, %v3659
    %v4124 = vpack.c.b16 %v3664, %v3660
    %v4125 = vpack.c.b16 %v3665, %v3661
    %v4126 = vpack.c.b16 %v3670, %v3666
    %v4127 = vpack.c.b16 %v3671, %v3667
    %v4128 = vpack.c.b16 %v3672, %v3668
    %v4129 = vpack.c.b16 %v3673, %v3669
    %v4130 = vpack.c.b16 %v3678, %v3674
    %v4131 = vpack.c.b16 %v3679, %v3675
    %v4132 = vpack.c.b16 %v3680, %v3676
    %v4133 = vpack.c.b16 %v3681, %v3677
    %v4134 = vpack.c.b16 %v3686, %v3682
    %v4135 = vpack.c.b16 %v3687, %v3683
    %v4136 = vpack.c.b16 %v3688, %v3684
    %v4137 = vpack.c.b16 %v3689, %v3685
    %v4138 = vpack.c.b16 %v3694, %v3690
    %v4139 = vpack.c.b16 %v3695, %v3691
    %v4140 = vpack.c.b16 %v3696, %v3692
    %v4141 = vpack.c.b16 %v3697, %v3693
    %v4142 = vpack.c.b16 %v3702, %v3698
    %v4143 = vpack.c.b16 %v3703, %v3699
    %v4144 = vpack.c.b16 %v3704, %v3700
    %v4145 = vpack.c.b16 %v3705, %v3701
    %v4146 = vpack.c.b16 %v3710, %v3706
    %v4147 = vpack.c.b16 %v3711, %v3707
    %v4148 = vpack.c.b16 %v3712, %v3708
    %v4149 = vpack.c.b16 %v3713, %v3709
    %v4150 = vpack.c.b16 %v3718, %v3714
    %v4151 = vpack.c.b16 %v3719, %v3715
    %v4152 = vpack.c.b16 %v3720, %v3716
    %v4153 = vpack.c.b16 %v3721, %v3717
    %v4154 = vpack.c.b16 %v3726, %v3722
    %v4155 = vpack.c.b16 %v3727, %v3723
    %v4156 = vpack.c.b16 %v3728, %v3724
    %v4157 = vpack.c.b16 %v3729, %v3725
    %v4158 = vpack.c.b16 %v3734, %v3730
    %v4159 = vpack.c.b16 %v3735, %v3731
    %v4160 = vpack.c.b16 %v3736, %v3732
    %v4161 = vpack.c.b16 %v3737, %v3733
    %v4162 = vpack.c.b16 %v3742, %v3738
    %v4163 = vpack.c.b16 %v3743, %v3739
    %v4164 = vpack.c.b16 %v3744, %v3740
    %v4165 = vpack.c.b16 %v3745, %v3741
    %v4166 = vpack.c.b16 %v3750, %v3746
    %v4167 = vpack.c.b16 %v3751, %v3747
    %v4168 = vpack.c.b16 %v3752, %v3748
    %v4169 = vpack.c.b16 %v3753, %v3749
    %v4170 = vpack.c.b16 %v3758, %v3754
    %v4171 = vpack.c.b16 %v3759, %v3755
    %v4172 = vpack.c.b16 %v3760, %v3756
    %v4173 = vpack.c.b16 %v3761, %v3757
    %v4174 = vpack.c.b16 %v3766, %v3762
    %v4175 = vpack.c.b16 %v3767, %v3763
    %v4176 = vpack.c.b16 %v3768, %v3764
    %v4177 = vpack.c.b16 %v3769, %v3765
    %v4178 = vpack.c.b16 %v3774, %v3770
    %v4179 = vpack.c.b16 %v3775, %v3771
    %v4180 = vpack.c.b16 %v3776, %v3772
    %v4181 = vpack.c.b16 %v3777, %v3773
    %v4182 = vpack.c.b16 %v3782, %v3778
    %v4183 = vpack.c.b16 %v3783, %v3779
    %v4184 = vpack.c.b16 %v3784, %v3780
    %v4185 = vpack.c.b16 %v3785, %v3781
    %v4186 = vpack.c.b16 %v3790, %v3786
    %v4187 = vpack.c.b16 %v3791, %v3787
    %v4188 = vpack.c.b16 %v3792, %v3788
    %v4189 = vpack.c.b16 %v3793, %v3789
    %v4190 = vpack.c.b16 %v3798, %v3794
    %v4191 = vpack.c.b16 %v3799, %v3795
    %v4192 = vpack.c.b16 %v3800, %v3796
    %v4193 = vpack.c.b16 %v3801, %v3797
    %v4194 = vpack.c.b16 %v3806, %v3802
    %v4195 = vpack.c.b16 %v3807, %v3803
    %v4196 = vpack.c.b16 %v3808, %v3804
    %v4197 = vpack.c.b16 %v3809, %v3805
    %v4198 = vpack.c.b16 %v3814, %v3810
    %v4199 = vpack.c.b16 %v3815, %v3811
    %v4200 = vpack.c.b16 %v3816, %v3812
    %v4201 = vpack.c.b16 %v3817, %v3813
    %v4202 = vpack.c.b16 %v3822, %v3818
    %v4203 = vpack.c.b16 %v3823, %v3819
    %v4204 = vpack.c.b16 %v3824, %v3820
    %v4205 = vpack.c.b16 %v3825, %v3821
    %v4206 = vpack.c.b16 %v3830, %v3826
    %v4207 = vpack.c.b16 %v3831, %v3827
    %v4208 = vpack.c.b16 %v3832, %v3828
    %v4209 = vpack.c.b16 %v3833, %v3829
    %v4210 = vpack.c.b16 %v3838, %v3834
    %v4211 = vpack.c.b16 %v3839, %v3835
    %v4212 = vpack.c.b16 %v3840, %v3836
    %v4213 = vpack.c.b16 %v3841, %v3837
    %v4214 = vpack.c.b16 %v3846, %v3842
    %v4215 = vpack.c.b16 %v3847, %v3843
    %v4216 = vpack.c.b16 %v3848, %v3844
    %v4217 = vpack.c.b16 %v3849, %v3845
    %v4218 = vpack.c.b16 %v3854, %v3850
    %v4219 = vpack.c.b16 %v3855, %v3851
    %v4220 = vpack.c.b16 %v3856, %v3852
    %v4221 = vpack.c.b16 %v3857, %v3853
    %v4222 = vpack.c.b16 %v3862, %v3858
    %v4223 = vpack.c.b16 %v3863, %v3859
    %v4224 = vpack.c.b16 %v3864, %v3860
    %v4225 = vpack.c.b16 %v3865, %v3861
    %v4226 = vpack.c.b16 %v3870, %v3866
    %v4227 = vpack.c.b16 %v3871, %v3867
    %v4228 = vpack.c.b16 %v3872, %v3868
    %v4229 = vpack.c.b16 %v3873, %v3869
    %v4230 = vpack.c.b16 %v3878, %v3874
    %v4231 = vpack.c.b16 %v3879, %v3875
    %v4232 = vpack.c.b16 %v3880, %v3876
    %v4233 = vpack.c.b16 %v3881, %v3877
    %v4234 = vpack.c.b16 %v3886, %v3882
    %v4235 = vpack.c.b16 %v3887, %v3883
    %v4236 = vpack.c.b16 %v3888, %v3884
    %v4237 = vpack.c.b16 %v3889, %v3885
    %v4238 = vpack.c.b16 %v3894, %v3890
    %v4239 = vpack.c.b16 %v3895, %v3891
    %v4240 = vpack.c.b16 %v3896, %v3892
    %v4241 = vpack.c.b16 %v3897, %v3893
    %v4242 = vpack.c.b16 %v3902, %v3898
    %v4243 = vpack.c.b16 %v3903, %v3899
    %v4244 = vpack.c.b16 %v3904, %v3900
    %v4245 = vpack.c.b16 %v3905, %v3901
    %v4246 = vpack.c.b16 %v3910, %v3906
    %v4247 = vpack.c.b16 %v3911, %v3907
    %v4248 = vpack.c.b16 %v3912, %v3908
    %v4249 = vpack.c.b16 %v3913, %v3909
    %v4250 = vpack.c.b16 %v3918, %v3914
    %v4251 = vpack.c.b16 %v3919, %v3915
    %v4252 = vpack.c.b16 %v3920, %v3916
    %v4253 = vpack.c.b16 %v3921, %v3917
    %v4254 = vpack.c.b16 %v3926, %v3922
    %v4255 = vpack.c.b16 %v3927, %v3923
    %v4256 = vpack.c.b16 %v3928, %v3924
    %v4257 = vpack.c.b16 %v3929, %v3925
    %v4258 = vpack.c.b16 %v3934, %v3930
    %v4259 = vpack.c.b16 %v3935, %v3931
    %v4260 = vpack.c.b16 %v3936, %v3932
    %v4261 = vpack.c.b16 %v3937, %v3933
    %v4262 = vpack.c.b16 %v3942, %v3938
    %v4263 = vpack.c.b16 %v3943, %v3939
    %v4264 = vpack.c.b16 %v3944, %v3940
    %v4265 = vpack.c.b16 %v3945, %v3941
    %v4266 = vpack.c.b16 %v3950, %v3946
    %v4267 = vpack.c.b16 %v3951, %v3947
    %v4268 = vpack.c.b16 %v3952, %v3948
    %v4269 = vpack.c.b16 %v3953, %v3949
    %v4270 = vpack.c.b16 %v3958, %v3954
    %v4271 = vpack.c.b16 %v3959, %v3955
    %v4272 = vpack.c.b16 %v3960, %v3956
    %v4273 = vpack.c.b16 %v3961, %v3957
    %v4274 = vpack.c.b16 %v3966, %v3962
    %v4275 = vpack.c.b16 %v3967, %v3963
    %v4276 = vpack.c.b16 %v3968, %v3964
    %v4277 = vpack.c.b16 %v3969, %v3965
    %v4278 = vpack.c.b16 %v3974, %v3970
    %v4279 = vpack.c.b16 %v3975, %v3971
    %v4280 = vpack.c.b16 %v3976, %v3972
    %v4281 = vpack.c.b16 %v3977, %v3973
    %v4282 = vpack.c.b16 %v3982, %v3978
    %v4283 = vpack.c.b16 %v3983, %v3979
    %v4284 = vpack.c.b16 %v3984, %v3980
    %v4285 = vpack.c.b16 %v3985, %v3981
    %v4286 = vpack.c.b16 %v3990, %v3986
    %v4287 = vpack.c.b16 %v3991, %v3987
    %v4288 = vpack.c.b16 %v3992, %v3988
    %v4289 = vpack.c.b16 %v3993, %v3989
    %v4290 = vpack.c.b16 %v3998, %v3994
    %v4291 = vpack.c.b16 %v3999, %v3995
    %v4292 = vpack.c.b16 %v4000, %v3996
    %v4293 = vpack.c.b16 %v4001, %v3997
    %v4294 = vpack.c.b16 %v4006, %v4002
    %v4295 = vpack.c.b16 %v4007, %v4003
    %v4296 = vpack.c.b16 %v4008, %v4004
    %v4297 = vpack.c.b16 %v4009, %v4005
    %v4298 = vpack.c.b16 %v4014, %v4010
    %v4299 = vpack.c.b16 %v4015, %v4011
    %v4300 = vpack.c.b16 %v4016, %v4012
    %v4301 = vpack.c.b16 %v4017, %v4013
    %v4302 = vpack.c.b16 %v4022, %v4018
    %v4303 = vpack.c.b16 %v4023, %v4019
    %v4304 = vpack.c.b16 %v4024, %v4020
    %v4305 = vpack.c.b16 %v4025, %v4021
    %v4306 = vpack.c.b16 %v4030, %v4026
    %v4307 = vpack.c.b16 %v4031, %v4027
    %v4308 = vpack.c.b16 %v4032, %v4028
    %v4309 = vpack.c.b16 %v4033, %v4029
    %v4310 = vpack.c.b16 %v4038, %v4034
    %v4311 = vpack.c.b16 %v4039, %v4035
    %v4312 = vpack.c.b16 %v4040, %v4036
    %v4313 = vpack.c.b16 %v4041, %v4037
    %v4314 = vpack.c.b16 %v4046, %v4042
    %v4315 = vpack.c.b16 %v4047, %v4043
    %v4316 = vpack.c.b16 %v4048, %v4044
    %v4317 = vpack.c.b16 %v4049, %v4045
    %v4318 = vpack.c.b16 %v4054, %v4050
    %v4319 = vpack.c.b16 %v4055, %v4051
    %v4320 = vpack.c.b16 %v4056, %v4052
    %v4321 = vpack.c.b16 %v4057, %v4053
    %v4322 = vpack.c.b16 %v4062, %v4058
    %v4323 = vpack.c.b16 %v4063, %v4059
    %v4324 = vpack.c.b16 %v4064, %v4060
    %v4325 = vpack.c.b16 %v4065, %v4061
    %v4326 = vpack.c.b16 %v4070, %v4066
    %v4327 = vpack.c.b16 %v4071, %v4067
    %v4328 = vpack.c.b16 %v4072, %v4068
    %v4329 = vpack.c.b16 %v4073, %v4069
    %4586 = vmatprep.subr.bf16.mxu0 %v4075
    %4587 = vmatpush1.bf16.msra.mxu0 %v4074
    %4588 = vmatprep.subr.bf16.mxu0 %v4079
    %4589 = vmatpush1.bf16.msra.mxu0 %v4078
    %4590 = vmatprep.subr.bf16.mxu0 %v4083
    %4591 = vmatpush1.bf16.msra.mxu0 %v4082
    %4592 = vmatprep.subr.bf16.mxu0 %v4087
    %4593 = vmatpush1.bf16.msra.mxu0 %v4086
    %4594 = vmatprep.subr.bf16.mxu0 %v4091
    %4595 = vmatpush1.bf16.msra.mxu0 %v4090
    %4596 = vmatprep.subr.bf16.mxu0 %v4095
    %4597 = vmatpush1.bf16.msra.mxu0 %v4094
    %4598 = vmatprep.subr.bf16.mxu0 %v4099
    %4599 = vmatpush1.bf16.msra.mxu0 %v4098
    %4600 = vmatprep.subr.bf16.mxu0 %v4103
    %4601 = vmatpush1.bf16.msra.mxu0 %v4102
    %4602 = vmatprep.subr.bf16.mxu0 %v4107
    %4603 = vmatpush1.bf16.msra.mxu0 %v4106
    %4604 = vmatprep.subr.bf16.mxu0 %v4111
    %4605 = vmatpush1.bf16.msra.mxu0 %v4110
    %4606 = vmatprep.subr.bf16.mxu0 %v4115
    %4607 = vmatpush1.bf16.msra.mxu0 %v4114
    %4608 = vmatprep.subr.bf16.mxu0 %v4119
    %4609 = vmatpush1.bf16.msra.mxu0 %v4118
    %4610 = vmatprep.subr.bf16.mxu0 %v4123
    %4611 = vmatpush1.bf16.msra.mxu0 %v4122
    %4612 = vmatprep.subr.bf16.mxu0 %v4127
    %4613 = vmatpush1.bf16.msra.mxu0 %v4126
    %4614 = vmatprep.subr.bf16.mxu0 %v4131
    %4615 = vmatpush1.bf16.msra.mxu0 %v4130
    %4616 = vmatprep.subr.bf16.mxu0 %v4135
    %4617 = vmatpush1.bf16.msra.mxu0 %v4134
    %4618 = vmatprep.mubr.bf16.mxu0 %v3021
    %4619 = vmatmul.mubr.bf16.gmra.mrb[0].mxu0 %v3020
    %v4620 = vpop.f32.mrb[0].mxu0
    %v4621 = vadd.f32 %v3289, %v4620
    %v4622 = vpop.f32.mrb[0].mxu0
    %v4623 = vadd.f32 %v3293, %v4622
    %v4624 = vpop.f32.mrb[0].mxu0
    %v4625 = vadd.f32 %v3289, %v4624
    %v4626 = vpop.f32.mrb[0].mxu0
    %v4627 = vadd.f32 %v3293, %v4626
    %4628 = vdwg.mxu0
    %4629 = vmatprep.subr.bf16.mxu0 %v4139
    %4630 = vmatpush1.bf16.msra.mxu0 %v4138
    %4631 = vmatprep.subr.bf16.mxu0 %v4143
    %4632 = vmatpush1.bf16.msra.mxu0 %v4142
    %4633 = vmatprep.subr.bf16.mxu0 %v4147
    %4634 = vmatpush1.bf16.msra.mxu0 %v4146
    %4635 = vmatprep.subr.bf16.mxu0 %v4151
    %4636 = vmatpush1.bf16.msra.mxu0 %v4150
    %4637 = vmatprep.subr.bf16.mxu0 %v4155
    %4638 = vmatpush1.bf16.msra.mxu0 %v4154
    %4639 = vmatprep.subr.bf16.mxu0 %v4159
    %4640 = vmatpush1.bf16.msra.mxu0 %v4158
    %4641 = vmatprep.subr.bf16.mxu0 %v4163
    %4642 = vmatpush1.bf16.msra.mxu0 %v4162
    %4643 = vmatprep.subr.bf16.mxu0 %v4167
    %4644 = vmatpush1.bf16.msra.mxu0 %v4166
    %4645 = vmatprep.subr.bf16.mxu0 %v4171
    %4646 = vmatpush1.bf16.msra.mxu0 %v4170
    %4647 = vmatprep.subr.bf16.mxu0 %v4175
    %4648 = vmatpush1.bf16.msra.mxu0 %v4174
    %4649 = vmatprep.subr.bf16.mxu0 %v4179
    %4650 = vmatpush1.bf16.msra.mxu0 %v4178
    %4651 = vmatprep.subr.bf16.mxu0 %v4183
    %4652 = vmatpush1.bf16.msra.mxu0 %v4182
    %4653 = vmatprep.subr.bf16.mxu0 %v4187
    %4654 = vmatpush1.bf16.msra.mxu0 %v4186
    %4655 = vmatprep.subr.bf16.mxu0 %v4191
    %4656 = vmatpush1.bf16.msra.mxu0 %v4190
    %4657 = vmatprep.subr.bf16.mxu0 %v4195
    %4658 = vmatpush1.bf16.msra.mxu0 %v4194
    %4659 = vmatprep.subr.bf16.mxu0 %v4199
    %4660 = vmatpush1.bf16.msra.mxu0 %v4198
    %4661 = vmatprep.mubr.bf16.mxu0 %v3023
    %4662 = vmatmul.mubr.bf16.gmra.mrb[0].mxu0 %v3022
    %v4663 = vpop.f32.mrb[0].mxu0
    %v4664 = vadd.f32 %v4621, %v4663
    %v4665 = vpop.f32.mrb[0].mxu0
    %v4666 = vadd.f32 %v4623, %v4665
    %v4667 = vpop.f32.mrb[0].mxu0
    %v4668 = vadd.f32 %v4625, %v4667
    %v4669 = vpop.f32.mrb[0].mxu0
    %v4670 = vadd.f32 %v4627, %v4669
    %4671 = vdwg.mxu0
    %4672 = vmatprep.subr.bf16.mxu0 %v4203
    %4673 = vmatpush1.bf16.msra.mxu0 %v4202
    %4674 = vmatprep.subr.bf16.mxu0 %v4207
    %4675 = vmatpush1.bf16.msra.mxu0 %v4206
    %4676 = vmatprep.subr.bf16.mxu0 %v4211
    %4677 = vmatpush1.bf16.msra.mxu0 %v4210
    %4678 = vmatprep.subr.bf16.mxu0 %v4215
    %4679 = vmatpush1.bf16.msra.mxu0 %v4214
    %4680 = vmatprep.subr.bf16.mxu0 %v4219
    %4681 = vmatpush1.bf16.msra.mxu0 %v4218
    %4682 = vmatprep.subr.bf16.mxu0 %v4223
    %4683 = vmatpush1.bf16.msra.mxu0 %v4222
    %4684 = vmatprep.subr.bf16.mxu0 %v4227
    %4685 = vmatpush1.bf16.msra.mxu0 %v4226
    %4686 = vmatprep.subr.bf16.mxu0 %v4231
    %4687 = vmatpush1.bf16.msra.mxu0 %v4230
    %4688 = vmatprep.subr.bf16.mxu0 %v4235
    %4689 = vmatpush1.bf16.msra.mxu0 %v4234
    %4690 = vmatprep.subr.bf16.mxu0 %v4239
    %4691 = vmatpush1.bf16.msra.mxu0 %v4238
    %4692 = vmatprep.subr.bf16.mxu0 %v4243
    %4693 = vmatpush1.bf16.msra.mxu0 %v4242
    %4694 = vmatprep.subr.bf16.mxu0 %v4247
    %4695 = vmatpush1.bf16.msra.mxu0 %v4246
    %4696 = vmatprep.subr.bf16.mxu0 %v4251
    %4697 = vmatpush1.bf16.msra.mxu0 %v4250
    %4698 = vmatprep.subr.bf16.mxu0 %v4255
    %4699 = vmatpush1.bf16.msra.mxu0 %v4254
    %4700 = vmatprep.subr.bf16.mxu0 %v4259
    %4701 = vmatpush1.bf16.msra.mxu0 %v4258
    %4702 = vmatprep.subr.bf16.mxu0 %v4263
    %4703 = vmatpush1.bf16.msra.mxu0 %v4262
    %4704 = vmatprep.mubr.bf16.mxu0 %v3025
    %4705 = vmatmul.mubr.bf16.gmra.mrb[0].mxu0 %v3024
    %v4706 = vpop.f32.mrb[0].mxu0
    %v4707 = vadd.f32 %v4664, %v4706
    %v4708 = vpop.f32.mrb[0].mxu0
    %v4709 = vadd.f32 %v4666, %v4708
    %v4710 = vpop.f32.mrb[0].mxu0
    %v4711 = vadd.f32 %v4668, %v4710
    %v4712 = vpop.f32.mrb[0].mxu0
    %v4713 = vadd.f32 %v4670, %v4712
    %4714 = vdwg.mxu0
    %4715 = vmatprep.subr.bf16.mxu0 %v4267
    %4716 = vmatpush1.bf16.msra.mxu0 %v4266
    %4717 = vmatprep.subr.bf16.mxu0 %v4271
    %4718 = vmatpush1.bf16.msra.mxu0 %v4270
    %4719 = vmatprep.subr.bf16.mxu0 %v4275
    %4720 = vmatpush1.bf16.msra.mxu0 %v4274
    %4721 = vmatprep.subr.bf16.mxu0 %v4279
    %4722 = vmatpush1.bf16.msra.mxu0 %v4278
    %4723 = vmatprep.subr.bf16.mxu0 %v4283
    %4724 = vmatpush1.bf16.msra.mxu0 %v4282
    %4725 = vmatprep.subr.bf16.mxu0 %v4287
    %4726 = vmatpush1.bf16.msra.mxu0 %v4286
    %4727 = vmatprep.subr.bf16.mxu0 %v4291
    %4728 = vmatpush1.bf16.msra.mxu0 %v4290
    %4729 = vmatprep.subr.bf16.mxu0 %v4295
    %4730 = vmatpush1.bf16.msra.mxu0 %v4294
    %4731 = vmatprep.subr.bf16.mxu0 %v4299
    %4732 = vmatpush1.bf16.msra.mxu0 %v4298
    %4733 = vmatprep.subr.bf16.mxu0 %v4303
    %4734 = vmatpush1.bf16.msra.mxu0 %v4302
    %4735 = vmatprep.subr.bf16.mxu0 %v4307
    %4736 = vmatpush1.bf16.msra.mxu0 %v4306
    %4737 = vmatprep.subr.bf16.mxu0 %v4311
    %4738 = vmatpush1.bf16.msra.mxu0 %v4310
    %4739 = vmatprep.subr.bf16.mxu0 %v4315
    %4740 = vmatpush1.bf16.msra.mxu0 %v4314
    %4741 = vmatprep.subr.bf16.mxu0 %v4319
    %4742 = vmatpush1.bf16.msra.mxu0 %v4318
    %4743 = vmatprep.subr.bf16.mxu0 %v4323
    %4744 = vmatpush1.bf16.msra.mxu0 %v4322
    %4745 = vmatprep.subr.bf16.mxu0 %v4327
    %4746 = vmatpush1.bf16.msra.mxu0 %v4326
    %4747 = vmatprep.mubr.bf16.mxu0 %v3027
    %4748 = vmatmul.mubr.bf16.gmra.mrb[0].mxu0 %v3026
    %v4749 = vpop.f32.mrb[0].mxu0
    %v4750 = vadd.f32 %v4707, %v4749
    %v4751 = vpop.f32.mrb[0].mxu0
    %v4752 = vadd.f32 %v4709, %v4751
    %v4753 = vpop.f32.mrb[0].mxu0
    %v4754 = vadd.f32 %v4711, %v4753
    %v4755 = vpop.f32.mrb[0].mxu0
    %v4756 = vadd.f32 %v4713, %v4755
    %4757 = vdwg.mxu0
    %4758 = vmatprep.subr.bf16.mxu0 %v4077
    %4759 = vmatpush1.bf16.msra.mxu0 %v4076
    %4760 = vmatprep.subr.bf16.mxu0 %v4081
    %4761 = vmatpush1.bf16.msra.mxu0 %v4080
    %4762 = vmatprep.subr.bf16.mxu0 %v4085
    %4763 = vmatpush1.bf16.msra.mxu0 %v4084
    %4764 = vmatprep.subr.bf16.mxu0 %v4089
    %4765 = vmatpush1.bf16.msra.mxu0 %v4088
    %4766 = vmatprep.subr.bf16.mxu0 %v4093
    %4767 = vmatpush1.bf16.msra.mxu0 %v4092
    %4768 = vmatprep.subr.bf16.mxu0 %v4097
    %4769 = vmatpush1.bf16.msra.mxu0 %v4096
    %4770 = vmatprep.subr.bf16.mxu0 %v4101
    %4771 = vmatpush1.bf16.msra.mxu0 %v4100
    %4772 = vmatprep.subr.bf16.mxu0 %v4105
    %4773 = vmatpush1.bf16.msra.mxu0 %v4104
    %4774 = vmatprep.subr.bf16.mxu0 %v4109
    %4775 = vmatpush1.bf16.msra.mxu0 %v4108
    %4776 = vmatprep.subr.bf16.mxu0 %v4113
    %4777 = vmatpush1.bf16.msra.mxu0 %v4112
    %4778 = vmatprep.subr.bf16.mxu0 %v4117
    %4779 = vmatpush1.bf16.msra.mxu0 %v4116
    %4780 = vmatprep.subr.bf16.mxu0 %v4121
    %4781 = vmatpush1.bf16.msra.mxu0 %v4120
    %4782 = vmatprep.subr.bf16.mxu0 %v4125
    %4783 = vmatpush1.bf16.msra.mxu0 %v4124
    %4784 = vmatprep.subr.bf16.mxu0 %v4129
    %4785 = vmatpush1.bf16.msra.mxu0 %v4128
    %4786 = vmatprep.subr.bf16.mxu0 %v4133
    %4787 = vmatpush1.bf16.msra.mxu0 %v4132
    %4788 = vmatprep.subr.bf16.mxu0 %v4137
    %4789 = vmatpush1.bf16.msra.mxu0 %v4136
    %4790 = vmatprep.mubr.bf16.mxu0 %v3021
    %4791 = vmatmul.mubr.bf16.gmra.mrb[0].mxu0 %v3020
    %v4792 = vpop.f32.mrb[0].mxu0
    %v4793 = vadd.f32 %v3297, %v4792
    %v4794 = vpop.f32.mrb[0].mxu0
    %v4795 = vadd.f32 %v3301, %v4794
    %v4796 = vpop.f32.mrb[0].mxu0
    %v4797 = vadd.f32 %v3297, %v4796
    %v4798 = vpop.f32.mrb[0].mxu0
    %v4799 = vadd.f32 %v3301, %v4798
    %4800 = vdwg.mxu0
    %4801 = vmatprep.subr.bf16.mxu0 %v4141
    %4802 = vmatpush1.bf16.msra.mxu0 %v4140
    %4803 = vmatprep.subr.bf16.mxu0 %v4145
    %4804 = vmatpush1.bf16.msra.mxu0 %v4144
    %4805 = vmatprep.subr.bf16.mxu0 %v4149
    %4806 = vmatpush1.bf16.msra.mxu0 %v4148
    %4807 = vmatprep.subr.bf16.mxu0 %v4153
    %4808 = vmatpush1.bf16.msra.mxu0 %v4152
    %4809 = vmatprep.subr.bf16.mxu0 %v4157
    %4810 = vmatpush1.bf16.msra.mxu0 %v4156
    %4811 = vmatprep.subr.bf16.mxu0 %v4161
    %4812 = vmatpush1.bf16.msra.mxu0 %v4160
    %4813 = vmatprep.subr.bf16.mxu0 %v4165
    %4814 = vmatpush1.bf16.msra.mxu0 %v4164
    %4815 = vmatprep.subr.bf16.mxu0 %v4169
    %4816 = vmatpush1.bf16.msra.mxu0 %v4168
    %4817 = vmatprep.subr.bf16.mxu0 %v4173
    %4818 = vmatpush1.bf16.msra.mxu0 %v4172
    %4819 = vmatprep.subr.bf16.mxu0 %v4177
    %4820 = vmatpush1.bf16.msra.mxu0 %v4176
    %4821 = vmatprep.subr.bf16.mxu0 %v4181
    %4822 = vmatpush1.bf16.msra.mxu0 %v4180
    %4823 = vmatprep.subr.bf16.mxu0 %v4185
    %4824 = vmatpush1.bf16.msra.mxu0 %v4184
    %4825 = vmatprep.subr.bf16.mxu0 %v4189
    %4826 = vmatpush1.bf16.msra.mxu0 %v4188
    %4827 = vmatprep.subr.bf16.mxu0 %v4193
    %4828 = vmatpush1.bf16.msra.mxu0 %v4192
    %4829 = vmatprep.subr.bf16.mxu0 %v4197
    %4830 = vmatpush1.bf16.msra.mxu0 %v4196
    %4831 = vmatprep.subr.bf16.mxu0 %v4201
    %4832 = vmatpush1.bf16.msra.mxu0 %v4200
    %4833 = vmatprep.mubr.bf16.mxu0 %v3023
    %4834 = vmatmul.mubr.bf16.gmra.mrb[0].mxu0 %v3022
    %v4835 = vpop.f32.mrb[0].mxu0
    %v4836 = vadd.f32 %v4793, %v4835
    %v4837 = vpop.f32.mrb[0].mxu0
    %v4838 = vadd.f32 %v4795, %v4837
    %v4839 = vpop.f32.mrb[0].mxu0
    %v4840 = vadd.f32 %v4797, %v4839
    %v4841 = vpop.f32.mrb[0].mxu0
    %v4842 = vadd.f32 %v4799, %v4841
    %4843 = vdwg.mxu0
    %4844 = vmatprep.subr.bf16.mxu0 %v4205
    %4845 = vmatpush1.bf16.msra.mxu0 %v4204
    %4846 = vmatprep.subr.bf16.mxu0 %v4209
    %4847 = vmatpush1.bf16.msra.mxu0 %v4208
    %4848 = vmatprep.subr.bf16.mxu0 %v4213
    %4849 = vmatpush1.bf16.msra.mxu0 %v4212
    %4850 = vmatprep.subr.bf16.mxu0 %v4217
    %4851 = vmatpush1.bf16.msra.mxu0 %v4216
    %4852 = vmatprep.subr.bf16.mxu0 %v4221
    %4853 = vmatpush1.bf16.msra.mxu0 %v4220
    %4854 = vmatprep.subr.bf16.mxu0 %v4225
    %4855 = vmatpush1.bf16.msra.mxu0 %v4224
    %4856 = vmatprep.subr.bf16.mxu0 %v4229
    %4857 = vmatpush1.bf16.msra.mxu0 %v4228
    %4858 = vmatprep.subr.bf16.mxu0 %v4233
    %4859 = vmatpush1.bf16.msra.mxu0 %v4232
    %4860 = vmatprep.subr.bf16.mxu0 %v4237
    %4861 = vmatpush1.bf16.msra.mxu0 %v4236
    %4862 = vmatprep.subr.bf16.mxu0 %v4241
    %4863 = vmatpush1.bf16.msra.mxu0 %v4240
    %4864 = vmatprep.subr.bf16.mxu0 %v4245
    %4865 = vmatpush1.bf16.msra.mxu0 %v4244
    %4866 = vmatprep.subr.bf16.mxu0 %v4249
    %4867 = vmatpush1.bf16.msra.mxu0 %v4248
    %4868 = vmatprep.subr.bf16.mxu0 %v4253
    %4869 = vmatpush1.bf16.msra.mxu0 %v4252
    %4870 = vmatprep.subr.bf16.mxu0 %v4257
    %4871 = vmatpush1.bf16.msra.mxu0 %v4256
    %4872 = vmatprep.subr.bf16.mxu0 %v4261
    %4873 = vmatpush1.bf16.msra.mxu0 %v4260
    %4874 = vmatprep.subr.bf16.mxu0 %v4265
    %4875 = vmatpush1.bf16.msra.mxu0 %v4264
    %4876 = vmatprep.mubr.bf16.mxu0 %v3025
    %4877 = vmatmul.mubr.bf16.gmra.mrb[0].mxu0 %v3024
    %v4878 = vpop.f32.mrb[0].mxu0
    %v4879 = vadd.f32 %v4836, %v4878
    %v4880 = vpop.f32.mrb[0].mxu0
    %v4881 = vadd.f32 %v4838, %v4880
    %v4882 = vpop.f32.mrb[0].mxu0
    %v4883 = vadd.f32 %v4840, %v4882
    %v4884 = vpop.f32.mrb[0].mxu0
    %v4885 = vadd.f32 %v4842, %v4884
    %4886 = vdwg.mxu0
    %4887 = vmatprep.subr.bf16.mxu0 %v4269
    %4888 = vmatpush1.bf16.msra.mxu0 %v4268
    %4889 = vmatprep.subr.bf16.mxu0 %v4273
    %4890 = vmatpush1.bf16.msra.mxu0 %v4272
    %4891 = vmatprep.subr.bf16.mxu0 %v4277
    %4892 = vmatpush1.bf16.msra.mxu0 %v4276
    %4893 = vmatprep.subr.bf16.mxu0 %v4281
    %4894 = vmatpush1.bf16.msra.mxu0 %v4280
    %4895 = vmatprep.subr.bf16.mxu0 %v4285
    %4896 = vmatpush1.bf16.msra.mxu0 %v4284
    %4897 = vmatprep.subr.bf16.mxu0 %v4289
    %4898 = vmatpush1.bf16.msra.mxu0 %v4288
    %4899 = vmatprep.subr.bf16.mxu0 %v4293
    %4900 = vmatpush1.bf16.msra.mxu0 %v4292
    %4901 = vmatprep.subr.bf16.mxu0 %v4297
    %4902 = vmatpush1.bf16.msra.mxu0 %v4296
    %4903 = vmatprep.subr.bf16.mxu0 %v4301
    %4904 = vmatpush1.bf16.msra.mxu0 %v4300
    %4905 = vmatprep.subr.bf16.mxu0 %v4305
    %4906 = vmatpush1.bf16.msra.mxu0 %v4304
    %4907 = vmatprep.subr.bf16.mxu0 %v4309
    %4908 = vmatpush1.bf16.msra.mxu0 %v4308
    %4909 = vmatprep.subr.bf16.mxu0 %v4313
    %4910 = vmatpush1.bf16.msra.mxu0 %v4312
    %4911 = vmatprep.subr.bf16.mxu0 %v4317
    %4912 = vmatpush1.bf16.msra.mxu0 %v4316
    %4913 = vmatprep.subr.bf16.mxu0 %v4321
    %4914 = vmatpush1.bf16.msra.mxu0 %v4320
    %4915 = vmatprep.subr.bf16.mxu0 %v4325
    %4916 = vmatpush1.bf16.msra.mxu0 %v4324
    %4917 = vmatprep.subr.bf16.mxu0 %v4329
    %4918 = vmatpush1.bf16.msra.mxu0 %v4328
    %4919 = vmatprep.mubr.bf16.mxu0 %v3027
    %4920 = vmatmul.mubr.bf16.gmra.mrb[0].mxu0 %v3026
    %v4921 = vpop.f32.mrb[0].mxu0
    %v4922 = vadd.f32 %v4879, %v4921
    %v4923 = vpop.f32.mrb[0].mxu0
    %v4924 = vadd.f32 %v4881, %v4923
    %v4925 = vpop.f32.mrb[0].mxu0
    %v4926 = vadd.f32 %v4883, %v4925
    %v4927 = vpop.f32.mrb[0].mxu0
    %v4928 = vadd.f32 %v4885, %v4927
    %4929 = vdwg.mxu0
    %v4930 = vmax.f32 %v4750, 0.0
    %v4931 = vmax.f32 %v4752, 0.0
    %v4932 = vmax.f32 %v4922, 0.0
    %v4933 = vmax.f32 %v4924, 0.0
    %v4934 = vmax.f32 %v4754, 0.0
    %v4935 = vmax.f32 %v4756, 0.0
    %v4936 = vmax.f32 %v4926, 0.0
    %v4937 = vmax.f32 %v4928, 0.0
    %v4938 = vpack.c.bf16 %v4934, %v4930
    %v4939 = vpack.c.bf16 %v4935, %v4931
    %v4940 = vpack.c.bf16 %v4936, %v4932
    %v4941 = vpack.c.bf16 %v4937, %v4933
    %v4942 = vld [vmem:[#allocation20] sm:$0xff]
    %v4943 = vld [vmem:[#allocation20 + $0x8] sm:$0xff]
    %v4944 = vld [vmem:[#allocation20 + $0x10] sm:$0xff]
    %v4945 = vld [vmem:[#allocation20 + $0x18] sm:$0xff]
    %v4946 = vld [vmem:[#allocation20 + $0x20] sm:$0xff]
    %v4947 = vld [vmem:[#allocation20 + $0x28] sm:$0xff]
    %v4948 = vld [vmem:[#allocation20 + $0x30] sm:$0xff]
    %v4949 = vld [vmem:[#allocation20 + $0x38] sm:$0xff]
    %v4950 = vld [vmem:[#allocation20 + $0x40] sm:$0xff]
    %v4951 = vld [vmem:[#allocation20 + $0x48] sm:$0xff]
    %v4952 = vld [vmem:[#allocation20 + $0x50] sm:$0xff]
    %v4953 = vld [vmem:[#allocation20 + $0x58] sm:$0xff]
    %v4954 = vld [vmem:[#allocation20 + $0x60] sm:$0xff]
    %v4955 = vld [vmem:[#allocation20 + $0x68] sm:$0xff]
    %v4956 = vld [vmem:[#allocation20 + $0x70] sm:$0xff]
    %v4957 = vld [vmem:[#allocation20 + $0x78] sm:$0xff]
    %v4958 = vld [vmem:[#allocation20 + $0x80] sm:$0xff]
    %v4959 = vld [vmem:[#allocation20 + $0x88] sm:$0xff]
    %v4960 = vld [vmem:[#allocation20 + $0x90] sm:$0xff]
    %v4961 = vld [vmem:[#allocation20 + $0x98] sm:$0xff]
    %v4962 = vld [vmem:[#allocation20 + $0xa0] sm:$0xff]
    %v4963 = vld [vmem:[#allocation20 + $0xa8] sm:$0xff]
    %v4964 = vld [vmem:[#allocation20 + $0xb0] sm:$0xff]
    %v4965 = vld [vmem:[#allocation20 + $0xb8] sm:$0xff]
    %v4966 = vld [vmem:[#allocation20 + $0xc0] sm:$0xff]
    %v4967 = vld [vmem:[#allocation20 + $0xc8] sm:$0xff]
    %v4968 = vld [vmem:[#allocation20 + $0xd0] sm:$0xff]
    %v4969 = vld [vmem:[#allocation20 + $0xd8] sm:$0xff]
    %v4970 = vld [vmem:[#allocation20 + $0xe0] sm:$0xff]
    %v4971 = vld [vmem:[#allocation20 + $0xe8] sm:$0xff]
    %v4972 = vld [vmem:[#allocation20 + $0xf0] sm:$0xff]
    %v4973 = vld [vmem:[#allocation20 + $0xf8] sm:$0xff]
    %v4974 = vld [vmem:[#allocation20 + $0x100] sm:$0xff]
    %v4975 = vld [vmem:[#allocation20 + $0x108] sm:$0xff]
    %v4976 = vld [vmem:[#allocation20 + $0x110] sm:$0xff]
    %v4977 = vld [vmem:[#allocation20 + $0x118] sm:$0xff]
    %v4978 = vld [vmem:[#allocation20 + $0x120] sm:$0xff]
    %v4979 = vld [vmem:[#allocation20 + $0x128] sm:$0xff]
    %v4980 = vld [vmem:[#allocation20 + $0x130] sm:$0xff]
    %v4981 = vld [vmem:[#allocation20 + $0x138] sm:$0xff]
    %v4982 = vld [vmem:[#allocation20 + $0x140] sm:$0xff]
    %v4983 = vld [vmem:[#allocation20 + $0x148] sm:$0xff]
    %v4984 = vld [vmem:[#allocation20 + $0x150] sm:$0xff]
    %v4985 = vld [vmem:[#allocation20 + $0x158] sm:$0xff]
    %v4986 = vld [vmem:[#allocation20 + $0x160] sm:$0xff]
    %v4987 = vld [vmem:[#allocation20 + $0x168] sm:$0xff]
    %v4988 = vld [vmem:[#allocation20 + $0x170] sm:$0xff]
    %v4989 = vld [vmem:[#allocation20 + $0x178] sm:$0xff]
    %v4990 = vld [vmem:[#allocation20 + $0x180] sm:$0xff]
    %v4991 = vld [vmem:[#allocation20 + $0x188] sm:$0xff]
    %v4992 = vld [vmem:[#allocation20 + $0x190] sm:$0xff]
    %v4993 = vld [vmem:[#allocation20 + $0x198] sm:$0xff]
    %v4994 = vld [vmem:[#allocation20 + $0x1a0] sm:$0xff]
    %v4995 = vld [vmem:[#allocation20 + $0x1a8] sm:$0xff]
    %v4996 = vld [vmem:[#allocation20 + $0x1b0] sm:$0xff]
    %v4997 = vld [vmem:[#allocation20 + $0x1b8] sm:$0xff]
    %v4998 = vld [vmem:[#allocation20 + $0x1c0] sm:$0xff]
    %v4999 = vld [vmem:[#allocation20 + $0x1c8] sm:$0xff]
    %v5000 = vld [vmem:[#allocation20 + $0x1d0] sm:$0xff]
    %v5001 = vld [vmem:[#allocation20 + $0x1d8] sm:$0xff]
    %v5002 = vld [vmem:[#allocation20 + $0x1e0] sm:$0xff]
    %v5003 = vld [vmem:[#allocation20 + $0x1e8] sm:$0xff]
    %v5004 = vld [vmem:[#allocation20 + $0x1f0] sm:$0xff]
    %v5005 = vld [vmem:[#allocation20 + $0x1f8] sm:$0xff]
    %v5006 = vld [vmem:[#allocation22] sm:$0x3]
    %v5008 = vlaneseq
    %v5009 = vshrl.u32 %v5008, 7
    %v5010 = vsub.s32 0, %v5009
    %v5011 = vrot.slane %v5006, %v5010
    %v5012 = vlaneseq
    %v5013 = vshrl.u32 %v5012, 7
    %v5014 = vsub.s32 1, %v5013
    %v5015 = vrot.slane %v5006, %v5014
    %v5082 = vunpack.c.l.b16 %v4942
    %v5083 = vunpack.c.h.b16 %v4942
    %v5084 = vunpack.c.l.b16 %v4943
    %v5085 = vunpack.c.h.b16 %v4943
    %v5086 = vunpack.c.l.b16 %v4944
    %v5087 = vunpack.c.h.b16 %v4944
    %v5088 = vunpack.c.l.b16 %v4945
    %v5089 = vunpack.c.h.b16 %v4945
    %v5090 = vunpack.c.l.b16 %v4946
    %v5091 = vunpack.c.h.b16 %v4946
    %v5092 = vunpack.c.l.b16 %v4947
    %v5093 = vunpack.c.h.b16 %v4947
    %v5094 = vunpack.c.l.b16 %v4948
    %v5095 = vunpack.c.h.b16 %v4948
    %v5096 = vunpack.c.l.b16 %v4949
    %v5097 = vunpack.c.h.b16 %v4949
    %v5098 = vunpack.c.l.b16 %v4950
    %v5099 = vunpack.c.h.b16 %v4950
    %v5100 = vunpack.c.l.b16 %v4951
    %v5101 = vunpack.c.h.b16 %v4951
    %v5102 = vunpack.c.l.b16 %v4952
    %v5103 = vunpack.c.h.b16 %v4952
    %v5104 = vunpack.c.l.b16 %v4953
    %v5105 = vunpack.c.h.b16 %v4953
    %v5106 = vunpack.c.l.b16 %v4954
    %v5107 = vunpack.c.h.b16 %v4954
    %v5108 = vunpack.c.l.b16 %v4955
    %v5109 = vunpack.c.h.b16 %v4955
    %v5110 = vunpack.c.l.b16 %v4956
    %v5111 = vunpack.c.h.b16 %v4956
    %v5112 = vunpack.c.l.b16 %v4957
    %v5113 = vunpack.c.h.b16 %v4957
    %v5114 = vunpack.c.l.b16 %v4958
    %v5115 = vunpack.c.h.b16 %v4958
    %v5116 = vunpack.c.l.b16 %v4959
    %v5117 = vunpack.c.h.b16 %v4959
    %v5118 = vunpack.c.l.b16 %v4960
    %v5119 = vunpack.c.h.b16 %v4960
    %v5120 = vunpack.c.l.b16 %v4961
    %v5121 = vunpack.c.h.b16 %v4961
    %v5122 = vunpack.c.l.b16 %v4962
    %v5123 = vunpack.c.h.b16 %v4962
    %v5124 = vunpack.c.l.b16 %v4963
    %v5125 = vunpack.c.h.b16 %v4963
    %v5126 = vunpack.c.l.b16 %v4964
    %v5127 = vunpack.c.h.b16 %v4964
    %v5128 = vunpack.c.l.b16 %v4965
    %v5129 = vunpack.c.h.b16 %v4965
    %v5130 = vunpack.c.l.b16 %v4966
    %v5131 = vunpack.c.h.b16 %v4966
    %v5132 = vunpack.c.l.b16 %v4967
    %v5133 = vunpack.c.h.b16 %v4967
    %v5134 = vunpack.c.l.b16 %v4968
    %v5135 = vunpack.c.h.b16 %v4968
    %v5136 = vunpack.c.l.b16 %v4969
    %v5137 = vunpack.c.h.b16 %v4969
    %v5138 = vunpack.c.l.b16 %v4970
    %v5139 = vunpack.c.h.b16 %v4970
    %v5140 = vunpack.c.l.b16 %v4971
    %v5141 = vunpack.c.h.b16 %v4971
    %v5142 = vunpack.c.l.b16 %v4972
    %v5143 = vunpack.c.h.b16 %v4972
    %v5144 = vunpack.c.l.b16 %v4973
    %v5145 = vunpack.c.h.b16 %v4973
    %v5146 = vunpack.c.l.b16 %v4974
    %v5147 = vunpack.c.h.b16 %v4974
    %v5148 = vunpack.c.l.b16 %v4975
    %v5149 = vunpack.c.h.b16 %v4975
    %v5150 = vunpack.c.l.b16 %v4976
    %v5151 = vunpack.c.h.b16 %v4976
    %v5152 = vunpack.c.l.b16 %v4977
    %v5153 = vunpack.c.h.b16 %v4977
    %v5154 = vunpack.c.l.b16 %v4978
    %v5155 = vunpack.c.h.b16 %v4978
    %v5156 = vunpack.c.l.b16 %v4979
    %v5157 = vunpack.c.h.b16 %v4979
    %v5158 = vunpack.c.l.b16 %v4980
    %v5159 = vunpack.c.h.b16 %v4980
    %v5160 = vunpack.c.l.b16 %v4981
    %v5161 = vunpack.c.h.b16 %v4981
    %v5162 = vunpack.c.l.b16 %v4982
    %v5163 = vunpack.c.h.b16 %v4982
    %v5164 = vunpack.c.l.b16 %v4983
    %v5165 = vunpack.c.h.b16 %v4983
    %v5166 = vunpack.c.l.b16 %v4984
    %v5167 = vunpack.c.h.b16 %v4984
    %v5168 = vunpack.c.l.b16 %v4985
    %v5169 = vunpack.c.h.b16 %v4985
    %v5170 = vunpack.c.l.b16 %v4986
    %v5171 = vunpack.c.h.b16 %v4986
    %v5172 = vunpack.c.l.b16 %v4987
    %v5173 = vunpack.c.h.b16 %v4987
    %v5174 = vunpack.c.l.b16 %v4988
    %v5175 = vunpack.c.h.b16 %v4988
    %v5176 = vunpack.c.l.b16 %v4989
    %v5177 = vunpack.c.h.b16 %v4989
    %v5178 = vunpack.c.l.b16 %v4990
    %v5179 = vunpack.c.h.b16 %v4990
    %v5180 = vunpack.c.l.b16 %v4991
    %v5181 = vunpack.c.h.b16 %v4991
    %v5182 = vunpack.c.l.b16 %v4992
    %v5183 = vunpack.c.h.b16 %v4992
    %v5184 = vunpack.c.l.b16 %v4993
    %v5185 = vunpack.c.h.b16 %v4993
    %v5186 = vunpack.c.l.b16 %v4994
    %v5187 = vunpack.c.h.b16 %v4994
    %v5188 = vunpack.c.l.b16 %v4995
    %v5189 = vunpack.c.h.b16 %v4995
    %v5190 = vunpack.c.l.b16 %v4996
    %v5191 = vunpack.c.h.b16 %v4996
    %v5192 = vunpack.c.l.b16 %v4997
    %v5193 = vunpack.c.h.b16 %v4997
    %v5194 = vunpack.c.l.b16 %v4998
    %v5195 = vunpack.c.h.b16 %v4998
    %v5196 = vunpack.c.l.b16 %v4999
    %v5197 = vunpack.c.h.b16 %v4999
    %v5198 = vunpack.c.l.b16 %v5000
    %v5199 = vunpack.c.h.b16 %v5000
    %v5200 = vunpack.c.l.b16 %v5001
    %v5201 = vunpack.c.h.b16 %v5001
    %v5202 = vunpack.c.l.b16 %v5002
    %v5203 = vunpack.c.h.b16 %v5002
    %v5204 = vunpack.c.l.b16 %v5003
    %v5205 = vunpack.c.h.b16 %v5003
    %v5206 = vunpack.c.l.b16 %v5004
    %v5207 = vunpack.c.h.b16 %v5004
    %v5208 = vunpack.c.l.b16 %v5005
    %v5209 = vunpack.c.h.b16 %v5005
    %v5210 = vpack.c.b16 %v5084, %v5082
    %v5211 = vpack.c.b16 %v5085, %v5083
    %v5212 = vpack.c.b16 %v5088, %v5086
    %v5213 = vpack.c.b16 %v5089, %v5087
    %v5214 = vpack.c.b16 %v5092, %v5090
    %v5215 = vpack.c.b16 %v5093, %v5091
    %v5216 = vpack.c.b16 %v5096, %v5094
    %v5217 = vpack.c.b16 %v5097, %v5095
    %v5218 = vpack.c.b16 %v5100, %v5098
    %v5219 = vpack.c.b16 %v5101, %v5099
    %v5220 = vpack.c.b16 %v5104, %v5102
    %v5221 = vpack.c.b16 %v5105, %v5103
    %v5222 = vpack.c.b16 %v5108, %v5106
    %v5223 = vpack.c.b16 %v5109, %v5107
    %v5224 = vpack.c.b16 %v5112, %v5110
    %v5225 = vpack.c.b16 %v5113, %v5111
    %v5226 = vpack.c.b16 %v5116, %v5114
    %v5227 = vpack.c.b16 %v5117, %v5115
    %v5228 = vpack.c.b16 %v5120, %v5118
    %v5229 = vpack.c.b16 %v5121, %v5119
    %v5230 = vpack.c.b16 %v5124, %v5122
    %v5231 = vpack.c.b16 %v5125, %v5123
    %v5232 = vpack.c.b16 %v5128, %v5126
    %v5233 = vpack.c.b16 %v5129, %v5127
    %v5234 = vpack.c.b16 %v5132, %v5130
    %v5235 = vpack.c.b16 %v5133, %v5131
    %v5236 = vpack.c.b16 %v5136, %v5134
    %v5237 = vpack.c.b16 %v5137, %v5135
    %v5238 = vpack.c.b16 %v5140, %v5138
    %v5239 = vpack.c.b16 %v5141, %v5139
    %v5240 = vpack.c.b16 %v5144, %v5142
    %v5241 = vpack.c.b16 %v5145, %v5143
    %v5242 = vpack.c.b16 %v5148, %v5146
    %v5243 = vpack.c.b16 %v5149, %v5147
    %v5244 = vpack.c.b16 %v5152, %v5150
    %v5245 = vpack.c.b16 %v5153, %v5151
    %v5246 = vpack.c.b16 %v5156, %v5154
    %v5247 = vpack.c.b16 %v5157, %v5155
    %v5248 = vpack.c.b16 %v5160, %v5158
    %v5249 = vpack.c.b16 %v5161, %v5159
    %v5250 = vpack.c.b16 %v5164, %v5162
    %v5251 = vpack.c.b16 %v5165, %v5163
    %v5252 = vpack.c.b16 %v5168, %v5166
    %v5253 = vpack.c.b16 %v5169, %v5167
    %v5254 = vpack.c.b16 %v5172, %v5170
    %v5255 = vpack.c.b16 %v5173, %v5171
    %v5256 = vpack.c.b16 %v5176, %v5174
    %v5257 = vpack.c.b16 %v5177, %v5175
    %v5258 = vpack.c.b16 %v5180, %v5178
    %v5259 = vpack.c.b16 %v5181, %v5179
    %v5260 = vpack.c.b16 %v5184, %v5182
    %v5261 = vpack.c.b16 %v5185, %v5183
    %v5262 = vpack.c.b16 %v5188, %v5186
    %v5263 = vpack.c.b16 %v5189, %v5187
    %v5264 = vpack.c.b16 %v5192, %v5190
    %v5265 = vpack.c.b16 %v5193, %v5191
    %v5266 = vpack.c.b16 %v5196, %v5194
    %v5267 = vpack.c.b16 %v5197, %v5195
    %v5268 = vpack.c.b16 %v5200, %v5198
    %v5269 = vpack.c.b16 %v5201, %v5199
    %v5270 = vpack.c.b16 %v5204, %v5202
    %v5271 = vpack.c.b16 %v5205, %v5203
    %v5272 = vpack.c.b16 %v5208, %v5206
    %v5273 = vpack.c.b16 %v5209, %v5207
    %5338 = vmatprep.subr.bf16.mxu0 %v5211
    %5339 = vmatpush1.bf16.msra.mxu0 %v5210
    %5340 = vmatprep.subr.bf16.mxu0 %v5213
    %5341 = vmatpush1.bf16.msra.mxu0 %v5212
    %5342 = vmatprep.subr.bf16.mxu0 %v5215
    %5343 = vmatpush1.bf16.msra.mxu0 %v5214
    %5344 = vmatprep.subr.bf16.mxu0 %v5217
    %5345 = vmatpush1.bf16.msra.mxu0 %v5216
    %5346 = vmatprep.subr.bf16.mxu0 %v5219
    %5347 = vmatpush1.bf16.msra.mxu0 %v5218
    %5348 = vmatprep.subr.bf16.mxu0 %v5221
    %5349 = vmatpush1.bf16.msra.mxu0 %v5220
    %5350 = vmatprep.subr.bf16.mxu0 %v5223
    %5351 = vmatpush1.bf16.msra.mxu0 %v5222
    %5352 = vmatprep.subr.bf16.mxu0 %v5225
    %5353 = vmatpush1.bf16.msra.mxu0 %v5224
    %5354 = vmatprep.subr.bf16.mxu0 %v5227
    %5355 = vmatpush1.bf16.msra.mxu0 %v5226
    %5356 = vmatprep.subr.bf16.mxu0 %v5229
    %5357 = vmatpush1.bf16.msra.mxu0 %v5228
    %5358 = vmatprep.subr.bf16.mxu0 %v5231
    %5359 = vmatpush1.bf16.msra.mxu0 %v5230
    %5360 = vmatprep.subr.bf16.mxu0 %v5233
    %5361 = vmatpush1.bf16.msra.mxu0 %v5232
    %5362 = vmatprep.subr.bf16.mxu0 %v5235
    %5363 = vmatpush1.bf16.msra.mxu0 %v5234
    %5364 = vmatprep.subr.bf16.mxu0 %v5237
    %5365 = vmatpush1.bf16.msra.mxu0 %v5236
    %5366 = vmatprep.subr.bf16.mxu0 %v5239
    %5367 = vmatpush1.bf16.msra.mxu0 %v5238
    %5368 = vmatprep.subr.bf16.mxu0 %v5241
    %5369 = vmatpush1.bf16.msra.mxu0 %v5240
    %5370 = vmatprep.mubr.bf16.mxu0 %v4939
    %5371 = vmatmul.mubr.bf16.gmra.mrb[0].mxu0 %v4938
    %v5372 = vpop.f32.mrb[0].mxu0
    %v5373 = vadd.f32 %v5011, %v5372
    %v5374 = vpop.f32.mrb[0].mxu0
    %v5375 = vadd.f32 %v5015, %v5374
    %v5376 = vpop.f32.mrb[0].mxu0
    %v5377 = vadd.f32 %v5011, %v5376
    %v5378 = vpop.f32.mrb[0].mxu0
    %v5379 = vadd.f32 %v5015, %v5378
    %5380 = vdwg.mxu0
    %5381 = vmatprep.subr.bf16.mxu0 %v5243
    %5382 = vmatpush1.bf16.msra.mxu0 %v5242
    %5383 = vmatprep.subr.bf16.mxu0 %v5245
    %5384 = vmatpush1.bf16.msra.mxu0 %v5244
    %5385 = vmatprep.subr.bf16.mxu0 %v5247
    %5386 = vmatpush1.bf16.msra.mxu0 %v5246
    %5387 = vmatprep.subr.bf16.mxu0 %v5249
    %5388 = vmatpush1.bf16.msra.mxu0 %v5248
    %5389 = vmatprep.subr.bf16.mxu0 %v5251
    %5390 = vmatpush1.bf16.msra.mxu0 %v5250
    %5391 = vmatprep.subr.bf16.mxu0 %v5253
    %5392 = vmatpush1.bf16.msra.mxu0 %v5252
    %5393 = vmatprep.subr.bf16.mxu0 %v5255
    %5394 = vmatpush1.bf16.msra.mxu0 %v5254
    %5395 = vmatprep.subr.bf16.mxu0 %v5257
    %5396 = vmatpush1.bf16.msra.mxu0 %v5256
    %5397 = vmatprep.subr.bf16.mxu0 %v5259
    %5398 = vmatpush1.bf16.msra.mxu0 %v5258
    %5399 = vmatprep.subr.bf16.mxu0 %v5261
    %5400 = vmatpush1.bf16.msra.mxu0 %v5260
    %5401 = vmatprep.subr.bf16.mxu0 %v5263
    %5402 = vmatpush1.bf16.msra.mxu0 %v5262
    %5403 = vmatprep.subr.bf16.mxu0 %v5265
    %5404 = vmatpush1.bf16.msra.mxu0 %v5264
    %5405 = vmatprep.subr.bf16.mxu0 %v5267
    %5406 = vmatpush1.bf16.msra.mxu0 %v5266
    %5407 = vmatprep.subr.bf16.mxu0 %v5269
    %5408 = vmatpush1.bf16.msra.mxu0 %v5268
    %5409 = vmatprep.subr.bf16.mxu0 %v5271
    %5410 = vmatpush1.bf16.msra.mxu0 %v5270
    %5411 = vmatprep.subr.bf16.mxu0 %v5273
    %5412 = vmatpush1.bf16.msra.mxu0 %v5272
    %5413 = vmatprep.mubr.bf16.mxu0 %v4941
    %5414 = vmatmul.mubr.bf16.gmra.mrb[0].mxu0 %v4940
    %v5415 = vpop.f32.mrb[0].mxu0
    %v5416 = vadd.f32 %v5373, %v5415
    %v5417 = vpop.f32.mrb[0].mxu0
    %v5418 = vadd.f32 %v5375, %v5417
    %v5419 = vpop.f32.mrb[0].mxu0
    %v5420 = vadd.f32 %v5377, %v5419
    %v5421 = vpop.f32.mrb[0].mxu0
    %v5422 = vadd.f32 %v5379, %v5421
    %5423 = vdwg.mxu0
    %v5424 = vmax.f32 %v5416, 0.0
    %v5425 = vmax.f32 %v5418, 0.0
    %v5426 = vmax.f32 %v5420, 0.0
    %v5427 = vmax.f32 %v5422, 0.0
    %v5428 = vpack.c.bf16 %v5426, %v5424
    %v5429 = vpack.c.bf16 %v5427, %v5425
    %v5430 = vld [vmem:[#allocation23] sm:$0xff]
    %v5431 = vld [vmem:[#allocation23 + $0x8] sm:$0xff]
    %v5432 = vld [vmem:[#allocation23 + $0x10] sm:$0xff]
    %v5433 = vld [vmem:[#allocation23 + $0x18] sm:$0xff]
    %v5434 = vld [vmem:[#allocation23 + $0x20] sm:$0xff]
    %v5435 = vld [vmem:[#allocation23 + $0x28] sm:$0xff]
    %v5436 = vld [vmem:[#allocation23 + $0x30] sm:$0xff]
    %v5437 = vld [vmem:[#allocation23 + $0x38] sm:$0xff]
    %v5438 = vld [vmem:[#allocation23 + $0x40] sm:$0xff]
    %v5439 = vld [vmem:[#allocation23 + $0x48] sm:$0xff]
    %v5440 = vld [vmem:[#allocation23 + $0x50] sm:$0xff]
    %v5441 = vld [vmem:[#allocation23 + $0x58] sm:$0xff]
    %v5442 = vld [vmem:[#allocation23 + $0x60] sm:$0xff]
    %v5443 = vld [vmem:[#allocation23 + $0x68] sm:$0xff]
    %v5444 = vld [vmem:[#allocation23 + $0x70] sm:$0xff]
    %v5445 = vld [vmem:[#allocation23 + $0x78] sm:$0xff]
    %v5446 = vld [vmem:[#allocation23 + $0x80] sm:$0xff]
    %v5447 = vld [vmem:[#allocation23 + $0x88] sm:$0xff]
    %v5448 = vld [vmem:[#allocation23 + $0x90] sm:$0xff]
    %v5449 = vld [vmem:[#allocation23 + $0x98] sm:$0xff]
    %v5450 = vld [vmem:[#allocation23 + $0xa0] sm:$0xff]
    %v5451 = vld [vmem:[#allocation23 + $0xa8] sm:$0xff]
    %v5452 = vld [vmem:[#allocation23 + $0xb0] sm:$0xff]
    %v5453 = vld [vmem:[#allocation23 + $0xb8] sm:$0xff]
    %v5454 = vld [vmem:[#allocation23 + $0xc0] sm:$0xff]
    %v5455 = vld [vmem:[#allocation23 + $0xc8] sm:$0xff]
    %v5456 = vld [vmem:[#allocation23 + $0xd0] sm:$0xff]
    %v5457 = vld [vmem:[#allocation23 + $0xd8] sm:$0xff]
    %v5458 = vld [vmem:[#allocation23 + $0xe0] sm:$0xff]
    %v5459 = vld [vmem:[#allocation23 + $0xe8] sm:$0xff]
    %v5460 = vld [vmem:[#allocation23 + $0xf0] sm:$0xff]
    %v5461 = vld [vmem:[#allocation23 + $0xf8] sm:$0xff]
    %v5462 = vld [vmem:[#allocation25] sm:$0x3]
    %v5464 = vlaneseq
    %v5465 = vshrl.u32 %v5464, 7
    %v5466 = vsub.s32 0, %v5465
    %v5467 = vrot.slane %v5462, %v5466
    %v5468 = vlaneseq
    %v5469 = vshrl.u32 %v5468, 7
    %v5470 = vsub.s32 1, %v5469
    %v5471 = vrot.slane %v5462, %v5470
    %v5506 = vunpack.c.l.b16 %v5430
    %v5507 = vunpack.c.h.b16 %v5430
    %v5508 = vunpack.c.l.b16 %v5431
    %v5509 = vunpack.c.h.b16 %v5431
    %v5510 = vunpack.c.l.b16 %v5432
    %v5511 = vunpack.c.h.b16 %v5432
    %v5512 = vunpack.c.l.b16 %v5433
    %v5513 = vunpack.c.h.b16 %v5433
    %v5514 = vunpack.c.l.b16 %v5434
    %v5515 = vunpack.c.h.b16 %v5434
    %v5516 = vunpack.c.l.b16 %v5435
    %v5517 = vunpack.c.h.b16 %v5435
    %v5518 = vunpack.c.l.b16 %v5436
    %v5519 = vunpack.c.h.b16 %v5436
    %v5520 = vunpack.c.l.b16 %v5437
    %v5521 = vunpack.c.h.b16 %v5437
    %v5522 = vunpack.c.l.b16 %v5438
    %v5523 = vunpack.c.h.b16 %v5438
    %v5524 = vunpack.c.l.b16 %v5439
    %v5525 = vunpack.c.h.b16 %v5439
    %v5526 = vunpack.c.l.b16 %v5440
    %v5527 = vunpack.c.h.b16 %v5440
    %v5528 = vunpack.c.l.b16 %v5441
    %v5529 = vunpack.c.h.b16 %v5441
    %v5530 = vunpack.c.l.b16 %v5442
    %v5531 = vunpack.c.h.b16 %v5442
    %v5532 = vunpack.c.l.b16 %v5443
    %v5533 = vunpack.c.h.b16 %v5443
    %v5534 = vunpack.c.l.b16 %v5444
    %v5535 = vunpack.c.h.b16 %v5444
    %v5536 = vunpack.c.l.b16 %v5445
    %v5537 = vunpack.c.h.b16 %v5445
    %v5538 = vunpack.c.l.b16 %v5446
    %v5539 = vunpack.c.h.b16 %v5446
    %v5540 = vunpack.c.l.b16 %v5447
    %v5541 = vunpack.c.h.b16 %v5447
    %v5542 = vunpack.c.l.b16 %v5448
    %v5543 = vunpack.c.h.b16 %v5448
    %v5544 = vunpack.c.l.b16 %v5449
    %v5545 = vunpack.c.h.b16 %v5449
    %v5546 = vunpack.c.l.b16 %v5450
    %v5547 = vunpack.c.h.b16 %v5450
    %v5548 = vunpack.c.l.b16 %v5451
    %v5549 = vunpack.c.h.b16 %v5451
    %v5550 = vunpack.c.l.b16 %v5452
    %v5551 = vunpack.c.h.b16 %v5452
    %v5552 = vunpack.c.l.b16 %v5453
    %v5553 = vunpack.c.h.b16 %v5453
    %v5554 = vunpack.c.l.b16 %v5454
    %v5555 = vunpack.c.h.b16 %v5454
    %v5556 = vunpack.c.l.b16 %v5455
    %v5557 = vunpack.c.h.b16 %v5455
    %v5558 = vunpack.c.l.b16 %v5456
    %v5559 = vunpack.c.h.b16 %v5456
    %v5560 = vunpack.c.l.b16 %v5457
    %v5561 = vunpack.c.h.b16 %v5457
    %v5562 = vunpack.c.l.b16 %v5458
    %v5563 = vunpack.c.h.b16 %v5458
    %v5564 = vunpack.c.l.b16 %v5459
    %v5565 = vunpack.c.h.b16 %v5459
    %v5566 = vunpack.c.l.b16 %v5460
    %v5567 = vunpack.c.h.b16 %v5460
    %v5568 = vunpack.c.l.b16 %v5461
    %v5569 = vunpack.c.h.b16 %v5461
    %v5570 = vpack.c.b16 %v5508, %v5506
    %v5571 = vpack.c.b16 %v5509, %v5507
    %v5572 = vpack.c.b16 %v5512, %v5510
    %v5573 = vpack.c.b16 %v5513, %v5511
    %v5574 = vpack.c.b16 %v5516, %v5514
    %v5575 = vpack.c.b16 %v5517, %v5515
    %v5576 = vpack.c.b16 %v5520, %v5518
    %v5577 = vpack.c.b16 %v5521, %v5519
    %v5578 = vpack.c.b16 %v5524, %v5522
    %v5579 = vpack.c.b16 %v5525, %v5523
    %v5580 = vpack.c.b16 %v5528, %v5526
    %v5581 = vpack.c.b16 %v5529, %v5527
    %v5582 = vpack.c.b16 %v5532, %v5530
    %v5583 = vpack.c.b16 %v5533, %v5531
    %v5584 = vpack.c.b16 %v5536, %v5534
    %v5585 = vpack.c.b16 %v5537, %v5535
    %v5586 = vpack.c.b16 %v5540, %v5538
    %v5587 = vpack.c.b16 %v5541, %v5539
    %v5588 = vpack.c.b16 %v5544, %v5542
    %v5589 = vpack.c.b16 %v5545, %v5543
    %v5590 = vpack.c.b16 %v5548, %v5546
    %v5591 = vpack.c.b16 %v5549, %v5547
    %v5592 = vpack.c.b16 %v5552, %v5550
    %v5593 = vpack.c.b16 %v5553, %v5551
    %v5594 = vpack.c.b16 %v5556, %v5554
    %v5595 = vpack.c.b16 %v5557, %v5555
    %v5596 = vpack.c.b16 %v5560, %v5558
    %v5597 = vpack.c.b16 %v5561, %v5559
    %v5598 = vpack.c.b16 %v5564, %v5562
    %v5599 = vpack.c.b16 %v5565, %v5563
    %v5600 = vpack.c.b16 %v5568, %v5566
    %v5601 = vpack.c.b16 %v5569, %v5567
    %5634 = vmatprep.subr.bf16.mxu0 %v5571
    %5635 = vmatpush1.bf16.msra.mxu0 %v5570
    %5636 = vmatprep.subr.bf16.mxu0 %v5573
    %5637 = vmatpush1.bf16.msra.mxu0 %v5572
    %5638 = vmatprep.subr.bf16.mxu0 %v5575
    %5639 = vmatpush1.bf16.msra.mxu0 %v5574
    %5640 = vmatprep.subr.bf16.mxu0 %v5577
    %5641 = vmatpush1.bf16.msra.mxu0 %v5576
    %5642 = vmatprep.subr.bf16.mxu0 %v5579
    %5643 = vmatpush1.bf16.msra.mxu0 %v5578
    %5644 = vmatprep.subr.bf16.mxu0 %v5581
    %5645 = vmatpush1.bf16.msra.mxu0 %v5580
    %5646 = vmatprep.subr.bf16.mxu0 %v5583
    %5647 = vmatpush1.bf16.msra.mxu0 %v5582
    %5648 = vmatprep.subr.bf16.mxu0 %v5585
    %5649 = vmatpush1.bf16.msra.mxu0 %v5584
    %5650 = vmatprep.subr.bf16.mxu0 %v5587
    %5651 = vmatpush1.bf16.msra.mxu0 %v5586
    %5652 = vmatprep.subr.bf16.mxu0 %v5589
    %5653 = vmatpush1.bf16.msra.mxu0 %v5588
    %5654 = vmatprep.subr.bf16.mxu0 %v5591
    %5655 = vmatpush1.bf16.msra.mxu0 %v5590
    %5656 = vmatprep.subr.bf16.mxu0 %v5593
    %5657 = vmatpush1.bf16.msra.mxu0 %v5592
    %5658 = vmatprep.subr.bf16.mxu0 %v5595
    %5659 = vmatpush1.bf16.msra.mxu0 %v5594
    %5660 = vmatprep.subr.bf16.mxu0 %v5597
    %5661 = vmatpush1.bf16.msra.mxu0 %v5596
    %5662 = vmatprep.subr.bf16.mxu0 %v5599
    %5663 = vmatpush1.bf16.msra.mxu0 %v5598
    %5664 = vmatprep.subr.bf16.mxu0 %v5601
    %5665 = vmatpush1.bf16.msra.mxu0 %v5600
    %5666 = vmatprep.mubr.bf16.mxu0 %v5429
    %5667 = vmatmul.mubr.bf16.gmra.mrb[0].mxu0 %v5428
    %v5668 = vpop.f32.mrb[0].mxu0
    %v5669 = vadd.f32 %v5467, %v5668
    %v5670 = vpop.f32.mrb[0].mxu0
    %v5671 = vadd.f32 %v5471, %v5670
    %v5672 = vpop.f32.mrb[0].mxu0
    %v5673 = vadd.f32 %v5467, %v5672
    %v5674 = vpop.f32.mrb[0].mxu0
    %v5675 = vadd.f32 %v5471, %v5674
    %5676 = vdwg.mxu0
    %v5677 = vmax.f32 %v5669, 0.0
    %v5678 = vmax.f32 %v5671, 0.0
    %v5679 = vmax.f32 %v5673, 0.0
    %v5680 = vmax.f32 %v5675, 0.0
    %v5681 = vpack.c.bf16 %v5679, %v5677
    %v5682 = vpack.c.bf16 %v5680, %v5678
    %v5683 = vld [vmem:[#allocation26] sm:$0xf]
    %v5684 = vld [vmem:[#allocation26 + $0x4] sm:$0xf]
    %v5685 = vld [vmem:[#allocation26 + $0x8] sm:$0xf]
    %v5686 = vld [vmem:[#allocation26 + $0xc] sm:$0xf]
    %v5687 = vld [vmem:[#allocation26 + $0x10] sm:$0xf]
    %v5688 = vld [vmem:[#allocation26 + $0x14] sm:$0xf]
    %v5689 = vld [vmem:[#allocation26 + $0x18] sm:$0xf]
    %v5690 = vld [vmem:[#allocation26 + $0x1c] sm:$0xf]
    %v5691 = vld [vmem:[#allocation26 + $0x20] sm:$0xf]
    %v5692 = vld [vmem:[#allocation26 + $0x24] sm:$0xf]
    %v5693 = vld [vmem:[#allocation26 + $0x28] sm:$0xf]
    %v5694 = vld [vmem:[#allocation26 + $0x2c] sm:$0xf]
    %v5695 = vld [vmem:[#allocation26 + $0x30] sm:$0xf]
    %v5696 = vld [vmem:[#allocation26 + $0x34] sm:$0xf]
    %v5697 = vld [vmem:[#allocation26 + $0x38] sm:$0xf]
    %v5698 = vld [vmem:[#allocation26 + $0x3c] sm:$0xf]
    %v5699 = vld [vmem:[#allocation26 + $0x40] sm:$0xf]
    %v5700 = vld [vmem:[#allocation26 + $0x44] sm:$0xf]
    %v5701 = vld [vmem:[#allocation26 + $0x48] sm:$0xf]
    %v5702 = vld [vmem:[#allocation26 + $0x4c] sm:$0xf]
    %v5703 = vld [vmem:[#allocation26 + $0x50] sm:$0xf]
    %v5704 = vld [vmem:[#allocation26 + $0x54] sm:$0xf]
    %v5705 = vld [vmem:[#allocation26 + $0x58] sm:$0xf]
    %v5706 = vld [vmem:[#allocation26 + $0x5c] sm:$0xf]
    %v5707 = vld [vmem:[#allocation26 + $0x60] sm:$0xf]
    %v5708 = vld [vmem:[#allocation26 + $0x64] sm:$0xf]
    %v5709 = vld [vmem:[#allocation26 + $0x68] sm:$0xf]
    %v5710 = vld [vmem:[#allocation26 + $0x6c] sm:$0xf]
    %v5711 = vld [vmem:[#allocation26 + $0x70] sm:$0xf]
    %v5712 = vld [vmem:[#allocation26 + $0x74] sm:$0xf]
    %v5713 = vld [vmem:[#allocation26 + $0x78] sm:$0xf]
    %v5714 = vld [vmem:[#allocation26 + $0x7c] sm:$0xf]
    %v5715 = vld [vmem:[#allocation28] sm:$0x1]
    %v5717 = vlaneseq
    %v5718 = vshrl.u32 %v5717, 7
    %v5719 = vsub.s32 0, %v5718
    %v5720 = vrot.slane %v5715, %v5719
    %v5754 = vunpack.c.l.b16 %v5683
    %v5755 = vunpack.c.l.b16 %v5684
    %v5756 = vunpack.c.l.b16 %v5685
    %v5757 = vunpack.c.l.b16 %v5686
    %v5758 = vunpack.c.l.b16 %v5687
    %v5759 = vunpack.c.l.b16 %v5688
    %v5760 = vunpack.c.l.b16 %v5689
    %v5761 = vunpack.c.l.b16 %v5690
    %v5762 = vunpack.c.l.b16 %v5691
    %v5763 = vunpack.c.l.b16 %v5692
    %v5764 = vunpack.c.l.b16 %v5693
    %v5765 = vunpack.c.l.b16 %v5694
    %v5766 = vunpack.c.l.b16 %v5695
    %v5767 = vunpack.c.l.b16 %v5696
    %v5768 = vunpack.c.l.b16 %v5697
    %v5769 = vunpack.c.l.b16 %v5698
    %v5770 = vunpack.c.l.b16 %v5699
    %v5771 = vunpack.c.l.b16 %v5700
    %v5772 = vunpack.c.l.b16 %v5701
    %v5773 = vunpack.c.l.b16 %v5702
    %v5774 = vunpack.c.l.b16 %v5703
    %v5775 = vunpack.c.l.b16 %v5704
    %v5776 = vunpack.c.l.b16 %v5705
    %v5777 = vunpack.c.l.b16 %v5706
    %v5778 = vunpack.c.l.b16 %v5707
    %v5779 = vunpack.c.l.b16 %v5708
    %v5780 = vunpack.c.l.b16 %v5709
    %v5781 = vunpack.c.l.b16 %v5710
    %v5782 = vunpack.c.l.b16 %v5711
    %v5783 = vunpack.c.l.b16 %v5712
    %v5784 = vunpack.c.l.b16 %v5713
    %v5785 = vunpack.c.l.b16 %v5714
    %v5786 = vpack.c.b16 %v5755, %v5754
    %v5787 = vpack.c.b16 %v5757, %v5756
    %v5788 = vpack.c.b16 %v5759, %v5758
    %v5789 = vpack.c.b16 %v5761, %v5760
    %v5790 = vpack.c.b16 %v5763, %v5762
    %v5791 = vpack.c.b16 %v5765, %v5764
    %v5792 = vpack.c.b16 %v5767, %v5766
    %v5793 = vpack.c.b16 %v5769, %v5768
    %v5794 = vpack.c.b16 %v5771, %v5770
    %v5795 = vpack.c.b16 %v5773, %v5772
    %v5796 = vpack.c.b16 %v5775, %v5774
    %v5797 = vpack.c.b16 %v5777, %v5776
    %v5798 = vpack.c.b16 %v5779, %v5778
    %v5799 = vpack.c.b16 %v5781, %v5780
    %v5800 = vpack.c.b16 %v5783, %v5782
    %v5801 = vpack.c.b16 %v5785, %v5784
    %5818 = vmatprep.subr.bf16.mxu0 0
    %5819 = vmatpush1.bf16.msra.mxu0 %v5786
    %5820 = vmatprep.subr.bf16.mxu0 0
    %5821 = vmatpush1.bf16.msra.mxu0 %v5787
    %5822 = vmatprep.subr.bf16.mxu0 0
    %5823 = vmatpush1.bf16.msra.mxu0 %v5788
    %5824 = vmatprep.subr.bf16.mxu0 0
    %5825 = vmatpush1.bf16.msra.mxu0 %v5789
    %5826 = vmatprep.subr.bf16.mxu0 0
    %5827 = vmatpush1.bf16.msra.mxu0 %v5790
    %5828 = vmatprep.subr.bf16.mxu0 0
    %5829 = vmatpush1.bf16.msra.mxu0 %v5791
    %5830 = vmatprep.subr.bf16.mxu0 0
    %5831 = vmatpush1.bf16.msra.mxu0 %v5792
    %5832 = vmatprep.subr.bf16.mxu0 0
    %5833 = vmatpush1.bf16.msra.mxu0 %v5793
    %5834 = vmatprep.subr.bf16.mxu0 0
    %5835 = vmatpush1.bf16.msra.mxu0 %v5794
    %5836 = vmatprep.subr.bf16.mxu0 0
    %5837 = vmatpush1.bf16.msra.mxu0 %v5795
    %5838 = vmatprep.subr.bf16.mxu0 0
    %5839 = vmatpush1.bf16.msra.mxu0 %v5796
    %5840 = vmatprep.subr.bf16.mxu0 0
    %5841 = vmatpush1.bf16.msra.mxu0 %v5797
    %5842 = vmatprep.subr.bf16.mxu0 0
    %5843 = vmatpush1.bf16.msra.mxu0 %v5798
    %5844 = vmatprep.subr.bf16.mxu0 0
    %5845 = vmatpush1.bf16.msra.mxu0 %v5799
    %5846 = vmatprep.subr.bf16.mxu0 0
    %5847 = vmatpush1.bf16.msra.mxu0 %v5800
    %5848 = vmatprep.subr.bf16.mxu0 0
    %5849 = vmatpush1.bf16.msra.mxu0 %v5801
    %5850 = vmatprep.mubr.bf16.mxu0 %v5682
    %5851 = vmatmul.mubr.bf16.gmra.mrb[0].mxu0 %v5681
    %v5852 = vpop.f32.mrb[0].mxu0
    %v5853 = vadd.f32 %v5720, %v5852
    %v5854 = vpop.f32.mrb[0].mxu0
    %v5855 = vpop.f32.mrb[0].mxu0
    %v5856 = vadd.f32 %v5720, %v5855
    %v5857 = vpop.f32.mrb[0].mxu0
    %5858 = vdwg.mxu0
    %v5859 = vmax.f32 %v5853, 0.0
    %v5860 = vmax.f32 %v5856, 0.0
    %v5861 = vpack.c.bf16 %v5860, %v5859
    %v5862 = vld [vmem:[%s17] sm:$0xf]
    %v5863 = vld [vmem:[%s17 + $0x4] sm:$0xf]
    %v5864 = vld [vmem:[%s17 + $0x8] sm:$0xf]
    %v5865 = vld [vmem:[%s17 + $0xc] sm:$0xf]
    %v5866 = vld [vmem:[%s17 + $0x10] sm:$0xf]
    %v5867 = vld [vmem:[%s17 + $0x14] sm:$0xf]
    %v5868 = vld [vmem:[%s17 + $0x18] sm:$0xf]
    %v5869 = vld [vmem:[%s17 + $0x1c] sm:$0xf]
    %v5870 = vld [vmem:[%s17 + $0x20] sm:$0xf]
    %v5871 = vld [vmem:[%s17 + $0x24] sm:$0xf]
    %v5872 = vld [vmem:[%s17 + $0x28] sm:$0xf]
    %v5873 = vld [vmem:[%s17 + $0x2c] sm:$0xf]
    %v5874 = vld [vmem:[%s17 + $0x30] sm:$0xf]
    %v5875 = vld [vmem:[%s17 + $0x34] sm:$0xf]
    %v5876 = vld [vmem:[%s17 + $0x38] sm:$0xf]
    %v5877 = vld [vmem:[%s17 + $0x3c] sm:$0xf]
    %v5878 = vld [vmem:[%s18] sm:$0x1]
    %v5880 = vlaneseq
    %v5881 = vshrl.u32 %v5880, 7
    %v5882 = vsub.s32 0, %v5881
    %v5883 = vrot.slane %v5878, %v5882
    %v5901 = vunpack.c.l.b16 %v5862
    %v5902 = vunpack.c.l.b16 %v5863
    %v5903 = vunpack.c.l.b16 %v5864
    %v5904 = vunpack.c.l.b16 %v5865
    %v5905 = vunpack.c.l.b16 %v5866
    %v5906 = vunpack.c.l.b16 %v5867
    %v5907 = vunpack.c.l.b16 %v5868
    %v5908 = vunpack.c.l.b16 %v5869
    %v5909 = vunpack.c.l.b16 %v5870
    %v5910 = vunpack.c.l.b16 %v5871
    %v5911 = vunpack.c.l.b16 %v5872
    %v5912 = vunpack.c.l.b16 %v5873
    %v5913 = vunpack.c.l.b16 %v5874
    %v5914 = vunpack.c.l.b16 %v5875
    %v5915 = vunpack.c.l.b16 %v5876
    %v5916 = vunpack.c.l.b16 %v5877
    %v5917 = vpack.c.b16 %v5902, %v5901
    %v5918 = vpack.c.b16 %v5904, %v5903
    %v5919 = vpack.c.b16 %v5906, %v5905
    %v5920 = vpack.c.b16 %v5908, %v5907
    %v5921 = vpack.c.b16 %v5910, %v5909
    %v5922 = vpack.c.b16 %v5912, %v5911
    %v5923 = vpack.c.b16 %v5914, %v5913
    %v5924 = vpack.c.b16 %v5916, %v5915
    %5933 = vmatprep.subr.bf16.mxu0 0
    %5934 = vmatpush1.bf16.msra.mxu0 %v5917
    %5935 = vmatprep.subr.bf16.mxu0 0
    %5936 = vmatpush1.bf16.msra.mxu0 %v5918
    %5937 = vmatprep.subr.bf16.mxu0 0
    %5938 = vmatpush1.bf16.msra.mxu0 %v5919
    %5939 = vmatprep.subr.bf16.mxu0 0
    %5940 = vmatpush1.bf16.msra.mxu0 %v5920
    %5941 = vmatprep.subr.bf16.mxu0 0
    %5942 = vmatpush1.bf16.msra.mxu0 %v5921
    %5943 = vmatprep.subr.bf16.mxu0 0
    %5944 = vmatpush1.bf16.msra.mxu0 %v5922
    %5945 = vmatprep.subr.bf16.mxu0 0
    %5946 = vmatpush1.bf16.msra.mxu0 %v5923
    %5947 = vmatprep.subr.bf16.mxu0 0
    %5948 = vmatpush1.bf16.msra.mxu0 %v5924
    %5949 = vmatprep.subr.bf16.mxu0 0
    %5950 = vmatpush1.bf16.msra.mxu0 0
    %5951 = vmatprep.subr.bf16.mxu0 0
    %5952 = vmatpush1.bf16.msra.mxu0 0
    %5953 = vmatprep.subr.bf16.mxu0 0
    %5954 = vmatpush1.bf16.msra.mxu0 0
    %5955 = vmatprep.subr.bf16.mxu0 0
    %5956 = vmatpush1.bf16.msra.mxu0 0
    %5957 = vmatprep.subr.bf16.mxu0 0
    %5958 = vmatpush1.bf16.msra.mxu0 0
    %5959 = vmatprep.subr.bf16.mxu0 0
    %5960 = vmatpush1.bf16.msra.mxu0 0
    %5961 = vmatprep.subr.bf16.mxu0 0
    %5962 = vmatpush1.bf16.msra.mxu0 0
    %5963 = vmatprep.subr.bf16.mxu0 0
    %5964 = vmatpush1.bf16.msra.mxu0 0
    %5965 = vmatprep.mubr.bf16.mxu0 0
    %5966 = vmatmul.mubr.bf16.gmra.mrb[0].mxu0 %v5861
    %v5967 = vpop.f32.mrb[0].mxu0
    %v5968 = vadd.f32 %v5883, %v5967
    %v5969 = vpop.f32.mrb[0].mxu0
    %v5970 = vpop.f32.mrb[0].mxu0
    %v5971 = vadd.f32 %v5883, %v5970
    %v5972 = vpop.f32.mrb[0].mxu0
    %5973 = vdwg.mxu0
    %v5974 = vmax.f32 %v5968, 0.0
    %v5975 = vmax.f32 %v5971, 0.0
    %v5976 = vpack.c.bf16 %v5975, %v5974
    %v5977 = vld [vmem:[#allocation29] sm:$0xf]
    %v5978 = vld [vmem:[#allocation29 + $0x4] sm:$0xf]
    %v5979 = vld [vmem:[#allocation29 + $0x8] sm:$0xf]
    %v5980 = vld [vmem:[#allocation29 + $0xc] sm:$0xf]
    %v5981 = vld [vmem:[#allocation29 + $0x10] sm:$0xf]
    %v5982 = vld [vmem:[#allocation29 + $0x14] sm:$0xf]
    %v5983 = vld [vmem:[#allocation29 + $0x18] sm:$0xf]
    %v5984 = vld [vmem:[#allocation29 + $0x1c] sm:$0xf]
    %v5985 = vld [vmem:[#allocation29 + $0x20] sm:$0xf]
    %v5986 = vld [vmem:[#allocation29 + $0x24] sm:$0xf]
    %v5987 = vld [vmem:[#allocation29 + $0x28] sm:$0xf]
    %v5988 = vld [vmem:[#allocation29 + $0x2c] sm:$0xf]
    %v5989 = vld [vmem:[#allocation29 + $0x30] sm:$0xf]
    %v5990 = vld [vmem:[#allocation29 + $0x34] sm:$0xf]
    %v5991 = vld [vmem:[#allocation29 + $0x38] sm:$0xf]
    %v5992 = vld [vmem:[#allocation29 + $0x3c] sm:$0xf]
    %v5993 = vld [vmem:[%s20] sm:$0x1]
    %v5995 = vlaneseq
    %v5996 = vshrl.u32 %v5995, 7
    %v5997 = vsub.s32 0, %v5996
    %v5998 = vrot.slane %v5993, %v5997
    %v6016 = vunpack.c.l.b16 %v5977
    %v6017 = vunpack.c.l.b16 %v5978
    %v6018 = vunpack.c.l.b16 %v5979
    %v6019 = vunpack.c.l.b16 %v5980
    %v6020 = vunpack.c.l.b16 %v5981
    %v6021 = vunpack.c.l.b16 %v5982
    %v6022 = vunpack.c.l.b16 %v5983
    %v6023 = vunpack.c.l.b16 %v5984
    %v6024 = vunpack.c.l.b16 %v5985
    %v6025 = vunpack.c.l.b16 %v5986
    %v6026 = vunpack.c.l.b16 %v5987
    %v6027 = vunpack.c.l.b16 %v5988
    %v6028 = vunpack.c.l.b16 %v5989
    %v6029 = vunpack.c.l.b16 %v5990
    %v6030 = vunpack.c.l.b16 %v5991
    %v6031 = vunpack.c.l.b16 %v5992
    %v6032 = vpack.c.b16 %v6017, %v6016
    %v6033 = vpack.c.b16 %v6019, %v6018
    %v6034 = vpack.c.b16 %v6021, %v6020
    %v6035 = vpack.c.b16 %v6023, %v6022
    %v6036 = vpack.c.b16 %v6025, %v6024
    %v6037 = vpack.c.b16 %v6027, %v6026
    %v6038 = vpack.c.b16 %v6029, %v6028
    %v6039 = vpack.c.b16 %v6031, %v6030
    %6048 = vmatprep.subr.bf16.mxu0 0
    %6049 = vmatpush1.bf16.msra.mxu0 %v6032
    %6050 = vmatprep.subr.bf16.mxu0 0
    %6051 = vmatpush1.bf16.msra.mxu0 %v6033
    %6052 = vmatprep.subr.bf16.mxu0 0
    %6053 = vmatpush1.bf16.msra.mxu0 %v6034
    %6054 = vmatprep.subr.bf16.mxu0 0
    %6055 = vmatpush1.bf16.msra.mxu0 %v6035
    %6056 = vmatprep.subr.bf16.mxu0 0
    %6057 = vmatpush1.bf16.msra.mxu0 %v6036
    %6058 = vmatprep.subr.bf16.mxu0 0
    %6059 = vmatpush1.bf16.msra.mxu0 %v6037
    %6060 = vmatprep.subr.bf16.mxu0 0
    %6061 = vmatpush1.bf16.msra.mxu0 %v6038
    %6062 = vmatprep.subr.bf16.mxu0 0
    %6063 = vmatpush1.bf16.msra.mxu0 %v6039
    %6064 = vmatprep.subr.bf16.mxu0 0
    %6065 = vmatpush1.bf16.msra.mxu0 0
    %6066 = vmatprep.subr.bf16.mxu0 0
    %6067 = vmatpush1.bf16.msra.mxu0 0
    %6068 = vmatprep.subr.bf16.mxu0 0
    %6069 = vmatpush1.bf16.msra.mxu0 0
    %6070 = vmatprep.subr.bf16.mxu0 0
    %6071 = vmatpush1.bf16.msra.mxu0 0
    %6072 = vmatprep.subr.bf16.mxu0 0
    %6073 = vmatpush1.bf16.msra.mxu0 0
    %6074 = vmatprep.subr.bf16.mxu0 0
    %6075 = vmatpush1.bf16.msra.mxu0 0
    %6076 = vmatprep.subr.bf16.mxu0 0
    %6077 = vmatpush1.bf16.msra.mxu0 0
    %6078 = vmatprep.subr.bf16.mxu0 0
    %6079 = vmatpush1.bf16.msra.mxu0 0
    %6080 = vmatprep.mubr.bf16.mxu0 0
    %6081 = vmatmul.mubr.bf16.gmra.mrb[0].mxu0 %v5976
    %v6082 = vpop.f32.mrb[0].mxu0
    %v6083 = vadd.f32 %v5998, %v6082
    %v6084 = vpop.f32.mrb[0].mxu0
    %v6085 = vpop.f32.mrb[0].mxu0
    %v6086 = vadd.f32 %v5998, %v6085
    %v6087 = vpop.f32.mrb[0].mxu0
    %6088 = vdwg.mxu0
    %v6089 = vxor.u32 %v6083, 2147483648
    %v6090 = vxor.u32 %v6086, 2147483648
    %v6091 = vmul.f32 %v6089, 1.442695
    %v6092 = vpow.pop %v6091
    %v6093 = vmul.f32 %v6090, 1.442695
    %v6094 = vpow.pop %v6093
    %v6095 = vadd.f32 %v6092, 1.0
    %v6096 = vadd.f32 %v6094, 1.0
    %v6097 = vrcp.pop %v6095
    %v6098 = vmul.f32 1.0, %v6097
    %v6099 = vrcp.pop %v6096
    %v6100 = vmul.f32 1.0, %v6099
    %6101 = vst [vmem:[#allocation31] sm:$0xff] %v6098
    %6102 = vst [vmem:[#allocation31 + $0x8] sm:$0xff] %v6100
    // Predicated region
    $region158: #{tpu_custom_call.1} parent=1 // pred_check
      _
    $region159: #{tpu_custom_call.1} parent=1 // pred_check_branch
      %6104 = sbr.rel (0) target = $region161
    $region160: #{tpu_custom_call.1} parent=1 // pred_region
      %s6106 = ssub.s32 256, 256
      %6107 = vsyncadd [#allocation4], %s6106
      %s6108 = sshll.u32 [#allocation31], 4
      %s6109 = int_to_ptr.vmem [resolvable:$true] %s6108
      %6114 = dma.vmem_to_hbm [thread:$0]  %s6109, 256, %s21, [#allocation4], 128, 128, 8
    $region161: #{tpu_custom_call.1} parent=1 // pred_fallthru
      _
    // Predicated region
    $region162: #{tpu_custom_call.1} parent=1 // pred_check
      _
    $region163: #{tpu_custom_call.1} parent=1 // pred_check_branch
      %6116 = sbr.rel (0) target = $region165
    $region164: #{tpu_custom_call.1} parent=1 // pred_region
      %6117 = dma.done [#allocation4], 256
    $region165: #{tpu_custom_call.1} parent=1 // pred_fallthru
      _
    %6118 = vsyncpa [#allocation3], 1
    %6119 = vsyncpa [#allocation6], 1
    %6120 = vsyncpa [#allocation9], 1
    %6121 = vsyncpa [#allocation12], 1
    %6122 = vsyncpa [#allocation15], 1
    %6123 = vsyncpa [#allocation18], 1
    %6124 = vsyncpa [#allocation21], 1
    %6125 = vsyncpa [#allocation24], 1
    %6126 = vsyncpa [#allocation27], 1
    %6127 = vsyncpa [#allocation30], 1
    %6128 = vsyncpa [#allocation4], 1

</llo_original>
